<compile_context>
chip_gen: v7x
topology: tpu7x:2x2x1
jax: 0.10.0
libtpu: 0.0.40
codegen_flags: <defaults>
</compile_context>

<pallas_src>
import functools

import jax
import jax.numpy as jnp
import numpy as np
from jax.experimental import pallas as pl
from jax.experimental.pallas import tpu as pltpu

LANES = 128


def _round_up(x, m):
    return (x + m - 1) // m * m


def _pick_tile_m(M, Kp):
    # Keep 2*(tile_m*Kp*2B + Kp*128*2B + tile_m*128*4B) well under the 16 MiB
    # v5e scoped-VMEM default (and far under v7x's 64 MiB physical).
    cap = 512 if Kp <= 2048 else 256
    return min(cap, _round_up(M, 16))


# ----------------------------------------------------------------------------
# Pallas kernels
# ----------------------------------------------------------------------------
def _linear_kernel(x_ref, w_ref, b_ref, o_ref, *, relu):
    # bf16 operands on the MXU, f32 accumulate; bias/ReLU in f32.
    y = jnp.dot(x_ref[...], w_ref[...], preferred_element_type=jnp.float32)
    y = y + b_ref[...]          # b_ref is (1, N), broadcasts over rows
    if relu:
        y = jnp.maximum(y, 0.0)
    o_ref[...] = y.astype(o_ref.dtype)


def _mlp_head_kernel(x_ref, w1_ref, b1_ref, w2_ref, b2_ref, o_ref):
    # Fused fc(3136->128)+ReLU and classifier(128->10, padded to 128 lanes).
    h = jnp.dot(x_ref[...], w1_ref[...], preferred_element_type=jnp.float32)
    h = jnp.maximum(h + b1_ref[...], 0.0)
    y = jnp.dot(h.astype(jnp.bfloat16), w2_ref[...],
                preferred_element_type=jnp.float32)
    o_ref[...] = (y + b2_ref[...]).astype(o_ref.dtype)


# ----------------------------------------------------------------------------
# Kernel wrappers
# ----------------------------------------------------------------------------
def pallas_linear(x, w, b, *, relu=False, out_dtype=jnp.float32):
    """y = relu?(x @ w + b).  x:[M,K], w:[K,N] (N % 128 == 0), b:[N]."""
    M, K = x.shape
    K2, N = w.shape
    assert K == K2 and N % LANES == 0

    x = x.astype(jnp.bfloat16)
    w = w.astype(jnp.bfloat16)

    # Pad K to a lane multiple so every block is on the fast (8/16,128) path.
    Kp = _round_up(K, LANES)
    if Kp != K:
        x = jnp.pad(x, ((0, 0), (0, Kp - K)))
        w = jnp.pad(w, ((0, Kp - K), (0, 0)))

    tile_m = _pick_tile_m(M, Kp)
    Mp = _round_up(M, tile_m)
    if Mp != M:
        x = jnp.pad(x, ((0, Mp - M), (0, 0)))

    b2 = b.reshape(1, N).astype(jnp.float32)

    out = pl.pallas_call(
        functools.partial(_linear_kernel, relu=relu),
        out_shape=jax.ShapeDtypeStruct((Mp, N), out_dtype),
        grid=(Mp // tile_m,),
        in_specs=[
            pl.BlockSpec((tile_m, Kp), lambda i: (i, 0)),
            pl.BlockSpec((Kp, N), lambda i: (0, 0)),
            pl.BlockSpec((1, N), lambda i: (0, 0)),
        ],
        out_specs=pl.BlockSpec((tile_m, N), lambda i: (i, 0)),
        compiler_params=pltpu.CompilerParams(
            dimension_semantics=("parallel",)),
    )(x, w, b2)
    return out[:M] if Mp != M else out


def pallas_mlp_head(x, w1, b1, w2, b2):
    """Fused (x @ w1 + b1).relu() @ w2 + b2.  x:[M,K], w1:[K,128], w2:[128,Np]."""
    M, K = x.shape
    K1, N1 = w1.shape
    N1b, N2 = w2.shape
    assert K == K1 and N1 == N1b and K % LANES == 0
    assert N1 % LANES == 0 and N2 % LANES == 0

    x = x.astype(jnp.bfloat16)
    tile_m = _pick_tile_m(M, K)
    Mp = _round_up(M, tile_m)
    if Mp != M:
        x = jnp.pad(x, ((0, Mp - M), (0, 0)))

    out = pl.pallas_call(
        _mlp_head_kernel,
        out_shape=jax.ShapeDtypeStruct((Mp, N2), jnp.float32),
        grid=(Mp // tile_m,),
        in_specs=[
            pl.BlockSpec((tile_m, K), lambda i: (i, 0)),
            pl.BlockSpec((K, N1), lambda i: (0, 0)),
            pl.BlockSpec((1, N1), lambda i: (0, 0)),
            pl.BlockSpec((N1, N2), lambda i: (0, 0)),
            pl.BlockSpec((1, N2), lambda i: (0, 0)),
        ],
        out_specs=pl.BlockSpec((tile_m, N2), lambda i: (i, 0)),
        compiler_params=pltpu.CompilerParams(
            dimension_semantics=("parallel",)),
    )(x,
      w1.astype(jnp.bfloat16), b1.reshape(1, N1).astype(jnp.float32),
      w2.astype(jnp.bfloat16), b2.reshape(1, N2).astype(jnp.float32))
    return out[:M] if Mp != M else out


# ----------------------------------------------------------------------------
# Plain-JAX glue: NHWC im2col (no layout transposes between layers)
# ----------------------------------------------------------------------------
def im2col_nhwc(x, kh, kw, stride, padding):
    """x: [B, H, W, C] -> patches [B*Ho*Wo, kh*kw*C] (order i, j, c)."""
    B, H, W, C = x.shape
    xp = jnp.pad(x, ((0, 0), (padding, padding), (padding, padding), (0, 0)))
    Ho = (H + 2 * padding - kh) // stride + 1
    Wo = (W + 2 * padding - kw) // stride + 1
    cols = []
    for i in range(kh):
        for j in range(kw):
            cols.append(xp[:, i:i + stride * Ho:stride,
                           j:j + stride * Wo:stride, :])
    p = jnp.concatenate(cols, axis=-1)            # [B, Ho, Wo, kh*kw*C]
    return p.reshape(B * Ho * Wo, kh * kw * C), Ho, Wo


def conv2d_pallas_nhwc(x_nhwc, w_oihw, b, *, stride, padding, cout_pad=LANES):
    """NHWC conv (+bias +ReLU) via im2col + Pallas matmul.

    x_nhwc: [B,H,W,Cp] (channels possibly zero-padded to Cp).
    Returns NHWC output with Cout zero-padded to `cout_pad` lanes (bf16).
    """
    B, H, W, Cp = x_nhwc.shape
    Cout, Cin, kh, kw = w_oihw.shape
    patches, Ho, Wo = im2col_nhwc(x_nhwc, kh, kw, stride, padding)
    # OIHW -> [kh, kw, Cin, Cout] -> zero-pad Cin to Cp, Cout to cout_pad.
    w_hwio = jnp.transpose(w_oihw, (2, 3, 1, 0))
    w_hwio = jnp.pad(w_hwio, ((0, 0), (0, 0),
                              (0, Cp - Cin), (0, cout_pad - Cout)))
    w_mat = w_hwio.reshape(kh * kw * Cp, cout_pad)
    b_pad = jnp.pad(b, (0, cout_pad - Cout))
    y = pallas_linear(patches, w_mat, b_pad, relu=True, out_dtype=jnp.bfloat16)
    return y.reshape(B, Ho, Wo, cout_pad)


# ----------------------------------------------------------------------------
# Model: parameter init + forward
# ----------------------------------------------------------------------------
def init_params(key):
    ks = jax.random.split(key, 8)

    def dense_init(kw_, kb_, fan_in, shape_w, shape_b):
        scale = 1.0 / np.sqrt(fan_in)
        w = jax.random.uniform(kw_, shape_w, jnp.float32, -scale, scale)
        b = jax.random.uniform(kb_, shape_b, jnp.float32, -scale, scale)
        return w, b

    p = {}
    # conv1: Conv2d(1, 32, 3, stride=2, padding=1)
    p["conv1_w"], p["conv1_b"] = dense_init(ks[0], ks[1], 1 * 3 * 3,
                                            (32, 1, 3, 3), (32,))
    # conv2: Conv2d(32, 64, 3, stride=2, padding=1)
    p["conv2_w"], p["conv2_b"] = dense_init(ks[2], ks[3], 32 * 3 * 3,
                                            (64, 32, 3, 3), (64,))
    # fc: Linear(64*7*7, 128)   (weight stored [in, out], NCHW-flatten rows)
    p["fc_w"], p["fc_b"] = dense_init(ks[4], ks[5], 64 * 7 * 7,
                                      (64 * 7 * 7, 128), (128,))
    # classifier: Linear(128, 10)
    p["cls_w"], p["cls_b"] = dense_init(ks[6], ks[7], 128,
                                        (128, 10), (10,))
    return p


def mnist_classifier_forward(params, x):
    """x: [B, 1, 28, 28] NCHW f32 -> logits [B, 10] f32."""
    B = x.shape[0]
    # Single layout change to NHWC; kept NHWC end-to-end afterwards.
    h = jnp.transpose(x, (0, 2, 3, 1)).astype(jnp.bfloat16)          # [B,28,28,1]
    h = conv2d_pallas_nhwc(h, params["conv1_w"], params["conv1_b"],
                           stride=2, padding=1)                       # [B,14,14,128]
    h = conv2d_pallas_nhwc(h, params["conv2_w"], params["conv2_b"],
                           stride=2, padding=1)                       # [B,7,7,128]
    h = h.reshape(B, -1)                                              # [B, 6272]

    # fc weight rows are NCHW-flatten (c,h,w) order -> permute to NHWC (h,w,c)
    # and zero-pad the channel axis 64 -> 128 to match the padded activations.
    fc_w = params["fc_w"].reshape(64, 7, 7, 128).transpose(1, 2, 0, 3)
    fc_w = jnp.pad(fc_w, ((0, 0), (0, 0), (0, LANES - 64), (0, 0)))
    fc_w = fc_w.reshape(7 * 7 * LANES, 128)
    # classifier weight/bias padded to 128 output lanes (lane-dense store).
    cls_w = jnp.pad(params["cls_w"], ((0, 0), (0, LANES - 10)))
    cls_b = jnp.pad(params["cls_b"], (0, LANES - 10))

    logits = pallas_mlp_head(h, fc_w, params["fc_b"], cls_w, cls_b)   # [B,128]
    return logits[:, :10]


# ----------------------------------------------------------------------------
# Reference (same math: bf16 operands, f32 accumulation) for correctness check
# ----------------------------------------------------------------------------
def reference_forward(params, x):
    dn = ("NCHW", "OIHW", "NCHW")

    def conv(h, w, b, stride):
        y = jax.lax.conv_general_dilated(
            h.astype(jnp.bfloat16), w.astype(jnp.bfloat16), (stride, stride),
            [(1, 1), (1, 1)], dimension_numbers=dn,
            preferred_element_type=jnp.float32)
        return jnp.maximum(y + b[None, :, None, None], 0.0).astype(jnp.bfloat16)

    h = conv(x, params["conv1_w"], params["conv1_b"], 2)
    h = conv(h, params["conv2_w"], params["conv2_b"], 2)
    h = h.reshape(h.shape[0], -1)                      # NCHW flatten (c,h,w)
    feats = jnp.dot(h, params["fc_w"].astype(jnp.bfloat16),
                    preferred_element_type=jnp.float32)
    feats = jnp.maximum(feats + params["fc_b"], 0.0).astype(jnp.bfloat16)
    logits = jnp.dot(feats, params["cls_w"].astype(jnp.bfloat16),
                     preferred_element_type=jnp.float32)
    return logits + params["cls_b"]


if __name__ == "__main__":
    key = jax.random.PRNGKey(0)
    k_param, k_x = jax.random.split(key)

    params = init_params(k_param)
    x = jax.random.normal(k_x, (2, 1, 28, 28), jnp.float32)  # small batch, MNIST shape

    fwd = jax.jit(mnist_classifier_forward)
    logits = jax.block_until_ready(fwd(params, x))
    assert logits.shape == (2, 10) and logits.dtype == jnp.float32

    ref = jax.block_until_ready(reference_forward(params, x))
    np.testing.assert_allclose(np.asarray(logits), np.asarray(ref),
                               rtol=2e-2, atol=2e-2)

    print("KERNEL_OK")
</pallas_src>

<mosaic_0001>
module attributes {stable_mosaic.version = 11 : i64} {
  func.func @_linear_kernel(%arg0: i32, %arg1: memref<400x128xbf16, #tpu.memory_space<vmem>>, %arg2: memref<128x128xbf16, #tpu.memory_space<vmem>>, %arg3: memref<1x128xf32, #tpu.memory_space<vmem>>, %arg4: memref<400x128xbf16, #tpu.memory_space<vmem>>) attributes {dimension_semantics = [#tpu.dimension_semantics<parallel>], iteration_bounds = array<i64: 1>, scalar_prefetch = 0 : i64, scratch_operands = 0 : i64, tpu.core_type = #tpu.core_type<tc>, window_params = [{transform_indices = @transform_0, window_bounds = array<i64: 400, 128>}, {pipeline_mode = #tpu.pipeline_mode<synchronous>, transform_indices = @transform_1, window_bounds = array<i64: 128, 128>}, {pipeline_mode = #tpu.pipeline_mode<synchronous>, transform_indices = @transform_2, window_bounds = array<i64: 1, 128>}, {transform_indices = @transform_3, window_bounds = array<i64: 400, 128>}]} {
    %c0 = arith.constant 0 : index
    %c0_0 = arith.constant 0 : index
    %0 = vector.load %arg1[%c0, %c0_0] : memref<400x128xbf16, #tpu.memory_space<vmem>>, vector<400x128xbf16>
    %c0_1 = arith.constant 0 : index
    %c0_2 = arith.constant 0 : index
    %1 = vector.load %arg2[%c0_1, %c0_2] : memref<128x128xbf16, #tpu.memory_space<vmem>>, vector<128x128xbf16>
    %cst = arith.constant dense<0.000000e+00> : vector<400x128xf32>
    %2 = tpu.matmul %0, %1, %cst {dimension_numbers = #tpu.dot_dimension_numbers<[1], [0], [0], [1], [0, 0, 1, 1], [], []>} : vector<400x128xbf16>, vector<128x128xbf16>, vector<400x128xf32> -> vector<400x128xf32>
    %c0_3 = arith.constant 0 : index
    %c0_4 = arith.constant 0 : index
    %3 = vector.load %arg3[%c0_3, %c0_4] : memref<1x128xf32, #tpu.memory_space<vmem>>, vector<1x128xf32>
    %4 = vector.broadcast %3 : vector<1x128xf32> to vector<400x128xf32>
    %5 = arith.addf %2, %4 : vector<400x128xf32>
    %cst_5 = arith.constant 0.000000e+00 : f32
    %6 = vector.broadcast %cst_5 : f32 to vector<400x128xf32>
    %7 = arith.maximumf %5, %6 : vector<400x128xf32>
    %8 = arith.truncf %7 : vector<400x128xf32> to vector<400x128xbf16>
    %c0_6 = arith.constant 0 : index
    %c0_7 = arith.constant 0 : index
    %9 = vector.load %arg4[%c0_6, %c0_7] : memref<400x128xbf16, #tpu.memory_space<vmem>>, vector<400x128xbf16>
    tpu.vector_store %arg4[%c0_6, %c0_7], %8 {strides = array<i32>} : memref<400x128xbf16, #tpu.memory_space<vmem>>, vector<400x128xbf16>,
    return
  }
  func.func @transform_0(%arg0: i32) -> (i32, i32) {
    %c0_i32 = arith.constant 0 : i32
    %c0_i32_0 = arith.constant 0 : i32
    return %arg0, %c0_i32 : i32, i32
  }
  func.func @transform_1(%arg0: i32) -> (i32, i32) {
    %c0_i32 = arith.constant 0 : i32
    %c0_i32_0 = arith.constant 0 : i32
    %c0_i32_1 = arith.constant 0 : i32
    return %c0_i32, %c0_i32_0 : i32, i32
  }
  func.func @transform_2(%arg0: i32) -> (i32, i32) {
    %c0_i32 = arith.constant 0 : i32
    %c0_i32_0 = arith.constant 0 : i32
    %c0_i32_1 = arith.constant 0 : i32
    return %c0_i32, %c0_i32_0 : i32, i32
  }
  func.func @transform_3(%arg0: i32) -> (i32, i32) {
    %c0_i32 = arith.constant 0 : i32
    %c0_i32_0 = arith.constant 0 : i32
    return %arg0, %c0_i32 : i32, i32
  }
}

module attributes {stable_mosaic.version = 11 : i64} {
  func.func @_linear_kernel(%arg0: i32, %arg1: memref<112x1152xbf16, #tpu.memory_space<vmem>>, %arg2: memref<1152x128xbf16, #tpu.memory_space<vmem>>, %arg3: memref<1x128xf32, #tpu.memory_space<vmem>>, %arg4: memref<112x128xbf16, #tpu.memory_space<vmem>>) attributes {dimension_semantics = [#tpu.dimension_semantics<parallel>], iteration_bounds = array<i64: 1>, scalar_prefetch = 0 : i64, scratch_operands = 0 : i64, tpu.core_type = #tpu.core_type<tc>, window_params = [{transform_indices = @transform_0, window_bounds = array<i64: 112, 1152>}, {pipeline_mode = #tpu.pipeline_mode<synchronous>, transform_indices = @transform_1, window_bounds = array<i64: 1152, 128>}, {pipeline_mode = #tpu.pipeline_mode<synchronous>, transform_indices = @transform_2, window_bounds = array<i64: 1, 128>}, {transform_indices = @transform_3, window_bounds = array<i64: 112, 128>}]} {
    %c0 = arith.constant 0 : index
    %c0_0 = arith.constant 0 : index
    %0 = vector.load %arg1[%c0, %c0_0] : memref<112x1152xbf16, #tpu.memory_space<vmem>>, vector<112x1152xbf16>
    %c0_1 = arith.constant 0 : index
    %c0_2 = arith.constant 0 : index
    %1 = vector.load %arg2[%c0_1, %c0_2] : memref<1152x128xbf16, #tpu.memory_space<vmem>>, vector<1152x128xbf16>
    %cst = arith.constant dense<0.000000e+00> : vector<112x128xf32>
    %2 = tpu.matmul %0, %1, %cst {dimension_numbers = #tpu.dot_dimension_numbers<[1], [0], [0], [1], [0, 0, 1, 1], [], []>} : vector<112x1152xbf16>, vector<1152x128xbf16>, vector<112x128xf32> -> vector<112x128xf32>
    %c0_3 = arith.constant 0 : index
    %c0_4 = arith.constant 0 : index
    %3 = vector.load %arg3[%c0_3, %c0_4] : memref<1x128xf32, #tpu.memory_space<vmem>>, vector<1x128xf32>
    %4 = vector.broadcast %3 : vector<1x128xf32> to vector<112x128xf32>
    %5 = arith.addf %2, %4 : vector<112x128xf32>
    %cst_5 = arith.constant 0.000000e+00 : f32
    %6 = vector.broadcast %cst_5 : f32 to vector<112x128xf32>
    %7 = arith.maximumf %5, %6 : vector<112x128xf32>
    %8 = arith.truncf %7 : vector<112x128xf32> to vector<112x128xbf16>
    %c0_6 = arith.constant 0 : index
    %c0_7 = arith.constant 0 : index
    %9 = vector.load %arg4[%c0_6, %c0_7] : memref<112x128xbf16, #tpu.memory_space<vmem>>, vector<112x128xbf16>
    tpu.vector_store %arg4[%c0_6, %c0_7], %8 {strides = array<i32>} : memref<112x128xbf16, #tpu.memory_space<vmem>>, vector<112x128xbf16>,
    return
  }
  func.func @transform_0(%arg0: i32) -> (i32, i32) {
    %c0_i32 = arith.constant 0 : i32
    %c0_i32_0 = arith.constant 0 : i32
    return %arg0, %c0_i32 : i32, i32
  }
  func.func @transform_1(%arg0: i32) -> (i32, i32) {
    %c0_i32 = arith.constant 0 : i32
    %c0_i32_0 = arith.constant 0 : i32
    %c0_i32_1 = arith.constant 0 : i32
    return %c0_i32, %c0_i32_0 : i32, i32
  }
  func.func @transform_2(%arg0: i32) -> (i32, i32) {
    %c0_i32 = arith.constant 0 : i32
    %c0_i32_0 = arith.constant 0 : i32
    %c0_i32_1 = arith.constant 0 : i32
    return %c0_i32, %c0_i32_0 : i32, i32
  }
  func.func @transform_3(%arg0: i32) -> (i32, i32) {
    %c0_i32 = arith.constant 0 : i32
    %c0_i32_0 = arith.constant 0 : i32
    return %arg0, %c0_i32 : i32, i32
  }
}

module attributes {stable_mosaic.version = 11 : i64} {
  func.func @_mlp_head_kernel(%arg0: i32, %arg1: memref<16x6272xbf16, #tpu.memory_space<vmem>>, %arg2: memref<6272x128xbf16, #tpu.memory_space<vmem>>, %arg3: memref<1x128xf32, #tpu.memory_space<vmem>>, %arg4: memref<128x128xbf16, #tpu.memory_space<vmem>>, %arg5: memref<1x128xf32, #tpu.memory_space<vmem>>, %arg6: memref<16x128xf32, #tpu.memory_space<vmem>>) attributes {dimension_semantics = [#tpu.dimension_semantics<parallel>], iteration_bounds = array<i64: 1>, scalar_prefetch = 0 : i64, scratch_operands = 0 : i64, tpu.core_type = #tpu.core_type<tc>, window_params = [{transform_indices = @transform_0, window_bounds = array<i64: 16, 6272>}, {pipeline_mode = #tpu.pipeline_mode<synchronous>, transform_indices = @transform_1, window_bounds = array<i64: 6272, 128>}, {pipeline_mode = #tpu.pipeline_mode<synchronous>, transform_indices = @transform_2, window_bounds = array<i64: 1, 128>}, {pipeline_mode = #tpu.pipeline_mode<synchronous>, transform_indices = @transform_3, window_bounds = array<i64: 128, 128>}, {pipeline_mode = #tpu.pipeline_mode<synchronous>, transform_indices = @transform_4, window_bounds = array<i64: 1, 128>}, {transform_indices = @transform_5, window_bounds = array<i64: 16, 128>}]} {
    %c0 = arith.constant 0 : index
    %c0_0 = arith.constant 0 : index
    %0 = vector.load %arg1[%c0, %c0_0] : memref<16x6272xbf16, #tpu.memory_space<vmem>>, vector<16x6272xbf16>
    %c0_1 = arith.constant 0 : index
    %c0_2 = arith.constant 0 : index
    %1 = vector.load %arg2[%c0_1, %c0_2] : memref<6272x128xbf16, #tpu.memory_space<vmem>>, vector<6272x128xbf16>
    %cst = arith.constant dense<0.000000e+00> : vector<16x128xf32>
    %2 = tpu.matmul %0, %1, %cst {dimension_numbers = #tpu.dot_dimension_numbers<[1], [0], [0], [1], [0, 0, 1, 1], [], []>} : vector<16x6272xbf16>, vector<6272x128xbf16>, vector<16x128xf32> -> vector<16x128xf32>
    %c0_3 = arith.constant 0 : index
    %c0_4 = arith.constant 0 : index
    %3 = vector.load %arg3[%c0_3, %c0_4] : memref<1x128xf32, #tpu.memory_space<vmem>>, vector<1x128xf32>
    %4 = vector.broadcast %3 : vector<1x128xf32> to vector<16x128xf32>
    %5 = arith.addf %2, %4 : vector<16x128xf32>
    %cst_5 = arith.constant 0.000000e+00 : f32
    %6 = vector.broadcast %cst_5 : f32 to vector<16x128xf32>
    %7 = arith.maximumf %5, %6 : vector<16x128xf32>
    %8 = arith.truncf %7 : vector<16x128xf32> to vector<16x128xbf16>
    %c0_6 = arith.constant 0 : index
    %c0_7 = arith.constant 0 : index
    %9 = vector.load %arg4[%c0_6, %c0_7] : memref<128x128xbf16, #tpu.memory_space<vmem>>, vector<128x128xbf16>
    %cst_8 = arith.constant dense<0.000000e+00> : vector<16x128xf32>
    %10 = tpu.matmul %8, %9, %cst_8 {dimension_numbers = #tpu.dot_dimension_numbers<[1], [0], [0], [1], [0, 0, 1, 1], [], []>} : vector<16x128xbf16>, vector<128x128xbf16>, vector<16x128xf32> -> vector<16x128xf32>
    %c0_9 = arith.constant 0 : index
    %c0_10 = arith.constant 0 : index
    %11 = vector.load %arg5[%c0_9, %c0_10] : memref<1x128xf32, #tpu.memory_space<vmem>>, vector<1x128xf32>
    %12 = vector.broadcast %11 : vector<1x128xf32> to vector<16x128xf32>
    %13 = arith.addf %10, %12 : vector<16x128xf32>
    %c0_11 = arith.constant 0 : index
    %c0_12 = arith.constant 0 : index
    %14 = vector.load %arg6[%c0_11, %c0_12] : memref<16x128xf32, #tpu.memory_space<vmem>>, vector<16x128xf32>
    tpu.vector_store %arg6[%c0_11, %c0_12], %13 {strides = array<i32>} : memref<16x128xf32, #tpu.memory_space<vmem>>, vector<16x128xf32>,
    return
  }
  func.func @transform_0(%arg0: i32) -> (i32, i32) {
    %c0_i32 = arith.constant 0 : i32
    %c0_i32_0 = arith.constant 0 : i32
    return %arg0, %c0_i32 : i32, i32
  }
  func.func @transform_1(%arg0: i32) -> (i32, i32) {
    %c0_i32 = arith.constant 0 : i32
    %c0_i32_0 = arith.constant 0 : i32
    %c0_i32_1 = arith.constant 0 : i32
    return %c0_i32, %c0_i32_0 : i32, i32
  }
  func.func @transform_2(%arg0: i32) -> (i32, i32) {
    %c0_i32 = arith.constant 0 : i32
    %c0_i32_0 = arith.constant 0 : i32
    %c0_i32_1 = arith.constant 0 : i32
    return %c0_i32, %c0_i32_0 : i32, i32
  }
  func.func @transform_3(%arg0: i32) -> (i32, i32) {
    %c0_i32 = arith.constant 0 : i32
    %c0_i32_0 = arith.constant 0 : i32
    %c0_i32_1 = arith.constant 0 : i32
    return %c0_i32, %c0_i32_0 : i32, i32
  }
  func.func @transform_4(%arg0: i32) -> (i32, i32) {
    %c0_i32 = arith.constant 0 : i32
    %c0_i32_0 = arith.constant 0 : i32
    %c0_i32_1 = arith.constant 0 : i32
    return %c0_i32, %c0_i32_0 : i32, i32
  }
  func.func @transform_5(%arg0: i32) -> (i32, i32) {
    %c0_i32 = arith.constant 0 : i32
    %c0_i32_0 = arith.constant 0 : i32
    return %arg0, %c0_i32 : i32, i32
  }
}

</mosaic_0001>

<llo_original>
// kernel: mnist_classifier_forward.3
$region0: #{mnist_classifier_forward.3}
  #allocation0 [shape = 'u32[]', space=smem, size = 0x4, offset = 0x4, fixed_abs, tag = 'smem constant byte address 0x4 - core index']
  #allocation1 [shape = 'u32[144,128]{1,0:T(1,128)}', space=vmem, size = 0x12000, scoped, tag = 'internal scratch']
  %s0 = inlined_call_operand.vmem [shape: bf16[400,128], index: 0, kind: input, shape index: {}]
  %s1 = inlined_call_operand.vmem [shape: bf16[128,128], index: 1, kind: input, shape index: {}]
  %s2 = inlined_call_operand.vmem [shape: f32[1,128], index: 2, kind: input, shape index: {}]
  %s3 = inlined_call_operand.vmem [shape: bf16[400,128], index: 3, kind: output, shape index: {}]
  %s4 = sld [smem:[#allocation0]]
  $region22: #{mnist_classifier_forward.3} parent=0
    _
  %s6 = ssub.s32 1, %s4
  %s7 = scalar_select 0, %s6, %s4
  // Predicated region
  $region2: #{mnist_classifier_forward.3} parent=0 // pred_check
    _
  $region3: #{mnist_classifier_forward.3} parent=0 // pred_check_branch
    %9 = sbr.rel (0) target = $region5
  $region4: #{mnist_classifier_forward.3} parent=0 // pred_region
    _
  $region5: #{mnist_classifier_forward.3} parent=0 // pred_fallthru
    _
  // Predicated region
  $region6: #{mnist_classifier_forward.3} parent=0 // pred_check
    _
  $region7: #{mnist_classifier_forward.3} parent=0 // pred_check_branch
    %11 = sbr.rel (0) target = $region9
  $region8: #{mnist_classifier_forward.3} parent=0 // pred_region
    _
  $region9: #{mnist_classifier_forward.3} parent=0 // pred_fallthru
    _
  // Predicated region
  $region10: #{mnist_classifier_forward.3} parent=0 // pred_check
    _
  $region11: #{mnist_classifier_forward.3} parent=0 // pred_check_branch
    %13 = sbr.rel (0) target = $region13
  $region12: #{mnist_classifier_forward.3} parent=0 // pred_region
    _
  $region13: #{mnist_classifier_forward.3} parent=0 // pred_fallthru
    _
  %v15 = vld [vmem:[%s0] sm:$0xf]
  %v16 = vld [vmem:[%s0 + $0x4] sm:$0xf]
  %v17 = vld [vmem:[%s0 + $0x8] sm:$0xf]
  %v18 = vld [vmem:[%s0 + $0xc] sm:$0xf]
  %v19 = vld [vmem:[%s0 + $0x10] sm:$0xf]
  %v20 = vld [vmem:[%s0 + $0x14] sm:$0xf]
  %v21 = vld [vmem:[%s0 + $0x18] sm:$0xf]
  %v22 = vld [vmem:[%s0 + $0x1c] sm:$0xf]
  %v23 = vld [vmem:[%s0 + $0x20] sm:$0xf]
  %v24 = vld [vmem:[%s0 + $0x24] sm:$0xf]
  %v25 = vld [vmem:[%s0 + $0x28] sm:$0xf]
  %v26 = vld [vmem:[%s0 + $0x2c] sm:$0xf]
  %v27 = vld [vmem:[%s0 + $0x30] sm:$0xf]
  %v28 = vld [vmem:[%s0 + $0x34] sm:$0xf]
  %v29 = vld [vmem:[%s0 + $0x38] sm:$0xf]
  %v30 = vld [vmem:[%s0 + $0x3c] sm:$0xf]
  %v31 = vld [vmem:[%s0 + $0x40] sm:$0xf]
  %v32 = vld [vmem:[%s0 + $0x44] sm:$0xf]
  %v33 = vld [vmem:[%s0 + $0x48] sm:$0xf]
  %v34 = vld [vmem:[%s0 + $0x4c] sm:$0xf]
  %v35 = vld [vmem:[%s0 + $0x50] sm:$0xf]
  %v36 = vld [vmem:[%s0 + $0x54] sm:$0xf]
  %v37 = vld [vmem:[%s0 + $0x58] sm:$0xf]
  %v38 = vld [vmem:[%s0 + $0x5c] sm:$0xf]
  %v39 = vld [vmem:[%s0 + $0x60] sm:$0xf]
  %v40 = vld [vmem:[%s0 + $0x64] sm:$0xf]
  %v41 = vld [vmem:[%s0 + $0x68] sm:$0xf]
  %v42 = vld [vmem:[%s0 + $0x6c] sm:$0xf]
  %v43 = vld [vmem:[%s0 + $0x70] sm:$0xf]
  %v44 = vld [vmem:[%s0 + $0x74] sm:$0xf]
  %v45 = vld [vmem:[%s0 + $0x78] sm:$0xf]
  %v46 = vld [vmem:[%s0 + $0x7c] sm:$0xf]
  %v47 = vld [vmem:[%s0 + $0x80] sm:$0xf]
  %v48 = vld [vmem:[%s0 + $0x84] sm:$0xf]
  %v49 = vld [vmem:[%s0 + $0x88] sm:$0xf]
  %v50 = vld [vmem:[%s0 + $0x8c] sm:$0xf]
  %v51 = vld [vmem:[%s0 + $0x90] sm:$0xf]
  %v52 = vld [vmem:[%s0 + $0x94] sm:$0xf]
  %v53 = vld [vmem:[%s0 + $0x98] sm:$0xf]
  %v54 = vld [vmem:[%s0 + $0x9c] sm:$0xf]
  %v55 = vld [vmem:[%s0 + $0xa0] sm:$0xf]
  %v56 = vld [vmem:[%s0 + $0xa4] sm:$0xf]
  %v57 = vld [vmem:[%s0 + $0xa8] sm:$0xf]
  %v58 = vld [vmem:[%s0 + $0xac] sm:$0xf]
  %v59 = vld [vmem:[%s0 + $0xb0] sm:$0xf]
  %v60 = vld [vmem:[%s0 + $0xb4] sm:$0xf]
  %v61 = vld [vmem:[%s0 + $0xb8] sm:$0xf]
  %v62 = vld [vmem:[%s0 + $0xbc] sm:$0xf]
  %v63 = vld [vmem:[%s0 + $0xc0] sm:$0xf]
  %v64 = vld [vmem:[%s0 + $0xc4] sm:$0xf]
  %v65 = vld [vmem:[%s1] sm:$0xf]
  %v66 = vld [vmem:[%s1 + $0x4] sm:$0xf]
  %v67 = vld [vmem:[%s1 + $0x8] sm:$0xf]
  %v68 = vld [vmem:[%s1 + $0xc] sm:$0xf]
  %v69 = vld [vmem:[%s1 + $0x10] sm:$0xf]
  %v70 = vld [vmem:[%s1 + $0x14] sm:$0xf]
  %v71 = vld [vmem:[%s1 + $0x18] sm:$0xf]
  %v72 = vld [vmem:[%s1 + $0x1c] sm:$0xf]
  %v73 = vld [vmem:[%s1 + $0x20] sm:$0xf]
  %v74 = vld [vmem:[%s1 + $0x24] sm:$0xf]
  %v75 = vld [vmem:[%s1 + $0x28] sm:$0xf]
  %v76 = vld [vmem:[%s1 + $0x2c] sm:$0xf]
  %v77 = vld [vmem:[%s1 + $0x30] sm:$0xf]
  %v78 = vld [vmem:[%s1 + $0x34] sm:$0xf]
  %v79 = vld [vmem:[%s1 + $0x38] sm:$0xf]
  %v80 = vld [vmem:[%s1 + $0x3c] sm:$0xf]
  %v81 = vld [vmem:[%s2] sm:$0x1]
  %v83 = vlaneseq
  %v84 = vshrl.u32 %v83, 7
  %v85 = vsub.s32 0, %v84
  %v86 = vrot.slane %v81, %v85
  %v138 = vunpack.c.l.b16 %v15
  %v139 = vunpack.c.l.b16 %v16
  %v140 = vunpack.c.l.b16 %v17
  %v141 = vunpack.c.l.b16 %v18
  %v142 = vunpack.c.l.b16 %v19
  %v143 = vunpack.c.l.b16 %v20
  %v144 = vunpack.c.l.b16 %v21
  %v145 = vunpack.c.l.b16 %v22
  %v146 = vunpack.c.l.b16 %v23
  %v147 = vunpack.c.l.b16 %v24
  %v148 = vunpack.c.l.b16 %v25
  %v149 = vunpack.c.l.b16 %v26
  %v150 = vunpack.c.l.b16 %v27
  %v151 = vunpack.c.l.b16 %v28
  %v152 = vunpack.c.l.b16 %v29
  %v153 = vunpack.c.l.b16 %v30
  %v154 = vunpack.c.l.b16 %v31
  %v155 = vunpack.c.l.b16 %v32
  %v156 = vunpack.c.l.b16 %v33
  %v157 = vunpack.c.l.b16 %v34
  %v158 = vunpack.c.l.b16 %v35
  %v159 = vunpack.c.l.b16 %v36
  %v160 = vunpack.c.l.b16 %v37
  %v161 = vunpack.c.l.b16 %v38
  %v162 = vunpack.c.l.b16 %v39
  %v163 = vunpack.c.l.b16 %v40
  %v164 = vunpack.c.l.b16 %v41
  %v165 = vunpack.c.l.b16 %v42
  %v166 = vunpack.c.l.b16 %v43
  %v167 = vunpack.c.l.b16 %v44
  %v168 = vunpack.c.l.b16 %v45
  %v169 = vunpack.c.l.b16 %v46
  %v170 = vunpack.c.l.b16 %v47
  %v171 = vunpack.c.l.b16 %v48
  %v172 = vunpack.c.l.b16 %v49
  %v173 = vunpack.c.l.b16 %v50
  %v174 = vunpack.c.l.b16 %v51
  %v175 = vunpack.c.l.b16 %v52
  %v176 = vunpack.c.l.b16 %v53
  %v177 = vunpack.c.l.b16 %v54
  %v178 = vunpack.c.l.b16 %v55
  %v179 = vunpack.c.l.b16 %v56
  %v180 = vunpack.c.l.b16 %v57
  %v181 = vunpack.c.l.b16 %v58
  %v182 = vunpack.c.l.b16 %v59
  %v183 = vunpack.c.l.b16 %v60
  %v184 = vunpack.c.l.b16 %v61
  %v185 = vunpack.c.l.b16 %v62
  %v186 = vunpack.c.l.b16 %v63
  %v187 = vunpack.c.l.b16 %v64
  %v188 = vpack.c.b16 %v139, %v138
  %v189 = vpack.c.b16 %v141, %v140
  %v190 = vpack.c.b16 %v143, %v142
  %v191 = vpack.c.b16 %v145, %v144
  %v192 = vpack.c.b16 %v147, %v146
  %v193 = vpack.c.b16 %v149, %v148
  %v194 = vpack.c.b16 %v151, %v150
  %v195 = vpack.c.b16 %v153, %v152
  %v196 = vpack.c.b16 %v155, %v154
  %v197 = vpack.c.b16 %v157, %v156
  %v198 = vpack.c.b16 %v159, %v158
  %v199 = vpack.c.b16 %v161, %v160
  %v200 = vpack.c.b16 %v163, %v162
  %v201 = vpack.c.b16 %v165, %v164
  %v202 = vpack.c.b16 %v167, %v166
  %v203 = vpack.c.b16 %v169, %v168
  %v204 = vpack.c.b16 %v171, %v170
  %v205 = vpack.c.b16 %v173, %v172
  %v206 = vpack.c.b16 %v175, %v174
  %v207 = vpack.c.b16 %v177, %v176
  %v208 = vpack.c.b16 %v179, %v178
  %v209 = vpack.c.b16 %v181, %v180
  %v210 = vpack.c.b16 %v183, %v182
  %v211 = vpack.c.b16 %v185, %v184
  %v212 = vpack.c.b16 %v187, %v186
  %v254 = vunpack.c.l.b16 %v65
  %v255 = vunpack.c.l.b16 %v66
  %v256 = vunpack.c.l.b16 %v67
  %v257 = vunpack.c.l.b16 %v68
  %v258 = vunpack.c.l.b16 %v69
  %v259 = vunpack.c.l.b16 %v70
  %v260 = vunpack.c.l.b16 %v71
  %v261 = vunpack.c.l.b16 %v72
  %v262 = vunpack.c.l.b16 %v73
  %v263 = vunpack.c.l.b16 %v74
  %v264 = vunpack.c.l.b16 %v75
  %v265 = vunpack.c.l.b16 %v76
  %v266 = vunpack.c.l.b16 %v77
  %v267 = vunpack.c.l.b16 %v78
  %v268 = vunpack.c.l.b16 %v79
  %v269 = vunpack.c.l.b16 %v80
  %v270 = vpack.c.b16 %v255, %v254
  %v271 = vpack.c.b16 %v257, %v256
  %v272 = vpack.c.b16 %v259, %v258
  %v273 = vpack.c.b16 %v261, %v260
  %v274 = vpack.c.b16 %v263, %v262
  %v275 = vpack.c.b16 %v265, %v264
  %v276 = vpack.c.b16 %v267, %v266
  %v277 = vpack.c.b16 %v269, %v268
  %286 = vmatprep.subr.bf16.mxu0 0
  %287 = vmatpush1.bf16.msra.mxu0 %v270
  %288 = vmatprep.subr.bf16.mxu0 0
  %289 = vmatpush1.bf16.msra.mxu0 %v271
  %290 = vmatprep.subr.bf16.mxu0 0
  %291 = vmatpush1.bf16.msra.mxu0 %v272
  %292 = vmatprep.subr.bf16.mxu0 0
  %293 = vmatpush1.bf16.msra.mxu0 %v273
  %294 = vmatprep.subr.bf16.mxu0 0
  %295 = vmatpush1.bf16.msra.mxu0 %v274
  %296 = vmatprep.subr.bf16.mxu0 0
  %297 = vmatpush1.bf16.msra.mxu0 %v275
  %298 = vmatprep.subr.bf16.mxu0 0
  %299 = vmatpush1.bf16.msra.mxu0 %v276
  %300 = vmatprep.subr.bf16.mxu0 0
  %301 = vmatpush1.bf16.msra.mxu0 %v277
  %302 = vmatprep.subr.bf16.mxu0 0
  %303 = vmatpush1.bf16.msra.mxu0 0
  %304 = vmatprep.subr.bf16.mxu0 0
  %305 = vmatpush1.bf16.msra.mxu0 0
  %306 = vmatprep.subr.bf16.mxu0 0
  %307 = vmatpush1.bf16.msra.mxu0 0
  %308 = vmatprep.subr.bf16.mxu0 0
  %309 = vmatpush1.bf16.msra.mxu0 0
  %310 = vmatprep.subr.bf16.mxu0 0
  %311 = vmatpush1.bf16.msra.mxu0 0
  %312 = vmatprep.subr.bf16.mxu0 0
  %313 = vmatpush1.bf16.msra.mxu0 0
  %314 = vmatprep.subr.bf16.mxu0 0
  %315 = vmatpush1.bf16.msra.mxu0 0
  %316 = vmatprep.subr.bf16.mxu0 0
  %317 = vmatpush1.bf16.msra.mxu0 0
  %318 = vmatprep.mubr.bf16.mxu0 0
  %319 = vmatmul.mubr.bf16.gmra.mrb[0].mxu0 %v188
  %v320 = vpop.f32.mrb[0].mxu0
  %v321 = vadd.f32 %v86, %v320
  %v322 = vpop.f32.mrb[0].mxu0
  %v323 = vpop.f32.mrb[0].mxu0
  %v324 = vadd.f32 %v86, %v323
  %v325 = vpop.f32.mrb[0].mxu0
  %326 = vmatprep.mubr.bf16.mxu0 0
  %327 = vmatmul.mubr.bf16.gmra.mrb[0].mxu0 %v189
  %v328 = vpop.f32.mrb[0].mxu0
  %v329 = vadd.f32 %v86, %v328
  %v330 = vpop.f32.mrb[0].mxu0
  %v331 = vpop.f32.mrb[0].mxu0
  %v332 = vadd.f32 %v86, %v331
  %v333 = vpop.f32.mrb[0].mxu0
  %334 = vmatprep.mubr.bf16.mxu0 0
  %335 = vmatmul.mubr.bf16.gmra.mrb[0].mxu0 %v190
  %v336 = vpop.f32.mrb[0].mxu0
  %v337 = vadd.f32 %v86, %v336
  %v338 = vpop.f32.mrb[0].mxu0
  %v339 = vpop.f32.mrb[0].mxu0
  %v340 = vadd.f32 %v86, %v339
  %v341 = vpop.f32.mrb[0].mxu0
  %342 = vmatprep.mubr.bf16.mxu0 0
  %343 = vmatmul.mubr.bf16.gmra.mrb[0].mxu0 %v191
  %v344 = vpop.f32.mrb[0].mxu0
  %v345 = vadd.f32 %v86, %v344
  %v346 = vpop.f32.mrb[0].mxu0
  %v347 = vpop.f32.mrb[0].mxu0
  %v348 = vadd.f32 %v86, %v347
  %v349 = vpop.f32.mrb[0].mxu0
  %350 = vmatprep.mubr.bf16.mxu0 0
  %351 = vmatmul.mubr.bf16.gmra.mrb[0].mxu0 %v192
  %v352 = vpop.f32.mrb[0].mxu0
  %v353 = vadd.f32 %v86, %v352
  %v354 = vpop.f32.mrb[0].mxu0
  %v355 = vpop.f32.mrb[0].mxu0
  %v356 = vadd.f32 %v86, %v355
  %v357 = vpop.f32.mrb[0].mxu0
  %358 = vmatprep.mubr.bf16.mxu0 0
  %359 = vmatmul.mubr.bf16.gmra.mrb[0].mxu0 %v193
  %v360 = vpop.f32.mrb[0].mxu0
  %v361 = vadd.f32 %v86, %v360
  %v362 = vpop.f32.mrb[0].mxu0
  %v363 = vpop.f32.mrb[0].mxu0
  %v364 = vadd.f32 %v86, %v363
  %v365 = vpop.f32.mrb[0].mxu0
  %366 = vmatprep.mubr.bf16.mxu0 0
  %367 = vmatmul.mubr.bf16.gmra.mrb[0].mxu0 %v194
  %v368 = vpop.f32.mrb[0].mxu0
  %v369 = vadd.f32 %v86, %v368
  %v370 = vpop.f32.mrb[0].mxu0
  %v371 = vpop.f32.mrb[0].mxu0
  %v372 = vadd.f32 %v86, %v371
  %v373 = vpop.f32.mrb[0].mxu0
  %374 = vmatprep.mubr.bf16.mxu0 0
  %375 = vmatmul.mubr.bf16.gmra.mrb[0].mxu0 %v195
  %v376 = vpop.f32.mrb[0].mxu0
  %v377 = vadd.f32 %v86, %v376
  %v378 = vpop.f32.mrb[0].mxu0
  %v379 = vpop.f32.mrb[0].mxu0
  %v380 = vadd.f32 %v86, %v379
  %v381 = vpop.f32.mrb[0].mxu0
  %382 = vmatprep.mubr.bf16.mxu0 0
  %383 = vmatmul.mubr.bf16.gmra.mrb[0].mxu0 %v196
  %v384 = vpop.f32.mrb[0].mxu0
  %v385 = vadd.f32 %v86, %v384
  %v386 = vpop.f32.mrb[0].mxu0
  %v387 = vpop.f32.mrb[0].mxu0
  %v388 = vadd.f32 %v86, %v387
  %v389 = vpop.f32.mrb[0].mxu0
  %390 = vmatprep.mubr.bf16.mxu0 0
  %391 = vmatmul.mubr.bf16.gmra.mrb[0].mxu0 %v197
  %v392 = vpop.f32.mrb[0].mxu0
  %v393 = vadd.f32 %v86, %v392
  %v394 = vpop.f32.mrb[0].mxu0
  %v395 = vpop.f32.mrb[0].mxu0
  %v396 = vadd.f32 %v86, %v395
  %v397 = vpop.f32.mrb[0].mxu0
  %398 = vmatprep.mubr.bf16.mxu0 0
  %399 = vmatmul.mubr.bf16.gmra.mrb[0].mxu0 %v198
  %v400 = vpop.f32.mrb[0].mxu0
  %v401 = vadd.f32 %v86, %v400
  %v402 = vpop.f32.mrb[0].mxu0
  %v403 = vpop.f32.mrb[0].mxu0
  %v404 = vadd.f32 %v86, %v403
  %v405 = vpop.f32.mrb[0].mxu0
  %406 = vmatprep.mubr.bf16.mxu0 0
  %407 = vmatmul.mubr.bf16.gmra.mrb[0].mxu0 %v199
  %v408 = vpop.f32.mrb[0].mxu0
  %v409 = vadd.f32 %v86, %v408
  %v410 = vpop.f32.mrb[0].mxu0
  %v411 = vpop.f32.mrb[0].mxu0
  %v412 = vadd.f32 %v86, %v411
  %v413 = vpop.f32.mrb[0].mxu0
  %414 = vmatprep.mubr.bf16.mxu0 0
  %415 = vmatmul.mubr.bf16.gmra.mrb[0].mxu0 %v200
  %v416 = vpop.f32.mrb[0].mxu0
  %v417 = vadd.f32 %v86, %v416
  %v418 = vpop.f32.mrb[0].mxu0
  %v419 = vpop.f32.mrb[0].mxu0
  %v420 = vadd.f32 %v86, %v419
  %v421 = vpop.f32.mrb[0].mxu0
  %422 = vmatprep.mubr.bf16.mxu0 0
  %423 = vmatmul.mubr.bf16.gmra.mrb[0].mxu0 %v201
  %v424 = vpop.f32.mrb[0].mxu0
  %v425 = vadd.f32 %v86, %v424
  %v426 = vpop.f32.mrb[0].mxu0
  %v427 = vpop.f32.mrb[0].mxu0
  %v428 = vadd.f32 %v86, %v427
  %v429 = vpop.f32.mrb[0].mxu0
  %430 = vmatprep.mubr.bf16.mxu0 0
  %431 = vmatmul.mubr.bf16.gmra.mrb[0].mxu0 %v202
  %v432 = vpop.f32.mrb[0].mxu0
  %v433 = vadd.f32 %v86, %v432
  %v434 = vpop.f32.mrb[0].mxu0
  %v435 = vpop.f32.mrb[0].mxu0
  %v436 = vadd.f32 %v86, %v435
  %v437 = vpop.f32.mrb[0].mxu0
  %438 = vmatprep.mubr.bf16.mxu0 0
  %439 = vmatmul.mubr.bf16.gmra.mrb[0].mxu0 %v203
  %v440 = vpop.f32.mrb[0].mxu0
  %v441 = vadd.f32 %v86, %v440
  %v442 = vpop.f32.mrb[0].mxu0
  %v443 = vpop.f32.mrb[0].mxu0
  %v444 = vadd.f32 %v86, %v443
  %v445 = vpop.f32.mrb[0].mxu0
  %446 = vmatprep.mubr.bf16.mxu0 0
  %447 = vmatmul.mubr.bf16.gmra.mrb[0].mxu0 %v204
  %v448 = vpop.f32.mrb[0].mxu0
  %v449 = vadd.f32 %v86, %v448
  %v450 = vpop.f32.mrb[0].mxu0
  %v451 = vpop.f32.mrb[0].mxu0
  %v452 = vadd.f32 %v86, %v451
  %v453 = vpop.f32.mrb[0].mxu0
  %454 = vmatprep.mubr.bf16.mxu0 0
  %455 = vmatmul.mubr.bf16.gmra.mrb[0].mxu0 %v205
  %v456 = vpop.f32.mrb[0].mxu0
  %v457 = vadd.f32 %v86, %v456
  %v458 = vpop.f32.mrb[0].mxu0
  %v459 = vpop.f32.mrb[0].mxu0
  %v460 = vadd.f32 %v86, %v459
  %v461 = vpop.f32.mrb[0].mxu0
  %462 = vmatprep.mubr.bf16.mxu0 0
  %463 = vmatmul.mubr.bf16.gmra.mrb[0].mxu0 %v206
  %v464 = vpop.f32.mrb[0].mxu0
  %v465 = vadd.f32 %v86, %v464
  %v466 = vpop.f32.mrb[0].mxu0
  %v467 = vpop.f32.mrb[0].mxu0
  %v468 = vadd.f32 %v86, %v467
  %v469 = vpop.f32.mrb[0].mxu0
  %470 = vmatprep.mubr.bf16.mxu0 0
  %471 = vmatmul.mubr.bf16.gmra.mrb[0].mxu0 %v207
  %v472 = vpop.f32.mrb[0].mxu0
  %v473 = vadd.f32 %v86, %v472
  %v474 = vpop.f32.mrb[0].mxu0
  %v475 = vpop.f32.mrb[0].mxu0
  %v476 = vadd.f32 %v86, %v475
  %v477 = vpop.f32.mrb[0].mxu0
  %478 = vmatprep.mubr.bf16.mxu0 0
  %479 = vmatmul.mubr.bf16.gmra.mrb[0].mxu0 %v208
  %v480 = vpop.f32.mrb[0].mxu0
  %v481 = vadd.f32 %v86, %v480
  %v482 = vpop.f32.mrb[0].mxu0
  %v483 = vpop.f32.mrb[0].mxu0
  %v484 = vadd.f32 %v86, %v483
  %v485 = vpop.f32.mrb[0].mxu0
  %486 = vmatprep.mubr.bf16.mxu0 0
  %487 = vmatmul.mubr.bf16.gmra.mrb[0].mxu0 %v209
  %v488 = vpop.f32.mrb[0].mxu0
  %v489 = vadd.f32 %v86, %v488
  %v490 = vpop.f32.mrb[0].mxu0
  %v491 = vpop.f32.mrb[0].mxu0
  %v492 = vadd.f32 %v86, %v491
  %v493 = vpop.f32.mrb[0].mxu0
  %494 = vmatprep.mubr.bf16.mxu0 0
  %495 = vmatmul.mubr.bf16.gmra.mrb[0].mxu0 %v210
  %v496 = vpop.f32.mrb[0].mxu0
  %v497 = vadd.f32 %v86, %v496
  %v498 = vpop.f32.mrb[0].mxu0
  %v499 = vpop.f32.mrb[0].mxu0
  %v500 = vadd.f32 %v86, %v499
  %v501 = vpop.f32.mrb[0].mxu0
  %502 = vmatprep.mubr.bf16.mxu0 0
  %503 = vmatmul.mubr.bf16.gmra.mrb[0].mxu0 %v211
  %v504 = vpop.f32.mrb[0].mxu0
  %v505 = vadd.f32 %v86, %v504
  %v506 = vpop.f32.mrb[0].mxu0
  %v507 = vpop.f32.mrb[0].mxu0
  %v508 = vadd.f32 %v86, %v507
  %v509 = vpop.f32.mrb[0].mxu0
  %510 = vmatprep.mubr.bf16.mxu0 0
  %511 = vmatmul.mubr.bf16.gmra.mrb[0].mxu0 %v212
  %v512 = vpop.f32.mrb[0].mxu0
  %v513 = vadd.f32 %v86, %v512
  %v514 = vpop.f32.mrb[0].mxu0
  %v515 = vpop.f32.mrb[0].mxu0
  %v516 = vadd.f32 %v86, %v515
  %v517 = vpop.f32.mrb[0].mxu0
  %518 = vdwg.mxu0
  %v519 = vmax.f32 %v321, 0.0
  %v520 = vmax.f32 %v324, 0.0
  %v521 = vmax.f32 %v329, 0.0
  %v522 = vmax.f32 %v332, 0.0
  %v523 = vmax.f32 %v337, 0.0
  %v524 = vmax.f32 %v340, 0.0
  %v525 = vmax.f32 %v345, 0.0
  %v526 = vmax.f32 %v348, 0.0
  %v527 = vmax.f32 %v353, 0.0
  %v528 = vmax.f32 %v356, 0.0
  %v529 = vmax.f32 %v361, 0.0
  %v530 = vmax.f32 %v364, 0.0
  %v531 = vmax.f32 %v369, 0.0
  %v532 = vmax.f32 %v372, 0.0
  %v533 = vmax.f32 %v377, 0.0
  %v534 = vmax.f32 %v380, 0.0
  %v535 = vmax.f32 %v385, 0.0
  %v536 = vmax.f32 %v388, 0.0
  %v537 = vmax.f32 %v393, 0.0
  %v538 = vmax.f32 %v396, 0.0
  %v539 = vmax.f32 %v401, 0.0
  %v540 = vmax.f32 %v404, 0.0
  %v541 = vmax.f32 %v409, 0.0
  %v542 = vmax.f32 %v412, 0.0
  %v543 = vmax.f32 %v417, 0.0
  %v544 = vmax.f32 %v420, 0.0
  %v545 = vmax.f32 %v425, 0.0
  %v546 = vmax.f32 %v428, 0.0
  %v547 = vmax.f32 %v433, 0.0
  %v548 = vmax.f32 %v436, 0.0
  %v549 = vmax.f32 %v441, 0.0
  %v550 = vmax.f32 %v444, 0.0
  %v551 = vmax.f32 %v449, 0.0
  %v552 = vmax.f32 %v452, 0.0
  %v553 = vmax.f32 %v457, 0.0
  %v554 = vmax.f32 %v460, 0.0
  %v555 = vmax.f32 %v465, 0.0
  %v556 = vmax.f32 %v468, 0.0
  %v557 = vmax.f32 %v473, 0.0
  %v558 = vmax.f32 %v476, 0.0
  %v559 = vmax.f32 %v481, 0.0
  %v560 = vmax.f32 %v484, 0.0
  %v561 = vmax.f32 %v489, 0.0
  %v562 = vmax.f32 %v492, 0.0
  %v563 = vmax.f32 %v497, 0.0
  %v564 = vmax.f32 %v500, 0.0
  %v565 = vmax.f32 %v505, 0.0
  %v566 = vmax.f32 %v508, 0.0
  %v567 = vmax.f32 %v513, 0.0
  %v568 = vmax.f32 %v516, 0.0
  %v569 = vpack.c.bf16 %v520, %v519
  %v570 = vpack.c.bf16 %v522, %v521
  %v571 = vpack.c.bf16 %v524, %v523
  %v572 = vpack.c.bf16 %v526, %v525
  %v573 = vpack.c.bf16 %v528, %v527
  %v574 = vpack.c.bf16 %v530, %v529
  %v575 = vpack.c.bf16 %v532, %v531
  %v576 = vpack.c.bf16 %v534, %v533
  %v577 = vpack.c.bf16 %v536, %v535
  %v578 = vpack.c.bf16 %v538, %v537
  %v579 = vpack.c.bf16 %v540, %v539
  %v580 = vpack.c.bf16 %v542, %v541
  %v581 = vpack.c.bf16 %v544, %v543
  %v582 = vpack.c.bf16 %v546, %v545
  %v583 = vpack.c.bf16 %v548, %v547
  %v584 = vpack.c.bf16 %v550, %v549
  %v585 = vpack.c.bf16 %v552, %v551
  %v586 = vpack.c.bf16 %v554, %v553
  %v587 = vpack.c.bf16 %v556, %v555
  %v588 = vpack.c.bf16 %v558, %v557
  %v589 = vpack.c.bf16 %v560, %v559
  %v590 = vpack.c.bf16 %v562, %v561
  %v591 = vpack.c.bf16 %v564, %v563
  %v592 = vpack.c.bf16 %v566, %v565
  %v593 = vpack.c.bf16 %v568, %v567
  %v619 = vunpack.c.l.b16 %v569
  %v620 = vunpack.c.h.b16 %v569
  %v621 = vunpack.c.l.b16 %v570
  %v622 = vunpack.c.h.b16 %v570
  %v623 = vunpack.c.l.b16 %v571
  %v624 = vunpack.c.h.b16 %v571
  %v625 = vunpack.c.l.b16 %v572
  %v626 = vunpack.c.h.b16 %v572
  %v627 = vunpack.c.l.b16 %v573
  %v628 = vunpack.c.h.b16 %v573
  %v629 = vunpack.c.l.b16 %v574
  %v630 = vunpack.c.h.b16 %v574
  %v631 = vunpack.c.l.b16 %v575
  %v632 = vunpack.c.h.b16 %v575
  %v633 = vunpack.c.l.b16 %v576
  %v634 = vunpack.c.h.b16 %v576
  %v635 = vunpack.c.l.b16 %v577
  %v636 = vunpack.c.h.b16 %v577
  %v637 = vunpack.c.l.b16 %v578
  %v638 = vunpack.c.h.b16 %v578
  %v639 = vunpack.c.l.b16 %v579
  %v640 = vunpack.c.h.b16 %v579
  %v641 = vunpack.c.l.b16 %v580
  %v642 = vunpack.c.h.b16 %v580
  %v643 = vunpack.c.l.b16 %v581
  %v644 = vunpack.c.h.b16 %v581
  %v645 = vunpack.c.l.b16 %v582
  %v646 = vunpack.c.h.b16 %v582
  %v647 = vunpack.c.l.b16 %v583
  %v648 = vunpack.c.h.b16 %v583
  %v649 = vunpack.c.l.b16 %v584
  %v650 = vunpack.c.h.b16 %v584
  %v651 = vunpack.c.l.b16 %v585
  %v652 = vunpack.c.h.b16 %v585
  %v653 = vunpack.c.l.b16 %v586
  %v654 = vunpack.c.h.b16 %v586
  %v655 = vunpack.c.l.b16 %v587
  %v656 = vunpack.c.h.b16 %v587
  %v657 = vunpack.c.l.b16 %v588
  %v658 = vunpack.c.h.b16 %v588
  %v659 = vunpack.c.l.b16 %v589
  %v660 = vunpack.c.h.b16 %v589
  %v661 = vunpack.c.l.b16 %v590
  %v662 = vunpack.c.h.b16 %v590
  %v663 = vunpack.c.l.b16 %v591
  %v664 = vunpack.c.h.b16 %v591
  %v665 = vunpack.c.l.b16 %v592
  %v666 = vunpack.c.h.b16 %v592
  %v667 = vunpack.c.l.b16 %v593
  %v668 = vunpack.c.h.b16 %v593
  %v669 = vpack.c.b16 %v619, %v619
  %v670 = vpack.c.b16 %v620, %v620
  %v671 = vpack.c.b16 %v621, %v621
  %v672 = vpack.c.b16 %v622, %v622
  %v673 = vpack.c.b16 %v623, %v623
  %v674 = vpack.c.b16 %v624, %v624
  %v675 = vpack.c.b16 %v625, %v625
  %v676 = vpack.c.b16 %v626, %v626
  %v677 = vpack.c.b16 %v627, %v627
  %v678 = vpack.c.b16 %v628, %v628
  %v679 = vpack.c.b16 %v629, %v629
  %v680 = vpack.c.b16 %v630, %v630
  %v681 = vpack.c.b16 %v631, %v631
  %v682 = vpack.c.b16 %v632, %v632
  %v683 = vpack.c.b16 %v633, %v633
  %v684 = vpack.c.b16 %v634, %v634
  %v685 = vpack.c.b16 %v635, %v635
  %v686 = vpack.c.b16 %v636, %v636
  %v687 = vpack.c.b16 %v637, %v637
  %v688 = vpack.c.b16 %v638, %v638
  %v689 = vpack.c.b16 %v639, %v639
  %v690 = vpack.c.b16 %v640, %v640
  %v691 = vpack.c.b16 %v641, %v641
  %v692 = vpack.c.b16 %v642, %v642
  %v693 = vpack.c.b16 %v643, %v643
  %v694 = vpack.c.b16 %v644, %v644
  %v695 = vpack.c.b16 %v645, %v645
  %v696 = vpack.c.b16 %v646, %v646
  %v697 = vpack.c.b16 %v647, %v647
  %v698 = vpack.c.b16 %v648, %v648
  %v699 = vpack.c.b16 %v649, %v649
  %v700 = vpack.c.b16 %v650, %v650
  %v701 = vpack.c.b16 %v651, %v651
  %v702 = vpack.c.b16 %v652, %v652
  %v703 = vpack.c.b16 %v653, %v653
  %v704 = vpack.c.b16 %v654, %v654
  %v705 = vpack.c.b16 %v655, %v655
  %v706 = vpack.c.b16 %v656, %v656
  %v707 = vpack.c.b16 %v657, %v657
  %v708 = vpack.c.b16 %v658, %v658
  %v709 = vpack.c.b16 %v659, %v659
  %v710 = vpack.c.b16 %v660, %v660
  %v711 = vpack.c.b16 %v661, %v661
  %v712 = vpack.c.b16 %v662, %v662
  %v713 = vpack.c.b16 %v663, %v663
  %v714 = vpack.c.b16 %v664, %v664
  %v715 = vpack.c.b16 %v665, %v665
  %v716 = vpack.c.b16 %v666, %v666
  %v717 = vpack.c.b16 %v667, %v667
  %v718 = vpack.c.b16 %v668, %v668
  %769 = vst [vmem:[%s3] sm:$0xf] %v669
  %770 = vst [vmem:[%s3 + $0x4] sm:$0xf] %v670
  %771 = vst [vmem:[%s3 + $0x8] sm:$0xf] %v671
  %772 = vst [vmem:[%s3 + $0xc] sm:$0xf] %v672
  %773 = vst [vmem:[%s3 + $0x10] sm:$0xf] %v673
  %774 = vst [vmem:[%s3 + $0x14] sm:$0xf] %v674
  %775 = vst [vmem:[%s3 + $0x18] sm:$0xf] %v675
  %776 = vst [vmem:[%s3 + $0x1c] sm:$0xf] %v676
  %777 = vst [vmem:[%s3 + $0x20] sm:$0xf] %v677
  %778 = vst [vmem:[%s3 + $0x24] sm:$0xf] %v678
  %779 = vst [vmem:[%s3 + $0x28] sm:$0xf] %v679
  %780 = vst [vmem:[%s3 + $0x2c] sm:$0xf] %v680
  %781 = vst [vmem:[%s3 + $0x30] sm:$0xf] %v681
  %782 = vst [vmem:[%s3 + $0x34] sm:$0xf] %v682
  %783 = vst [vmem:[%s3 + $0x38] sm:$0xf] %v683
  %784 = vst [vmem:[%s3 + $0x3c] sm:$0xf] %v684
  %785 = vst [vmem:[%s3 + $0x40] sm:$0xf] %v685
  %786 = vst [vmem:[%s3 + $0x44] sm:$0xf] %v686
  %787 = vst [vmem:[%s3 + $0x48] sm:$0xf] %v687
  %788 = vst [vmem:[%s3 + $0x4c] sm:$0xf] %v688
  %789 = vst [vmem:[%s3 + $0x50] sm:$0xf] %v689
  %790 = vst [vmem:[%s3 + $0x54] sm:$0xf] %v690
  %791 = vst [vmem:[%s3 + $0x58] sm:$0xf] %v691
  %792 = vst [vmem:[%s3 + $0x5c] sm:$0xf] %v692
  %793 = vst [vmem:[%s3 + $0x60] sm:$0xf] %v693
  %794 = vst [vmem:[%s3 + $0x64] sm:$0xf] %v694
  %795 = vst [vmem:[%s3 + $0x68] sm:$0xf] %v695
  %796 = vst [vmem:[%s3 + $0x6c] sm:$0xf] %v696
  %797 = vst [vmem:[%s3 + $0x70] sm:$0xf] %v697
  %798 = vst [vmem:[%s3 + $0x74] sm:$0xf] %v698
  %799 = vst [vmem:[%s3 + $0x78] sm:$0xf] %v699
  %800 = vst [vmem:[%s3 + $0x7c] sm:$0xf] %v700
  %801 = vst [vmem:[%s3 + $0x80] sm:$0xf] %v701
  %802 = vst [vmem:[%s3 + $0x84] sm:$0xf] %v702
  %803 = vst [vmem:[%s3 + $0x88] sm:$0xf] %v703
  %804 = vst [vmem:[%s3 + $0x8c] sm:$0xf] %v704
  %805 = vst [vmem:[%s3 + $0x90] sm:$0xf] %v705
  %806 = vst [vmem:[%s3 + $0x94] sm:$0xf] %v706
  %807 = vst [vmem:[%s3 + $0x98] sm:$0xf] %v707
  %808 = vst [vmem:[%s3 + $0x9c] sm:$0xf] %v708
  %809 = vst [vmem:[%s3 + $0xa0] sm:$0xf] %v709
  %810 = vst [vmem:[%s3 + $0xa4] sm:$0xf] %v710
  %811 = vst [vmem:[%s3 + $0xa8] sm:$0xf] %v711
  %812 = vst [vmem:[%s3 + $0xac] sm:$0xf] %v712
  %813 = vst [vmem:[%s3 + $0xb0] sm:$0xf] %v713
  %814 = vst [vmem:[%s3 + $0xb4] sm:$0xf] %v714
  %815 = vst [vmem:[%s3 + $0xb8] sm:$0xf] %v715
  %816 = vst [vmem:[%s3 + $0xbc] sm:$0xf] %v716
  %817 = vst [vmem:[%s3 + $0xc0] sm:$0xf] %v717
  %818 = vst [vmem:[%s3 + $0xc4] sm:$0xf] %v718
  // Predicated region
  $region14: #{mnist_classifier_forward.3} parent=0 // pred_check
    _
  $region15: #{mnist_classifier_forward.3} parent=0 // pred_check_branch
    %820 = sbr.rel (0) target = $region17
  $region16: #{mnist_classifier_forward.3} parent=0 // pred_region
    _
  $region17: #{mnist_classifier_forward.3} parent=0 // pred_fallthru
    _
  // Predicated region
  $region18: #{mnist_classifier_forward.3} parent=0 // pred_check
    _
  $region19: #{mnist_classifier_forward.3} parent=0 // pred_check_branch
    %822 = sbr.rel (0) target = $region21
  $region20: #{mnist_classifier_forward.3} parent=0 // pred_region
    _
  $region21: #{mnist_classifier_forward.3} parent=0 // pred_fallthru
    _

// kernel: mnist_classifier_forward.4
$region0: #{mnist_classifier_forward.4}
  #allocation0 [shape = 'u32[]', space=smem, size = 0x4, offset = 0x4, fixed_abs, tag = 'smem constant byte address 0x4 - core index']
  #allocation1 [shape = 'u32[144,128]{1,0:T(1,128)}', space=vmem, size = 0x12000, scoped, tag = 'internal scratch']
  %s0 = inlined_call_operand.vmem [shape: bf16[112,1152], index: 0, kind: input, shape index: {}]
  %s1 = inlined_call_operand.vmem [shape: bf16[1152,128], index: 1, kind: input, shape index: {}]
  %s2 = inlined_call_operand.vmem [shape: f32[1,128], index: 2, kind: input, shape index: {}]
  %s3 = inlined_call_operand.vmem [shape: bf16[112,128], index: 3, kind: output, shape index: {}]
  %s4 = sld [smem:[#allocation0]]
  $region22: #{mnist_classifier_forward.4} parent=0
    _
  %s6 = ssub.s32 1, %s4
  %s7 = scalar_select 0, %s6, %s4
  // Predicated region
  $region2: #{mnist_classifier_forward.4} parent=0 // pred_check
    _
  $region3: #{mnist_classifier_forward.4} parent=0 // pred_check_branch
    %9 = sbr.rel (0) target = $region5
  $region4: #{mnist_classifier_forward.4} parent=0 // pred_region
    _
  $region5: #{mnist_classifier_forward.4} parent=0 // pred_fallthru
    _
  // Predicated region
  $region6: #{mnist_classifier_forward.4} parent=0 // pred_check
    _
  $region7: #{mnist_classifier_forward.4} parent=0 // pred_check_branch
    %11 = sbr.rel (0) target = $region9
  $region8: #{mnist_classifier_forward.4} parent=0 // pred_region
    _
  $region9: #{mnist_classifier_forward.4} parent=0 // pred_fallthru
    _
  // Predicated region
  $region10: #{mnist_classifier_forward.4} parent=0 // pred_check
    _
  $region11: #{mnist_classifier_forward.4} parent=0 // pred_check_branch
    %13 = sbr.rel (0) target = $region13
  $region12: #{mnist_classifier_forward.4} parent=0 // pred_region
    _
  $region13: #{mnist_classifier_forward.4} parent=0 // pred_fallthru
    _
  %v15 = vld [vmem:[%s0] sm:$0xff]
  %v16 = vld [vmem:[%s0 + $0x8] sm:$0xff]
  %v17 = vld [vmem:[%s0 + $0x10] sm:$0xff]
  %v18 = vld [vmem:[%s0 + $0x18] sm:$0xff]
  %v19 = vld [vmem:[%s0 + $0x20] sm:$0xf]
  %v20 = vld [vmem:[%s0 + $0x24] sm:$0xff]
  %v21 = vld [vmem:[%s0 + $0x2c] sm:$0xff]
  %v22 = vld [vmem:[%s0 + $0x34] sm:$0xff]
  %v23 = vld [vmem:[%s0 + $0x3c] sm:$0xff]
  %v24 = vld [vmem:[%s0 + $0x44] sm:$0xf]
  %v25 = vld [vmem:[%s0 + $0x48] sm:$0xff]
  %v26 = vld [vmem:[%s0 + $0x50] sm:$0xff]
  %v27 = vld [vmem:[%s0 + $0x58] sm:$0xff]
  %v28 = vld [vmem:[%s0 + $0x60] sm:$0xff]
  %v29 = vld [vmem:[%s0 + $0x68] sm:$0xf]
  %v30 = vld [vmem:[%s0 + $0x6c] sm:$0xff]
  %v31 = vld [vmem:[%s0 + $0x74] sm:$0xff]
  %v32 = vld [vmem:[%s0 + $0x7c] sm:$0xff]
  %v33 = vld [vmem:[%s0 + $0x84] sm:$0xff]
  %v34 = vld [vmem:[%s0 + $0x8c] sm:$0xf]
  %v35 = vld [vmem:[%s0 + $0x90] sm:$0xff]
  %v36 = vld [vmem:[%s0 + $0x98] sm:$0xff]
  %v37 = vld [vmem:[%s0 + $0xa0] sm:$0xff]
  %v38 = vld [vmem:[%s0 + $0xa8] sm:$0xff]
  %v39 = vld [vmem:[%s0 + $0xb0] sm:$0xf]
  %v40 = vld [vmem:[%s0 + $0xb4] sm:$0xff]
  %v41 = vld [vmem:[%s0 + $0xbc] sm:$0xff]
  %v42 = vld [vmem:[%s0 + $0xc4] sm:$0xff]
  %v43 = vld [vmem:[%s0 + $0xcc] sm:$0xff]
  %v44 = vld [vmem:[%s0 + $0xd4] sm:$0xf]
  %v45 = vld [vmem:[%s0 + $0xd8] sm:$0xff]
  %v46 = vld [vmem:[%s0 + $0xe0] sm:$0xff]
  %v47 = vld [vmem:[%s0 + $0xe8] sm:$0xff]
  %v48 = vld [vmem:[%s0 + $0xf0] sm:$0xff]
  %v49 = vld [vmem:[%s0 + $0xf8] sm:$0xf]
  %v50 = vld [vmem:[%s0 + $0xfc] sm:$0xff]
  %v51 = vld [vmem:[%s0 + $0x104] sm:$0xff]
  %v52 = vld [vmem:[%s0 + $0x10c] sm:$0xff]
  %v53 = vld [vmem:[%s0 + $0x114] sm:$0xff]
  %v54 = vld [vmem:[%s0 + $0x11c] sm:$0xf]
  %v55 = vld [vmem:[%s0 + $0x120] sm:$0xff]
  %v56 = vld [vmem:[%s0 + $0x128] sm:$0xff]
  %v57 = vld [vmem:[%s0 + $0x130] sm:$0xff]
  %v58 = vld [vmem:[%s0 + $0x138] sm:$0xff]
  %v59 = vld [vmem:[%s0 + $0x140] sm:$0xf]
  %v60 = vld [vmem:[%s0 + $0x144] sm:$0xff]
  %v61 = vld [vmem:[%s0 + $0x14c] sm:$0xff]
  %v62 = vld [vmem:[%s0 + $0x154] sm:$0xff]
  %v63 = vld [vmem:[%s0 + $0x15c] sm:$0xff]
  %v64 = vld [vmem:[%s0 + $0x164] sm:$0xf]
  %v65 = vld [vmem:[%s0 + $0x168] sm:$0xff]
  %v66 = vld [vmem:[%s0 + $0x170] sm:$0xff]
  %v67 = vld [vmem:[%s0 + $0x178] sm:$0xff]
  %v68 = vld [vmem:[%s0 + $0x180] sm:$0xff]
  %v69 = vld [vmem:[%s0 + $0x188] sm:$0xf]
  %v70 = vld [vmem:[%s0 + $0x18c] sm:$0xff]
  %v71 = vld [vmem:[%s0 + $0x194] sm:$0xff]
  %v72 = vld [vmem:[%s0 + $0x19c] sm:$0xff]
  %v73 = vld [vmem:[%s0 + $0x1a4] sm:$0xff]
  %v74 = vld [vmem:[%s0 + $0x1ac] sm:$0xf]
  %v75 = vld [vmem:[%s0 + $0x1b0] sm:$0xff]
  %v76 = vld [vmem:[%s0 + $0x1b8] sm:$0xff]
  %v77 = vld [vmem:[%s0 + $0x1c0] sm:$0xff]
  %v78 = vld [vmem:[%s0 + $0x1c8] sm:$0xff]
  %v79 = vld [vmem:[%s0 + $0x1d0] sm:$0xf]
  %v80 = vld [vmem:[%s0 + $0x1d4] sm:$0xff]
  %v81 = vld [vmem:[%s0 + $0x1dc] sm:$0xff]
  %v82 = vld [vmem:[%s0 + $0x1e4] sm:$0xff]
  %v83 = vld [vmem:[%s0 + $0x1ec] sm:$0xff]
  %v84 = vld [vmem:[%s0 + $0x1f4] sm:$0xf]
  %v85 = vld [vmem:[%s1] sm:$0xf]
  %v86 = vld [vmem:[%s1 + $0x4] sm:$0xf]
  %v87 = vld [vmem:[%s1 + $0x8] sm:$0xf]
  %v88 = vld [vmem:[%s1 + $0xc] sm:$0xf]
  %v89 = vld [vmem:[%s1 + $0x10] sm:$0xf]
  %v90 = vld [vmem:[%s1 + $0x14] sm:$0xf]
  %v91 = vld [vmem:[%s1 + $0x18] sm:$0xf]
  %v92 = vld [vmem:[%s1 + $0x1c] sm:$0xf]
  %v93 = vld [vmem:[%s1 + $0x20] sm:$0xf]
  %v94 = vld [vmem:[%s1 + $0x24] sm:$0xf]
  %v95 = vld [vmem:[%s1 + $0x28] sm:$0xf]
  %v96 = vld [vmem:[%s1 + $0x2c] sm:$0xf]
  %v97 = vld [vmem:[%s1 + $0x30] sm:$0xf]
  %v98 = vld [vmem:[%s1 + $0x34] sm:$0xf]
  %v99 = vld [vmem:[%s1 + $0x38] sm:$0xf]
  %v100 = vld [vmem:[%s1 + $0x3c] sm:$0xf]
  %v101 = vld [vmem:[%s1 + $0x40] sm:$0xf]
  %v102 = vld [vmem:[%s1 + $0x44] sm:$0xf]
  %v103 = vld [vmem:[%s1 + $0x48] sm:$0xf]
  %v104 = vld [vmem:[%s1 + $0x4c] sm:$0xf]
  %v105 = vld [vmem:[%s1 + $0x50] sm:$0xf]
  %v106 = vld [vmem:[%s1 + $0x54] sm:$0xf]
  %v107 = vld [vmem:[%s1 + $0x58] sm:$0xf]
  %v108 = vld [vmem:[%s1 + $0x5c] sm:$0xf]
  %v109 = vld [vmem:[%s1 + $0x60] sm:$0xf]
  %v110 = vld [vmem:[%s1 + $0x64] sm:$0xf]
  %v111 = vld [vmem:[%s1 + $0x68] sm:$0xf]
  %v112 = vld [vmem:[%s1 + $0x6c] sm:$0xf]
  %v113 = vld [vmem:[%s1 + $0x70] sm:$0xf]
  %v114 = vld [vmem:[%s1 + $0x74] sm:$0xf]
  %v115 = vld [vmem:[%s1 + $0x78] sm:$0xf]
  %v116 = vld [vmem:[%s1 + $0x7c] sm:$0xf]
  %v117 = vld [vmem:[%s1 + $0x80] sm:$0xf]
  %v118 = vld [vmem:[%s1 + $0x84] sm:$0xf]
  %v119 = vld [vmem:[%s1 + $0x88] sm:$0xf]
  %v120 = vld [vmem:[%s1 + $0x8c] sm:$0xf]
  %v121 = vld [vmem:[%s1 + $0x90] sm:$0xf]
  %v122 = vld [vmem:[%s1 + $0x94] sm:$0xf]
  %v123 = vld [vmem:[%s1 + $0x98] sm:$0xf]
  %v124 = vld [vmem:[%s1 + $0x9c] sm:$0xf]
  %v125 = vld [vmem:[%s1 + $0xa0] sm:$0xf]
  %v126 = vld [vmem:[%s1 + $0xa4] sm:$0xf]
  %v127 = vld [vmem:[%s1 + $0xa8] sm:$0xf]
  %v128 = vld [vmem:[%s1 + $0xac] sm:$0xf]
  %v129 = vld [vmem:[%s1 + $0xb0] sm:$0xf]
  %v130 = vld [vmem:[%s1 + $0xb4] sm:$0xf]
  %v131 = vld [vmem:[%s1 + $0xb8] sm:$0xf]
  %v132 = vld [vmem:[%s1 + $0xbc] sm:$0xf]
  %v133 = vld [vmem:[%s1 + $0xc0] sm:$0xf]
  %v134 = vld [vmem:[%s1 + $0xc4] sm:$0xf]
  %v135 = vld [vmem:[%s1 + $0xc8] sm:$0xf]
  %v136 = vld [vmem:[%s1 + $0xcc] sm:$0xf]
  %v137 = vld [vmem:[%s1 + $0xd0] sm:$0xf]
  %v138 = vld [vmem:[%s1 + $0xd4] sm:$0xf]
  %v139 = vld [vmem:[%s1 + $0xd8] sm:$0xf]
  %v140 = vld [vmem:[%s1 + $0xdc] sm:$0xf]
  %v141 = vld [vmem:[%s1 + $0xe0] sm:$0xf]
  %v142 = vld [vmem:[%s1 + $0xe4] sm:$0xf]
  %v143 = vld [vmem:[%s1 + $0xe8] sm:$0xf]
  %v144 = vld [vmem:[%s1 + $0xec] sm:$0xf]
  %v145 = vld [vmem:[%s1 + $0xf0] sm:$0xf]
  %v146 = vld [vmem:[%s1 + $0xf4] sm:$0xf]
  %v147 = vld [vmem:[%s1 + $0xf8] sm:$0xf]
  %v148 = vld [vmem:[%s1 + $0xfc] sm:$0xf]
  %v149 = vld [vmem:[%s1 + $0x100] sm:$0xf]
  %v150 = vld [vmem:[%s1 + $0x104] sm:$0xf]
  %v151 = vld [vmem:[%s1 + $0x108] sm:$0xf]
  %v152 = vld [vmem:[%s1 + $0x10c] sm:$0xf]
  %v153 = vld [vmem:[%s1 + $0x110] sm:$0xf]
  %v154 = vld [vmem:[%s1 + $0x114] sm:$0xf]
  %v155 = vld [vmem:[%s1 + $0x118] sm:$0xf]
  %v156 = vld [vmem:[%s1 + $0x11c] sm:$0xf]
  %v157 = vld [vmem:[%s1 + $0x120] sm:$0xf]
  %v158 = vld [vmem:[%s1 + $0x124] sm:$0xf]
  %v159 = vld [vmem:[%s1 + $0x128] sm:$0xf]
  %v160 = vld [vmem:[%s1 + $0x12c] sm:$0xf]
  %v161 = vld [vmem:[%s1 + $0x130] sm:$0xf]
  %v162 = vld [vmem:[%s1 + $0x134] sm:$0xf]
  %v163 = vld [vmem:[%s1 + $0x138] sm:$0xf]
  %v164 = vld [vmem:[%s1 + $0x13c] sm:$0xf]
  %v165 = vld [vmem:[%s1 + $0x140] sm:$0xf]
  %v166 = vld [vmem:[%s1 + $0x144] sm:$0xf]
  %v167 = vld [vmem:[%s1 + $0x148] sm:$0xf]
  %v168 = vld [vmem:[%s1 + $0x14c] sm:$0xf]
  %v169 = vld [vmem:[%s1 + $0x150] sm:$0xf]
  %v170 = vld [vmem:[%s1 + $0x154] sm:$0xf]
  %v171 = vld [vmem:[%s1 + $0x158] sm:$0xf]
  %v172 = vld [vmem:[%s1 + $0x15c] sm:$0xf]
  %v173 = vld [vmem:[%s1 + $0x160] sm:$0xf]
  %v174 = vld [vmem:[%s1 + $0x164] sm:$0xf]
  %v175 = vld [vmem:[%s1 + $0x168] sm:$0xf]
  %v176 = vld [vmem:[%s1 + $0x16c] sm:$0xf]
  %v177 = vld [vmem:[%s1 + $0x170] sm:$0xf]
  %v178 = vld [vmem:[%s1 + $0x174] sm:$0xf]
  %v179 = vld [vmem:[%s1 + $0x178] sm:$0xf]
  %v180 = vld [vmem:[%s1 + $0x17c] sm:$0xf]
  %v181 = vld [vmem:[%s1 + $0x180] sm:$0xf]
  %v182 = vld [vmem:[%s1 + $0x184] sm:$0xf]
  %v183 = vld [vmem:[%s1 + $0x188] sm:$0xf]
  %v184 = vld [vmem:[%s1 + $0x18c] sm:$0xf]
  %v185 = vld [vmem:[%s1 + $0x190] sm:$0xf]
  %v186 = vld [vmem:[%s1 + $0x194] sm:$0xf]
  %v187 = vld [vmem:[%s1 + $0x198] sm:$0xf]
  %v188 = vld [vmem:[%s1 + $0x19c] sm:$0xf]
  %v189 = vld [vmem:[%s1 + $0x1a0] sm:$0xf]
  %v190 = vld [vmem:[%s1 + $0x1a4] sm:$0xf]
  %v191 = vld [vmem:[%s1 + $0x1a8] sm:$0xf]
  %v192 = vld [vmem:[%s1 + $0x1ac] sm:$0xf]
  %v193 = vld [vmem:[%s1 + $0x1b0] sm:$0xf]
  %v194 = vld [vmem:[%s1 + $0x1b4] sm:$0xf]
  %v195 = vld [vmem:[%s1 + $0x1b8] sm:$0xf]
  %v196 = vld [vmem:[%s1 + $0x1bc] sm:$0xf]
  %v197 = vld [vmem:[%s1 + $0x1c0] sm:$0xf]
  %v198 = vld [vmem:[%s1 + $0x1c4] sm:$0xf]
  %v199 = vld [vmem:[%s1 + $0x1c8] sm:$0xf]
  %v200 = vld [vmem:[%s1 + $0x1cc] sm:$0xf]
  %v201 = vld [vmem:[%s1 + $0x1d0] sm:$0xf]
  %v202 = vld [vmem:[%s1 + $0x1d4] sm:$0xf]
  %v203 = vld [vmem:[%s1 + $0x1d8] sm:$0xf]
  %v204 = vld [vmem:[%s1 + $0x1dc] sm:$0xf]
  %v205 = vld [vmem:[%s1 + $0x1e0] sm:$0xf]
  %v206 = vld [vmem:[%s1 + $0x1e4] sm:$0xf]
  %v207 = vld [vmem:[%s1 + $0x1e8] sm:$0xf]
  %v208 = vld [vmem:[%s1 + $0x1ec] sm:$0xf]
  %v209 = vld [vmem:[%s1 + $0x1f0] sm:$0xf]
  %v210 = vld [vmem:[%s1 + $0x1f4] sm:$0xf]
  %v211 = vld [vmem:[%s1 + $0x1f8] sm:$0xf]
  %v212 = vld [vmem:[%s1 + $0x1fc] sm:$0xf]
  %v213 = vld [vmem:[%s1 + $0x200] sm:$0xf]
  %v214 = vld [vmem:[%s1 + $0x204] sm:$0xf]
  %v215 = vld [vmem:[%s1 + $0x208] sm:$0xf]
  %v216 = vld [vmem:[%s1 + $0x20c] sm:$0xf]
  %v217 = vld [vmem:[%s1 + $0x210] sm:$0xf]
  %v218 = vld [vmem:[%s1 + $0x214] sm:$0xf]
  %v219 = vld [vmem:[%s1 + $0x218] sm:$0xf]
  %v220 = vld [vmem:[%s1 + $0x21c] sm:$0xf]
  %v221 = vld [vmem:[%s1 + $0x220] sm:$0xf]
  %v222 = vld [vmem:[%s1 + $0x224] sm:$0xf]
  %v223 = vld [vmem:[%s1 + $0x228] sm:$0xf]
  %v224 = vld [vmem:[%s1 + $0x22c] sm:$0xf]
  %v225 = vld [vmem:[%s1 + $0x230] sm:$0xf]
  %v226 = vld [vmem:[%s1 + $0x234] sm:$0xf]
  %v227 = vld [vmem:[%s1 + $0x238] sm:$0xf]
  %v228 = vld [vmem:[%s1 + $0x23c] sm:$0xf]
  %v229 = vld [vmem:[%s2] sm:$0x1]
  %v231 = vlaneseq
  %v232 = vshrl.u32 %v231, 7
  %v233 = vsub.s32 0, %v232
  %v234 = vrot.slane %v229, %v233
  %v306 = vunpack.c.l.b16 %v15
  %v307 = vunpack.c.h.b16 %v15
  %v308 = vunpack.c.l.b16 %v16
  %v309 = vunpack.c.h.b16 %v16
  %v310 = vunpack.c.l.b16 %v17
  %v311 = vunpack.c.h.b16 %v17
  %v312 = vunpack.c.l.b16 %v18
  %v313 = vunpack.c.h.b16 %v18
  %v314 = vunpack.c.l.b16 %v19
  %v315 = vunpack.c.l.b16 %v20
  %v316 = vunpack.c.h.b16 %v20
  %v317 = vunpack.c.l.b16 %v21
  %v318 = vunpack.c.h.b16 %v21
  %v319 = vunpack.c.l.b16 %v22
  %v320 = vunpack.c.h.b16 %v22
  %v321 = vunpack.c.l.b16 %v23
  %v322 = vunpack.c.h.b16 %v23
  %v323 = vunpack.c.l.b16 %v24
  %v324 = vunpack.c.l.b16 %v25
  %v325 = vunpack.c.h.b16 %v25
  %v326 = vunpack.c.l.b16 %v26
  %v327 = vunpack.c.h.b16 %v26
  %v328 = vunpack.c.l.b16 %v27
  %v329 = vunpack.c.h.b16 %v27
  %v330 = vunpack.c.l.b16 %v28
  %v331 = vunpack.c.h.b16 %v28
  %v332 = vunpack.c.l.b16 %v29
  %v333 = vunpack.c.l.b16 %v30
  %v334 = vunpack.c.h.b16 %v30
  %v335 = vunpack.c.l.b16 %v31
  %v336 = vunpack.c.h.b16 %v31
  %v337 = vunpack.c.l.b16 %v32
  %v338 = vunpack.c.h.b16 %v32
  %v339 = vunpack.c.l.b16 %v33
  %v340 = vunpack.c.h.b16 %v33
  %v341 = vunpack.c.l.b16 %v34
  %v342 = vunpack.c.l.b16 %v35
  %v343 = vunpack.c.h.b16 %v35
  %v344 = vunpack.c.l.b16 %v36
  %v345 = vunpack.c.h.b16 %v36
  %v346 = vunpack.c.l.b16 %v37
  %v347 = vunpack.c.h.b16 %v37
  %v348 = vunpack.c.l.b16 %v38
  %v349 = vunpack.c.h.b16 %v38
  %v350 = vunpack.c.l.b16 %v39
  %v351 = vunpack.c.l.b16 %v40
  %v352 = vunpack.c.h.b16 %v40
  %v353 = vunpack.c.l.b16 %v41
  %v354 = vunpack.c.h.b16 %v41
  %v355 = vunpack.c.l.b16 %v42
  %v356 = vunpack.c.h.b16 %v42
  %v357 = vunpack.c.l.b16 %v43
  %v358 = vunpack.c.h.b16 %v43
  %v359 = vunpack.c.l.b16 %v44
  %v360 = vunpack.c.l.b16 %v45
  %v361 = vunpack.c.h.b16 %v45
  %v362 = vunpack.c.l.b16 %v46
  %v363 = vunpack.c.h.b16 %v46
  %v364 = vunpack.c.l.b16 %v47
  %v365 = vunpack.c.h.b16 %v47
  %v366 = vunpack.c.l.b16 %v48
  %v367 = vunpack.c.h.b16 %v48
  %v368 = vunpack.c.l.b16 %v49
  %v369 = vunpack.c.l.b16 %v50
  %v370 = vunpack.c.h.b16 %v50
  %v371 = vunpack.c.l.b16 %v51
  %v372 = vunpack.c.h.b16 %v51
  %v373 = vunpack.c.l.b16 %v52
  %v374 = vunpack.c.h.b16 %v52
  %v375 = vunpack.c.l.b16 %v53
  %v376 = vunpack.c.h.b16 %v53
  %v377 = vunpack.c.l.b16 %v54
  %v378 = vunpack.c.l.b16 %v55
  %v379 = vunpack.c.h.b16 %v55
  %v380 = vunpack.c.l.b16 %v56
  %v381 = vunpack.c.h.b16 %v56
  %v382 = vunpack.c.l.b16 %v57
  %v383 = vunpack.c.h.b16 %v57
  %v384 = vunpack.c.l.b16 %v58
  %v385 = vunpack.c.h.b16 %v58
  %v386 = vunpack.c.l.b16 %v59
  %v387 = vunpack.c.l.b16 %v60
  %v388 = vunpack.c.h.b16 %v60
  %v389 = vunpack.c.l.b16 %v61
  %v390 = vunpack.c.h.b16 %v61
  %v391 = vunpack.c.l.b16 %v62
  %v392 = vunpack.c.h.b16 %v62
  %v393 = vunpack.c.l.b16 %v63
  %v394 = vunpack.c.h.b16 %v63
  %v395 = vunpack.c.l.b16 %v64
  %v396 = vunpack.c.l.b16 %v65
  %v397 = vunpack.c.h.b16 %v65
  %v398 = vunpack.c.l.b16 %v66
  %v399 = vunpack.c.h.b16 %v66
  %v400 = vunpack.c.l.b16 %v67
  %v401 = vunpack.c.h.b16 %v67
  %v402 = vunpack.c.l.b16 %v68
  %v403 = vunpack.c.h.b16 %v68
  %v404 = vunpack.c.l.b16 %v69
  %v405 = vunpack.c.l.b16 %v70
  %v406 = vunpack.c.h.b16 %v70
  %v407 = vunpack.c.l.b16 %v71
  %v408 = vunpack.c.h.b16 %v71
  %v409 = vunpack.c.l.b16 %v72
  %v410 = vunpack.c.h.b16 %v72
  %v411 = vunpack.c.l.b16 %v73
  %v412 = vunpack.c.h.b16 %v73
  %v413 = vunpack.c.l.b16 %v74
  %v414 = vunpack.c.l.b16 %v75
  %v415 = vunpack.c.h.b16 %v75
  %v416 = vunpack.c.l.b16 %v76
  %v417 = vunpack.c.h.b16 %v76
  %v418 = vunpack.c.l.b16 %v77
  %v419 = vunpack.c.h.b16 %v77
  %v420 = vunpack.c.l.b16 %v78
  %v421 = vunpack.c.h.b16 %v78
  %v422 = vunpack.c.l.b16 %v79
  %v423 = vunpack.c.l.b16 %v80
  %v424 = vunpack.c.h.b16 %v80
  %v425 = vunpack.c.l.b16 %v81
  %v426 = vunpack.c.h.b16 %v81
  %v427 = vunpack.c.l.b16 %v82
  %v428 = vunpack.c.h.b16 %v82
  %v429 = vunpack.c.l.b16 %v83
  %v430 = vunpack.c.h.b16 %v83
  %v431 = vunpack.c.l.b16 %v84
  %v432 = vpack.c.b16 %v315, %v306
  %v433 = vpack.c.b16 %v316, %v307
  %v434 = vpack.c.b16 %v317, %v308
  %v435 = vpack.c.b16 %v318, %v309
  %v436 = vpack.c.b16 %v319, %v310
  %v437 = vpack.c.b16 %v320, %v311
  %v438 = vpack.c.b16 %v321, %v312
  %v439 = vpack.c.b16 %v322, %v313
  %v440 = vpack.c.b16 %v323, %v314
  %v441 = vpack.c.b16 %v333, %v324
  %v442 = vpack.c.b16 %v334, %v325
  %v443 = vpack.c.b16 %v335, %v326
  %v444 = vpack.c.b16 %v336, %v327
  %v445 = vpack.c.b16 %v337, %v328
  %v446 = vpack.c.b16 %v338, %v329
  %v447 = vpack.c.b16 %v339, %v330
  %v448 = vpack.c.b16 %v340, %v331
  %v449 = vpack.c.b16 %v341, %v332
  %v450 = vpack.c.b16 %v351, %v342
  %v451 = vpack.c.b16 %v352, %v343
  %v452 = vpack.c.b16 %v353, %v344
  %v453 = vpack.c.b16 %v354, %v345
  %v454 = vpack.c.b16 %v355, %v346
  %v455 = vpack.c.b16 %v356, %v347
  %v456 = vpack.c.b16 %v357, %v348
  %v457 = vpack.c.b16 %v358, %v349
  %v458 = vpack.c.b16 %v359, %v350
  %v459 = vpack.c.b16 %v369, %v360
  %v460 = vpack.c.b16 %v370, %v361
  %v461 = vpack.c.b16 %v371, %v362
  %v462 = vpack.c.b16 %v372, %v363
  %v463 = vpack.c.b16 %v373, %v364
  %v464 = vpack.c.b16 %v374, %v365
  %v465 = vpack.c.b16 %v375, %v366
  %v466 = vpack.c.b16 %v376, %v367
  %v467 = vpack.c.b16 %v377, %v368
  %v468 = vpack.c.b16 %v387, %v378
  %v469 = vpack.c.b16 %v388, %v379
  %v470 = vpack.c.b16 %v389, %v380
  %v471 = vpack.c.b16 %v390, %v381
  %v472 = vpack.c.b16 %v391, %v382
  %v473 = vpack.c.b16 %v392, %v383
  %v474 = vpack.c.b16 %v393, %v384
  %v475 = vpack.c.b16 %v394, %v385
  %v476 = vpack.c.b16 %v395, %v386
  %v477 = vpack.c.b16 %v405, %v396
  %v478 = vpack.c.b16 %v406, %v397
  %v479 = vpack.c.b16 %v407, %v398
  %v480 = vpack.c.b16 %v408, %v399
  %v481 = vpack.c.b16 %v409, %v400
  %v482 = vpack.c.b16 %v410, %v401
  %v483 = vpack.c.b16 %v411, %v402
  %v484 = vpack.c.b16 %v412, %v403
  %v485 = vpack.c.b16 %v413, %v404
  %v486 = vpack.c.b16 %v423, %v414
  %v487 = vpack.c.b16 %v424, %v415
  %v488 = vpack.c.b16 %v425, %v416
  %v489 = vpack.c.b16 %v426, %v417
  %v490 = vpack.c.b16 %v427, %v418
  %v491 = vpack.c.b16 %v428, %v419
  %v492 = vpack.c.b16 %v429, %v420
  %v493 = vpack.c.b16 %v430, %v421
  %v494 = vpack.c.b16 %v431, %v422
  %v702 = vunpack.c.l.b16 %v85
  %v703 = vunpack.c.l.b16 %v86
  %v704 = vunpack.c.l.b16 %v87
  %v705 = vunpack.c.l.b16 %v88
  %v706 = vunpack.c.l.b16 %v89
  %v707 = vunpack.c.l.b16 %v90
  %v708 = vunpack.c.l.b16 %v91
  %v709 = vunpack.c.l.b16 %v92
  %v710 = vunpack.c.l.b16 %v93
  %v711 = vunpack.c.l.b16 %v94
  %v712 = vunpack.c.l.b16 %v95
  %v713 = vunpack.c.l.b16 %v96
  %v714 = vunpack.c.l.b16 %v97
  %v715 = vunpack.c.l.b16 %v98
  %v716 = vunpack.c.l.b16 %v99
  %v717 = vunpack.c.l.b16 %v100
  %v718 = vunpack.c.l.b16 %v101
  %v719 = vunpack.c.l.b16 %v102
  %v720 = vunpack.c.l.b16 %v103
  %v721 = vunpack.c.l.b16 %v104
  %v722 = vunpack.c.l.b16 %v105
  %v723 = vunpack.c.l.b16 %v106
  %v724 = vunpack.c.l.b16 %v107
  %v725 = vunpack.c.l.b16 %v108
  %v726 = vunpack.c.l.b16 %v109
  %v727 = vunpack.c.l.b16 %v110
  %v728 = vunpack.c.l.b16 %v111
  %v729 = vunpack.c.l.b16 %v112
  %v730 = vunpack.c.l.b16 %v113
  %v731 = vunpack.c.l.b16 %v114
  %v732 = vunpack.c.l.b16 %v115
  %v733 = vunpack.c.l.b16 %v116
  %v734 = vunpack.c.l.b16 %v117
  %v735 = vunpack.c.l.b16 %v118
  %v736 = vunpack.c.l.b16 %v119
  %v737 = vunpack.c.l.b16 %v120
  %v738 = vunpack.c.l.b16 %v121
  %v739 = vunpack.c.l.b16 %v122
  %v740 = vunpack.c.l.b16 %v123
  %v741 = vunpack.c.l.b16 %v124
  %v742 = vunpack.c.l.b16 %v125
  %v743 = vunpack.c.l.b16 %v126
  %v744 = vunpack.c.l.b16 %v127
  %v745 = vunpack.c.l.b16 %v128
  %v746 = vunpack.c.l.b16 %v129
  %v747 = vunpack.c.l.b16 %v130
  %v748 = vunpack.c.l.b16 %v131
  %v749 = vunpack.c.l.b16 %v132
  %v750 = vunpack.c.l.b16 %v133
  %v751 = vunpack.c.l.b16 %v134
  %v752 = vunpack.c.l.b16 %v135
  %v753 = vunpack.c.l.b16 %v136
  %v754 = vunpack.c.l.b16 %v137
  %v755 = vunpack.c.l.b16 %v138
  %v756 = vunpack.c.l.b16 %v139
  %v757 = vunpack.c.l.b16 %v140
  %v758 = vunpack.c.l.b16 %v141
  %v759 = vunpack.c.l.b16 %v142
  %v760 = vunpack.c.l.b16 %v143
  %v761 = vunpack.c.l.b16 %v144
  %v762 = vunpack.c.l.b16 %v145
  %v763 = vunpack.c.l.b16 %v146
  %v764 = vunpack.c.l.b16 %v147
  %v765 = vunpack.c.l.b16 %v148
  %v766 = vunpack.c.l.b16 %v149
  %v767 = vunpack.c.l.b16 %v150
  %v768 = vunpack.c.l.b16 %v151
  %v769 = vunpack.c.l.b16 %v152
  %v770 = vunpack.c.l.b16 %v153
  %v771 = vunpack.c.l.b16 %v154
  %v772 = vunpack.c.l.b16 %v155
  %v773 = vunpack.c.l.b16 %v156
  %v774 = vunpack.c.l.b16 %v157
  %v775 = vunpack.c.l.b16 %v158
  %v776 = vunpack.c.l.b16 %v159
  %v777 = vunpack.c.l.b16 %v160
  %v778 = vunpack.c.l.b16 %v161
  %v779 = vunpack.c.l.b16 %v162
  %v780 = vunpack.c.l.b16 %v163
  %v781 = vunpack.c.l.b16 %v164
  %v782 = vunpack.c.l.b16 %v165
  %v783 = vunpack.c.l.b16 %v166
  %v784 = vunpack.c.l.b16 %v167
  %v785 = vunpack.c.l.b16 %v168
  %v786 = vunpack.c.l.b16 %v169
  %v787 = vunpack.c.l.b16 %v170
  %v788 = vunpack.c.l.b16 %v171
  %v789 = vunpack.c.l.b16 %v172
  %v790 = vunpack.c.l.b16 %v173
  %v791 = vunpack.c.l.b16 %v174
  %v792 = vunpack.c.l.b16 %v175
  %v793 = vunpack.c.l.b16 %v176
  %v794 = vunpack.c.l.b16 %v177
  %v795 = vunpack.c.l.b16 %v178
  %v796 = vunpack.c.l.b16 %v179
  %v797 = vunpack.c.l.b16 %v180
  %v798 = vunpack.c.l.b16 %v181
  %v799 = vunpack.c.l.b16 %v182
  %v800 = vunpack.c.l.b16 %v183
  %v801 = vunpack.c.l.b16 %v184
  %v802 = vunpack.c.l.b16 %v185
  %v803 = vunpack.c.l.b16 %v186
  %v804 = vunpack.c.l.b16 %v187
  %v805 = vunpack.c.l.b16 %v188
  %v806 = vunpack.c.l.b16 %v189
  %v807 = vunpack.c.l.b16 %v190
  %v808 = vunpack.c.l.b16 %v191
  %v809 = vunpack.c.l.b16 %v192
  %v810 = vunpack.c.l.b16 %v193
  %v811 = vunpack.c.l.b16 %v194
  %v812 = vunpack.c.l.b16 %v195
  %v813 = vunpack.c.l.b16 %v196
  %v814 = vunpack.c.l.b16 %v197
  %v815 = vunpack.c.l.b16 %v198
  %v816 = vunpack.c.l.b16 %v199
  %v817 = vunpack.c.l.b16 %v200
  %v818 = vunpack.c.l.b16 %v201
  %v819 = vunpack.c.l.b16 %v202
  %v820 = vunpack.c.l.b16 %v203
  %v821 = vunpack.c.l.b16 %v204
  %v822 = vunpack.c.l.b16 %v205
  %v823 = vunpack.c.l.b16 %v206
  %v824 = vunpack.c.l.b16 %v207
  %v825 = vunpack.c.l.b16 %v208
  %v826 = vunpack.c.l.b16 %v209
  %v827 = vunpack.c.l.b16 %v210
  %v828 = vunpack.c.l.b16 %v211
  %v829 = vunpack.c.l.b16 %v212
  %v830 = vunpack.c.l.b16 %v213
  %v831 = vunpack.c.l.b16 %v214
  %v832 = vunpack.c.l.b16 %v215
  %v833 = vunpack.c.l.b16 %v216
  %v834 = vunpack.c.l.b16 %v217
  %v835 = vunpack.c.l.b16 %v218
  %v836 = vunpack.c.l.b16 %v219
  %v837 = vunpack.c.l.b16 %v220
  %v838 = vunpack.c.l.b16 %v221
  %v839 = vunpack.c.l.b16 %v222
  %v840 = vunpack.c.l.b16 %v223
  %v841 = vunpack.c.l.b16 %v224
  %v842 = vunpack.c.l.b16 %v225
  %v843 = vunpack.c.l.b16 %v226
  %v844 = vunpack.c.l.b16 %v227
  %v845 = vunpack.c.l.b16 %v228
  %v846 = vpack.c.b16 %v703, %v702
  %v847 = vpack.c.b16 %v705, %v704
  %v848 = vpack.c.b16 %v707, %v706
  %v849 = vpack.c.b16 %v709, %v708
  %v850 = vpack.c.b16 %v711, %v710
  %v851 = vpack.c.b16 %v713, %v712
  %v852 = vpack.c.b16 %v715, %v714
  %v853 = vpack.c.b16 %v717, %v716
  %v854 = vpack.c.b16 %v719, %v718
  %v855 = vpack.c.b16 %v721, %v720
  %v856 = vpack.c.b16 %v723, %v722
  %v857 = vpack.c.b16 %v725, %v724
  %v858 = vpack.c.b16 %v727, %v726
  %v859 = vpack.c.b16 %v729, %v728
  %v860 = vpack.c.b16 %v731, %v730
  %v861 = vpack.c.b16 %v733, %v732
  %v862 = vpack.c.b16 %v735, %v734
  %v863 = vpack.c.b16 %v737, %v736
  %v864 = vpack.c.b16 %v739, %v738
  %v865 = vpack.c.b16 %v741, %v740
  %v866 = vpack.c.b16 %v743, %v742
  %v867 = vpack.c.b16 %v745, %v744
  %v868 = vpack.c.b16 %v747, %v746
  %v869 = vpack.c.b16 %v749, %v748
  %v870 = vpack.c.b16 %v751, %v750
  %v871 = vpack.c.b16 %v753, %v752
  %v872 = vpack.c.b16 %v755, %v754
  %v873 = vpack.c.b16 %v757, %v756
  %v874 = vpack.c.b16 %v759, %v758
  %v875 = vpack.c.b16 %v761, %v760
  %v876 = vpack.c.b16 %v763, %v762
  %v877 = vpack.c.b16 %v765, %v764
  %v878 = vpack.c.b16 %v767, %v766
  %v879 = vpack.c.b16 %v769, %v768
  %v880 = vpack.c.b16 %v771, %v770
  %v881 = vpack.c.b16 %v773, %v772
  %v882 = vpack.c.b16 %v775, %v774
  %v883 = vpack.c.b16 %v777, %v776
  %v884 = vpack.c.b16 %v779, %v778
  %v885 = vpack.c.b16 %v781, %v780
  %v886 = vpack.c.b16 %v783, %v782
  %v887 = vpack.c.b16 %v785, %v784
  %v888 = vpack.c.b16 %v787, %v786
  %v889 = vpack.c.b16 %v789, %v788
  %v890 = vpack.c.b16 %v791, %v790
  %v891 = vpack.c.b16 %v793, %v792
  %v892 = vpack.c.b16 %v795, %v794
  %v893 = vpack.c.b16 %v797, %v796
  %v894 = vpack.c.b16 %v799, %v798
  %v895 = vpack.c.b16 %v801, %v800
  %v896 = vpack.c.b16 %v803, %v802
  %v897 = vpack.c.b16 %v805, %v804
  %v898 = vpack.c.b16 %v807, %v806
  %v899 = vpack.c.b16 %v809, %v808
  %v900 = vpack.c.b16 %v811, %v810
  %v901 = vpack.c.b16 %v813, %v812
  %v902 = vpack.c.b16 %v815, %v814
  %v903 = vpack.c.b16 %v817, %v816
  %v904 = vpack.c.b16 %v819, %v818
  %v905 = vpack.c.b16 %v821, %v820
  %v906 = vpack.c.b16 %v823, %v822
  %v907 = vpack.c.b16 %v825, %v824
  %v908 = vpack.c.b16 %v827, %v826
  %v909 = vpack.c.b16 %v829, %v828
  %v910 = vpack.c.b16 %v831, %v830
  %v911 = vpack.c.b16 %v833, %v832
  %v912 = vpack.c.b16 %v835, %v834
  %v913 = vpack.c.b16 %v837, %v836
  %v914 = vpack.c.b16 %v839, %v838
  %v915 = vpack.c.b16 %v841, %v840
  %v916 = vpack.c.b16 %v843, %v842
  %v917 = vpack.c.b16 %v845, %v844
  %990 = vmatprep.subr.bf16.mxu0 0
  %991 = vmatpush1.bf16.msra.mxu0 %v846
  %992 = vmatprep.subr.bf16.mxu0 0
  %993 = vmatpush1.bf16.msra.mxu0 %v847
  %994 = vmatprep.subr.bf16.mxu0 0
  %995 = vmatpush1.bf16.msra.mxu0 %v848
  %996 = vmatprep.subr.bf16.mxu0 0
  %997 = vmatpush1.bf16.msra.mxu0 %v849
  %998 = vmatprep.subr.bf16.mxu0 0
  %999 = vmatpush1.bf16.msra.mxu0 %v850
  %1000 = vmatprep.subr.bf16.mxu0 0
  %1001 = vmatpush1.bf16.msra.mxu0 %v851
  %1002 = vmatprep.subr.bf16.mxu0 0
  %1003 = vmatpush1.bf16.msra.mxu0 %v852
  %1004 = vmatprep.subr.bf16.mxu0 0
  %1005 = vmatpush1.bf16.msra.mxu0 %v853
  %1006 = vmatprep.subr.bf16.mxu0 0
  %1007 = vmatpush1.bf16.msra.mxu0 %v854
  %1008 = vmatprep.subr.bf16.mxu0 0
  %1009 = vmatpush1.bf16.msra.mxu0 %v855
  %1010 = vmatprep.subr.bf16.mxu0 0
  %1011 = vmatpush1.bf16.msra.mxu0 %v856
  %1012 = vmatprep.subr.bf16.mxu0 0
  %1013 = vmatpush1.bf16.msra.mxu0 %v857
  %1014 = vmatprep.subr.bf16.mxu0 0
  %1015 = vmatpush1.bf16.msra.mxu0 %v858
  %1016 = vmatprep.subr.bf16.mxu0 0
  %1017 = vmatpush1.bf16.msra.mxu0 %v859
  %1018 = vmatprep.subr.bf16.mxu0 0
  %1019 = vmatpush1.bf16.msra.mxu0 %v860
  %1020 = vmatprep.subr.bf16.mxu0 0
  %1021 = vmatpush1.bf16.msra.mxu0 %v861
  %1022 = vmatprep.mubr.bf16.mxu0 %v433
  %1023 = vmatmul.mubr.bf16.gmra.mrb[0].mxu0 %v432
  %v1024 = vpop.f32.mrb[0].mxu0
  %v1025 = vadd.f32 %v234, %v1024
  %v1026 = vpop.f32.mrb[0].mxu0
  %v1027 = vpop.f32.mrb[0].mxu0
  %v1028 = vadd.f32 %v234, %v1027
  %v1029 = vpop.f32.mrb[0].mxu0
  %1030 = vmatprep.mubr.bf16.mxu0 %v442
  %1031 = vmatmul.mubr.bf16.gmra.mrb[0].mxu0 %v441
  %v1032 = vpop.f32.mrb[0].mxu0
  %v1033 = vadd.f32 %v234, %v1032
  %v1034 = vpop.f32.mrb[0].mxu0
  %v1035 = vpop.f32.mrb[0].mxu0
  %v1036 = vadd.f32 %v234, %v1035
  %v1037 = vpop.f32.mrb[0].mxu0
  %1038 = vmatprep.mubr.bf16.mxu0 %v451
  %1039 = vmatmul.mubr.bf16.gmra.mrb[0].mxu0 %v450
  %v1040 = vpop.f32.mrb[0].mxu0
  %v1041 = vadd.f32 %v234, %v1040
  %v1042 = vpop.f32.mrb[0].mxu0
  %v1043 = vpop.f32.mrb[0].mxu0
  %v1044 = vadd.f32 %v234, %v1043
  %v1045 = vpop.f32.mrb[0].mxu0
  %1046 = vmatprep.mubr.bf16.mxu0 %v460
  %1047 = vmatmul.mubr.bf16.gmra.mrb[0].mxu0 %v459
  %v1048 = vpop.f32.mrb[0].mxu0
  %v1049 = vadd.f32 %v234, %v1048
  %v1050 = vpop.f32.mrb[0].mxu0
  %v1051 = vpop.f32.mrb[0].mxu0
  %v1052 = vadd.f32 %v234, %v1051
  %v1053 = vpop.f32.mrb[0].mxu0
  %1054 = vmatprep.mubr.bf16.mxu0 %v469
  %1055 = vmatmul.mubr.bf16.gmra.mrb[0].mxu0 %v468
  %v1056 = vpop.f32.mrb[0].mxu0
  %v1057 = vadd.f32 %v234, %v1056
  %v1058 = vpop.f32.mrb[0].mxu0
  %v1059 = vpop.f32.mrb[0].mxu0
  %v1060 = vadd.f32 %v234, %v1059
  %v1061 = vpop.f32.mrb[0].mxu0
  %1062 = vmatprep.mubr.bf16.mxu0 %v478
  %1063 = vmatmul.mubr.bf16.gmra.mrb[0].mxu0 %v477
  %v1064 = vpop.f32.mrb[0].mxu0
  %v1065 = vadd.f32 %v234, %v1064
  %v1066 = vpop.f32.mrb[0].mxu0
  %v1067 = vpop.f32.mrb[0].mxu0
  %v1068 = vadd.f32 %v234, %v1067
  %v1069 = vpop.f32.mrb[0].mxu0
  %1070 = vmatprep.mubr.bf16.mxu0 %v487
  %1071 = vmatmul.mubr.bf16.gmra.mrb[0].mxu0 %v486
  %v1072 = vpop.f32.mrb[0].mxu0
  %v1073 = vadd.f32 %v234, %v1072
  %v1074 = vpop.f32.mrb[0].mxu0
  %v1075 = vpop.f32.mrb[0].mxu0
  %v1076 = vadd.f32 %v234, %v1075
  %v1077 = vpop.f32.mrb[0].mxu0
  %1078 = vdwg.mxu0
  %1079 = vmatprep.subr.bf16.mxu0 0
  %1080 = vmatpush1.bf16.msra.mxu0 %v862
  %1081 = vmatprep.subr.bf16.mxu0 0
  %1082 = vmatpush1.bf16.msra.mxu0 %v863
  %1083 = vmatprep.subr.bf16.mxu0 0
  %1084 = vmatpush1.bf16.msra.mxu0 %v864
  %1085 = vmatprep.subr.bf16.mxu0 0
  %1086 = vmatpush1.bf16.msra.mxu0 %v865
  %1087 = vmatprep.subr.bf16.mxu0 0
  %1088 = vmatpush1.bf16.msra.mxu0 %v866
  %1089 = vmatprep.subr.bf16.mxu0 0
  %1090 = vmatpush1.bf16.msra.mxu0 %v867
  %1091 = vmatprep.subr.bf16.mxu0 0
  %1092 = vmatpush1.bf16.msra.mxu0 %v868
  %1093 = vmatprep.subr.bf16.mxu0 0
  %1094 = vmatpush1.bf16.msra.mxu0 %v869
  %1095 = vmatprep.subr.bf16.mxu0 0
  %1096 = vmatpush1.bf16.msra.mxu0 %v870
  %1097 = vmatprep.subr.bf16.mxu0 0
  %1098 = vmatpush1.bf16.msra.mxu0 %v871
  %1099 = vmatprep.subr.bf16.mxu0 0
  %1100 = vmatpush1.bf16.msra.mxu0 %v872
  %1101 = vmatprep.subr.bf16.mxu0 0
  %1102 = vmatpush1.bf16.msra.mxu0 %v873
  %1103 = vmatprep.subr.bf16.mxu0 0
  %1104 = vmatpush1.bf16.msra.mxu0 %v874
  %1105 = vmatprep.subr.bf16.mxu0 0
  %1106 = vmatpush1.bf16.msra.mxu0 %v875
  %1107 = vmatprep.subr.bf16.mxu0 0
  %1108 = vmatpush1.bf16.msra.mxu0 %v876
  %1109 = vmatprep.subr.bf16.mxu0 0
  %1110 = vmatpush1.bf16.msra.mxu0 %v877
  %1111 = vmatprep.mubr.bf16.mxu0 %v435
  %1112 = vmatmul.mubr.bf16.gmra.mrb[0].mxu0 %v434
  %v1113 = vpop.f32.mrb[0].mxu0
  %v1114 = vadd.f32 %v1025, %v1113
  %v1115 = vpop.f32.mrb[0].mxu0
  %v1116 = vpop.f32.mrb[0].mxu0
  %v1117 = vadd.f32 %v1028, %v1116
  %v1118 = vpop.f32.mrb[0].mxu0
  %1119 = vmatprep.mubr.bf16.mxu0 %v444
  %1120 = vmatmul.mubr.bf16.gmra.mrb[0].mxu0 %v443
  %v1121 = vpop.f32.mrb[0].mxu0
  %v1122 = vadd.f32 %v1033, %v1121
  %v1123 = vpop.f32.mrb[0].mxu0
  %v1124 = vpop.f32.mrb[0].mxu0
  %v1125 = vadd.f32 %v1036, %v1124
  %v1126 = vpop.f32.mrb[0].mxu0
  %1127 = vmatprep.mubr.bf16.mxu0 %v453
  %1128 = vmatmul.mubr.bf16.gmra.mrb[0].mxu0 %v452
  %v1129 = vpop.f32.mrb[0].mxu0
  %v1130 = vadd.f32 %v1041, %v1129
  %v1131 = vpop.f32.mrb[0].mxu0
  %v1132 = vpop.f32.mrb[0].mxu0
  %v1133 = vadd.f32 %v1044, %v1132
  %v1134 = vpop.f32.mrb[0].mxu0
  %1135 = vmatprep.mubr.bf16.mxu0 %v462
  %1136 = vmatmul.mubr.bf16.gmra.mrb[0].mxu0 %v461
  %v1137 = vpop.f32.mrb[0].mxu0
  %v1138 = vadd.f32 %v1049, %v1137
  %v1139 = vpop.f32.mrb[0].mxu0
  %v1140 = vpop.f32.mrb[0].mxu0
  %v1141 = vadd.f32 %v1052, %v1140
  %v1142 = vpop.f32.mrb[0].mxu0
  %1143 = vmatprep.mubr.bf16.mxu0 %v471
  %1144 = vmatmul.mubr.bf16.gmra.mrb[0].mxu0 %v470
  %v1145 = vpop.f32.mrb[0].mxu0
  %v1146 = vadd.f32 %v1057, %v1145
  %v1147 = vpop.f32.mrb[0].mxu0
  %v1148 = vpop.f32.mrb[0].mxu0
  %v1149 = vadd.f32 %v1060, %v1148
  %v1150 = vpop.f32.mrb[0].mxu0
  %1151 = vmatprep.mubr.bf16.mxu0 %v480
  %1152 = vmatmul.mubr.bf16.gmra.mrb[0].mxu0 %v479
  %v1153 = vpop.f32.mrb[0].mxu0
  %v1154 = vadd.f32 %v1065, %v1153
  %v1155 = vpop.f32.mrb[0].mxu0
  %v1156 = vpop.f32.mrb[0].mxu0
  %v1157 = vadd.f32 %v1068, %v1156
  %v1158 = vpop.f32.mrb[0].mxu0
  %1159 = vmatprep.mubr.bf16.mxu0 %v489
  %1160 = vmatmul.mubr.bf16.gmra.mrb[0].mxu0 %v488
  %v1161 = vpop.f32.mrb[0].mxu0
  %v1162 = vadd.f32 %v1073, %v1161
  %v1163 = vpop.f32.mrb[0].mxu0
  %v1164 = vpop.f32.mrb[0].mxu0
  %v1165 = vadd.f32 %v1076, %v1164
  %v1166 = vpop.f32.mrb[0].mxu0
  %1167 = vdwg.mxu0
  %1168 = vmatprep.subr.bf16.mxu0 0
  %1169 = vmatpush1.bf16.msra.mxu0 %v878
  %1170 = vmatprep.subr.bf16.mxu0 0
  %1171 = vmatpush1.bf16.msra.mxu0 %v879
  %1172 = vmatprep.subr.bf16.mxu0 0
  %1173 = vmatpush1.bf16.msra.mxu0 %v880
  %1174 = vmatprep.subr.bf16.mxu0 0
  %1175 = vmatpush1.bf16.msra.mxu0 %v881
  %1176 = vmatprep.subr.bf16.mxu0 0
  %1177 = vmatpush1.bf16.msra.mxu0 %v882
  %1178 = vmatprep.subr.bf16.mxu0 0
  %1179 = vmatpush1.bf16.msra.mxu0 %v883
  %1180 = vmatprep.subr.bf16.mxu0 0
  %1181 = vmatpush1.bf16.msra.mxu0 %v884
  %1182 = vmatprep.subr.bf16.mxu0 0
  %1183 = vmatpush1.bf16.msra.mxu0 %v885
  %1184 = vmatprep.subr.bf16.mxu0 0
  %1185 = vmatpush1.bf16.msra.mxu0 %v886
  %1186 = vmatprep.subr.bf16.mxu0 0
  %1187 = vmatpush1.bf16.msra.mxu0 %v887
  %1188 = vmatprep.subr.bf16.mxu0 0
  %1189 = vmatpush1.bf16.msra.mxu0 %v888
  %1190 = vmatprep.subr.bf16.mxu0 0
  %1191 = vmatpush1.bf16.msra.mxu0 %v889
  %1192 = vmatprep.subr.bf16.mxu0 0
  %1193 = vmatpush1.bf16.msra.mxu0 %v890
  %1194 = vmatprep.subr.bf16.mxu0 0
  %1195 = vmatpush1.bf16.msra.mxu0 %v891
  %1196 = vmatprep.subr.bf16.mxu0 0
  %1197 = vmatpush1.bf16.msra.mxu0 %v892
  %1198 = vmatprep.subr.bf16.mxu0 0
  %1199 = vmatpush1.bf16.msra.mxu0 %v893
  %1200 = vmatprep.mubr.bf16.mxu0 %v437
  %1201 = vmatmul.mubr.bf16.gmra.mrb[0].mxu0 %v436
  %v1202 = vpop.f32.mrb[0].mxu0
  %v1203 = vadd.f32 %v1114, %v1202
  %v1204 = vpop.f32.mrb[0].mxu0
  %v1205 = vpop.f32.mrb[0].mxu0
  %v1206 = vadd.f32 %v1117, %v1205
  %v1207 = vpop.f32.mrb[0].mxu0
  %1208 = vmatprep.mubr.bf16.mxu0 %v446
  %1209 = vmatmul.mubr.bf16.gmra.mrb[0].mxu0 %v445
  %v1210 = vpop.f32.mrb[0].mxu0
  %v1211 = vadd.f32 %v1122, %v1210
  %v1212 = vpop.f32.mrb[0].mxu0
  %v1213 = vpop.f32.mrb[0].mxu0
  %v1214 = vadd.f32 %v1125, %v1213
  %v1215 = vpop.f32.mrb[0].mxu0
  %1216 = vmatprep.mubr.bf16.mxu0 %v455
  %1217 = vmatmul.mubr.bf16.gmra.mrb[0].mxu0 %v454
  %v1218 = vpop.f32.mrb[0].mxu0
  %v1219 = vadd.f32 %v1130, %v1218
  %v1220 = vpop.f32.mrb[0].mxu0
  %v1221 = vpop.f32.mrb[0].mxu0
  %v1222 = vadd.f32 %v1133, %v1221
  %v1223 = vpop.f32.mrb[0].mxu0
  %1224 = vmatprep.mubr.bf16.mxu0 %v464
  %1225 = vmatmul.mubr.bf16.gmra.mrb[0].mxu0 %v463
  %v1226 = vpop.f32.mrb[0].mxu0
  %v1227 = vadd.f32 %v1138, %v1226
  %v1228 = vpop.f32.mrb[0].mxu0
  %v1229 = vpop.f32.mrb[0].mxu0
  %v1230 = vadd.f32 %v1141, %v1229
  %v1231 = vpop.f32.mrb[0].mxu0
  %1232 = vmatprep.mubr.bf16.mxu0 %v473
  %1233 = vmatmul.mubr.bf16.gmra.mrb[0].mxu0 %v472
  %v1234 = vpop.f32.mrb[0].mxu0
  %v1235 = vadd.f32 %v1146, %v1234
  %v1236 = vpop.f32.mrb[0].mxu0
  %v1237 = vpop.f32.mrb[0].mxu0
  %v1238 = vadd.f32 %v1149, %v1237
  %v1239 = vpop.f32.mrb[0].mxu0
  %1240 = vmatprep.mubr.bf16.mxu0 %v482
  %1241 = vmatmul.mubr.bf16.gmra.mrb[0].mxu0 %v481
  %v1242 = vpop.f32.mrb[0].mxu0
  %v1243 = vadd.f32 %v1154, %v1242
  %v1244 = vpop.f32.mrb[0].mxu0
  %v1245 = vpop.f32.mrb[0].mxu0
  %v1246 = vadd.f32 %v1157, %v1245
  %v1247 = vpop.f32.mrb[0].mxu0
  %1248 = vmatprep.mubr.bf16.mxu0 %v491
  %1249 = vmatmul.mubr.bf16.gmra.mrb[0].mxu0 %v490
  %v1250 = vpop.f32.mrb[0].mxu0
  %v1251 = vadd.f32 %v1162, %v1250
  %v1252 = vpop.f32.mrb[0].mxu0
  %v1253 = vpop.f32.mrb[0].mxu0
  %v1254 = vadd.f32 %v1165, %v1253
  %v1255 = vpop.f32.mrb[0].mxu0
  %1256 = vdwg.mxu0
  %1257 = vmatprep.subr.bf16.mxu0 0
  %1258 = vmatpush1.bf16.msra.mxu0 %v894
  %1259 = vmatprep.subr.bf16.mxu0 0
  %1260 = vmatpush1.bf16.msra.mxu0 %v895
  %1261 = vmatprep.subr.bf16.mxu0 0
  %1262 = vmatpush1.bf16.msra.mxu0 %v896
  %1263 = vmatprep.subr.bf16.mxu0 0
  %1264 = vmatpush1.bf16.msra.mxu0 %v897
  %1265 = vmatprep.subr.bf16.mxu0 0
  %1266 = vmatpush1.bf16.msra.mxu0 %v898
  %1267 = vmatprep.subr.bf16.mxu0 0
  %1268 = vmatpush1.bf16.msra.mxu0 %v899
  %1269 = vmatprep.subr.bf16.mxu0 0
  %1270 = vmatpush1.bf16.msra.mxu0 %v900
  %1271 = vmatprep.subr.bf16.mxu0 0
  %1272 = vmatpush1.bf16.msra.mxu0 %v901
  %1273 = vmatprep.subr.bf16.mxu0 0
  %1274 = vmatpush1.bf16.msra.mxu0 %v902
  %1275 = vmatprep.subr.bf16.mxu0 0
  %1276 = vmatpush1.bf16.msra.mxu0 %v903
  %1277 = vmatprep.subr.bf16.mxu0 0
  %1278 = vmatpush1.bf16.msra.mxu0 %v904
  %1279 = vmatprep.subr.bf16.mxu0 0
  %1280 = vmatpush1.bf16.msra.mxu0 %v905
  %1281 = vmatprep.subr.bf16.mxu0 0
  %1282 = vmatpush1.bf16.msra.mxu0 %v906
  %1283 = vmatprep.subr.bf16.mxu0 0
  %1284 = vmatpush1.bf16.msra.mxu0 %v907
  %1285 = vmatprep.subr.bf16.mxu0 0
  %1286 = vmatpush1.bf16.msra.mxu0 %v908
  %1287 = vmatprep.subr.bf16.mxu0 0
  %1288 = vmatpush1.bf16.msra.mxu0 %v909
  %1289 = vmatprep.mubr.bf16.mxu0 %v439
  %1290 = vmatmul.mubr.bf16.gmra.mrb[0].mxu0 %v438
  %v1291 = vpop.f32.mrb[0].mxu0
  %v1292 = vadd.f32 %v1203, %v1291
  %v1293 = vpop.f32.mrb[0].mxu0
  %v1294 = vpop.f32.mrb[0].mxu0
  %v1295 = vadd.f32 %v1206, %v1294
  %v1296 = vpop.f32.mrb[0].mxu0
  %1297 = vmatprep.mubr.bf16.mxu0 %v448
  %1298 = vmatmul.mubr.bf16.gmra.mrb[0].mxu0 %v447
  %v1299 = vpop.f32.mrb[0].mxu0
  %v1300 = vadd.f32 %v1211, %v1299
  %v1301 = vpop.f32.mrb[0].mxu0
  %v1302 = vpop.f32.mrb[0].mxu0
  %v1303 = vadd.f32 %v1214, %v1302
  %v1304 = vpop.f32.mrb[0].mxu0
  %1305 = vmatprep.mubr.bf16.mxu0 %v457
  %1306 = vmatmul.mubr.bf16.gmra.mrb[0].mxu0 %v456
  %v1307 = vpop.f32.mrb[0].mxu0
  %v1308 = vadd.f32 %v1219, %v1307
  %v1309 = vpop.f32.mrb[0].mxu0
  %v1310 = vpop.f32.mrb[0].mxu0
  %v1311 = vadd.f32 %v1222, %v1310
  %v1312 = vpop.f32.mrb[0].mxu0
  %1313 = vmatprep.mubr.bf16.mxu0 %v466
  %1314 = vmatmul.mubr.bf16.gmra.mrb[0].mxu0 %v465
  %v1315 = vpop.f32.mrb[0].mxu0
  %v1316 = vadd.f32 %v1227, %v1315
  %v1317 = vpop.f32.mrb[0].mxu0
  %v1318 = vpop.f32.mrb[0].mxu0
  %v1319 = vadd.f32 %v1230, %v1318
  %v1320 = vpop.f32.mrb[0].mxu0
  %1321 = vmatprep.mubr.bf16.mxu0 %v475
  %1322 = vmatmul.mubr.bf16.gmra.mrb[0].mxu0 %v474
  %v1323 = vpop.f32.mrb[0].mxu0
  %v1324 = vadd.f32 %v1235, %v1323
  %v1325 = vpop.f32.mrb[0].mxu0
  %v1326 = vpop.f32.mrb[0].mxu0
  %v1327 = vadd.f32 %v1238, %v1326
  %v1328 = vpop.f32.mrb[0].mxu0
  %1329 = vmatprep.mubr.bf16.mxu0 %v484
  %1330 = vmatmul.mubr.bf16.gmra.mrb[0].mxu0 %v483
  %v1331 = vpop.f32.mrb[0].mxu0
  %v1332 = vadd.f32 %v1243, %v1331
  %v1333 = vpop.f32.mrb[0].mxu0
  %v1334 = vpop.f32.mrb[0].mxu0
  %v1335 = vadd.f32 %v1246, %v1334
  %v1336 = vpop.f32.mrb[0].mxu0
  %1337 = vmatprep.mubr.bf16.mxu0 %v493
  %1338 = vmatmul.mubr.bf16.gmra.mrb[0].mxu0 %v492
  %v1339 = vpop.f32.mrb[0].mxu0
  %v1340 = vadd.f32 %v1251, %v1339
  %v1341 = vpop.f32.mrb[0].mxu0
  %v1342 = vpop.f32.mrb[0].mxu0
  %v1343 = vadd.f32 %v1254, %v1342
  %v1344 = vpop.f32.mrb[0].mxu0
  %1345 = vdwg.mxu0
  %1346 = vmatprep.subr.bf16.mxu0 0
  %1347 = vmatpush1.bf16.msra.mxu0 %v910
  %1348 = vmatprep.subr.bf16.mxu0 0
  %1349 = vmatpush1.bf16.msra.mxu0 %v911
  %1350 = vmatprep.subr.bf16.mxu0 0
  %1351 = vmatpush1.bf16.msra.mxu0 %v912
  %1352 = vmatprep.subr.bf16.mxu0 0
  %1353 = vmatpush1.bf16.msra.mxu0 %v913
  %1354 = vmatprep.subr.bf16.mxu0 0
  %1355 = vmatpush1.bf16.msra.mxu0 %v914
  %1356 = vmatprep.subr.bf16.mxu0 0
  %1357 = vmatpush1.bf16.msra.mxu0 %v915
  %1358 = vmatprep.subr.bf16.mxu0 0
  %1359 = vmatpush1.bf16.msra.mxu0 %v916
  %1360 = vmatprep.subr.bf16.mxu0 0
  %1361 = vmatpush1.bf16.msra.mxu0 %v917
  %1362 = vmatprep.subr.bf16.mxu0 0
  %1363 = vmatpush1.bf16.msra.mxu0 0
  %1364 = vmatprep.subr.bf16.mxu0 0
  %1365 = vmatpush1.bf16.msra.mxu0 0
  %1366 = vmatprep.subr.bf16.mxu0 0
  %1367 = vmatpush1.bf16.msra.mxu0 0
  %1368 = vmatprep.subr.bf16.mxu0 0
  %1369 = vmatpush1.bf16.msra.mxu0 0
  %1370 = vmatprep.subr.bf16.mxu0 0
  %1371 = vmatpush1.bf16.msra.mxu0 0
  %1372 = vmatprep.subr.bf16.mxu0 0
  %1373 = vmatpush1.bf16.msra.mxu0 0
  %1374 = vmatprep.subr.bf16.mxu0 0
  %1375 = vmatpush1.bf16.msra.mxu0 0
  %1376 = vmatprep.subr.bf16.mxu0 0
  %1377 = vmatpush1.bf16.msra.mxu0 0
  %1378 = vmatprep.mubr.bf16.mxu0 0
  %1379 = vmatmul.mubr.bf16.gmra.mrb[0].mxu0 %v440
  %v1380 = vpop.f32.mrb[0].mxu0
  %v1381 = vadd.f32 %v1292, %v1380
  %v1382 = vpop.f32.mrb[0].mxu0
  %v1383 = vpop.f32.mrb[0].mxu0
  %v1384 = vadd.f32 %v1295, %v1383
  %v1385 = vpop.f32.mrb[0].mxu0
  %1386 = vmatprep.mubr.bf16.mxu0 0
  %1387 = vmatmul.mubr.bf16.gmra.mrb[0].mxu0 %v449
  %v1388 = vpop.f32.mrb[0].mxu0
  %v1389 = vadd.f32 %v1300, %v1388
  %v1390 = vpop.f32.mrb[0].mxu0
  %v1391 = vpop.f32.mrb[0].mxu0
  %v1392 = vadd.f32 %v1303, %v1391
  %v1393 = vpop.f32.mrb[0].mxu0
  %1394 = vmatprep.mubr.bf16.mxu0 0
  %1395 = vmatmul.mubr.bf16.gmra.mrb[0].mxu0 %v458
  %v1396 = vpop.f32.mrb[0].mxu0
  %v1397 = vadd.f32 %v1308, %v1396
  %v1398 = vpop.f32.mrb[0].mxu0
  %v1399 = vpop.f32.mrb[0].mxu0
  %v1400 = vadd.f32 %v1311, %v1399
  %v1401 = vpop.f32.mrb[0].mxu0
  %1402 = vmatprep.mubr.bf16.mxu0 0
  %1403 = vmatmul.mubr.bf16.gmra.mrb[0].mxu0 %v467
  %v1404 = vpop.f32.mrb[0].mxu0
  %v1405 = vadd.f32 %v1316, %v1404
  %v1406 = vpop.f32.mrb[0].mxu0
  %v1407 = vpop.f32.mrb[0].mxu0
  %v1408 = vadd.f32 %v1319, %v1407
  %v1409 = vpop.f32.mrb[0].mxu0
  %1410 = vmatprep.mubr.bf16.mxu0 0
  %1411 = vmatmul.mubr.bf16.gmra.mrb[0].mxu0 %v476
  %v1412 = vpop.f32.mrb[0].mxu0
  %v1413 = vadd.f32 %v1324, %v1412
  %v1414 = vpop.f32.mrb[0].mxu0
  %v1415 = vpop.f32.mrb[0].mxu0
  %v1416 = vadd.f32 %v1327, %v1415
  %v1417 = vpop.f32.mrb[0].mxu0
  %1418 = vmatprep.mubr.bf16.mxu0 0
  %1419 = vmatmul.mubr.bf16.gmra.mrb[0].mxu0 %v485
  %v1420 = vpop.f32.mrb[0].mxu0
  %v1421 = vadd.f32 %v1332, %v1420
  %v1422 = vpop.f32.mrb[0].mxu0
  %v1423 = vpop.f32.mrb[0].mxu0
  %v1424 = vadd.f32 %v1335, %v1423
  %v1425 = vpop.f32.mrb[0].mxu0
  %1426 = vmatprep.mubr.bf16.mxu0 0
  %1427 = vmatmul.mubr.bf16.gmra.mrb[0].mxu0 %v494
  %v1428 = vpop.f32.mrb[0].mxu0
  %v1429 = vadd.f32 %v1340, %v1428
  %v1430 = vpop.f32.mrb[0].mxu0
  %v1431 = vpop.f32.mrb[0].mxu0
  %v1432 = vadd.f32 %v1343, %v1431
  %v1433 = vpop.f32.mrb[0].mxu0
  %1434 = vdwg.mxu0
  %v1435 = vmax.f32 %v1381, 0.0
  %v1436 = vmax.f32 %v1384, 0.0
  %v1437 = vmax.f32 %v1389, 0.0
  %v1438 = vmax.f32 %v1392, 0.0
  %v1439 = vmax.f32 %v1397, 0.0
  %v1440 = vmax.f32 %v1400, 0.0
  %v1441 = vmax.f32 %v1405, 0.0
  %v1442 = vmax.f32 %v1408, 0.0
  %v1443 = vmax.f32 %v1413, 0.0
  %v1444 = vmax.f32 %v1416, 0.0
  %v1445 = vmax.f32 %v1421, 0.0
  %v1446 = vmax.f32 %v1424, 0.0
  %v1447 = vmax.f32 %v1429, 0.0
  %v1448 = vmax.f32 %v1432, 0.0
  %v1449 = vpack.c.bf16 %v1436, %v1435
  %v1450 = vpack.c.bf16 %v1438, %v1437
  %v1451 = vpack.c.bf16 %v1440, %v1439
  %v1452 = vpack.c.bf16 %v1442, %v1441
  %v1453 = vpack.c.bf16 %v1444, %v1443
  %v1454 = vpack.c.bf16 %v1446, %v1445
  %v1455 = vpack.c.bf16 %v1448, %v1447
  %v1463 = vunpack.c.l.b16 %v1449
  %v1464 = vunpack.c.h.b16 %v1449
  %v1465 = vunpack.c.l.b16 %v1450
  %v1466 = vunpack.c.h.b16 %v1450
  %v1467 = vunpack.c.l.b16 %v1451
  %v1468 = vunpack.c.h.b16 %v1451
  %v1469 = vunpack.c.l.b16 %v1452
  %v1470 = vunpack.c.h.b16 %v1452
  %v1471 = vunpack.c.l.b16 %v1453
  %v1472 = vunpack.c.h.b16 %v1453
  %v1473 = vunpack.c.l.b16 %v1454
  %v1474 = vunpack.c.h.b16 %v1454
  %v1475 = vunpack.c.l.b16 %v1455
  %v1476 = vunpack.c.h.b16 %v1455
  %v1477 = vpack.c.b16 %v1463, %v1463
  %v1478 = vpack.c.b16 %v1464, %v1464
  %v1479 = vpack.c.b16 %v1465, %v1465
  %v1480 = vpack.c.b16 %v1466, %v1466
  %v1481 = vpack.c.b16 %v1467, %v1467
  %v1482 = vpack.c.b16 %v1468, %v1468
  %v1483 = vpack.c.b16 %v1469, %v1469
  %v1484 = vpack.c.b16 %v1470, %v1470
  %v1485 = vpack.c.b16 %v1471, %v1471
  %v1486 = vpack.c.b16 %v1472, %v1472
  %v1487 = vpack.c.b16 %v1473, %v1473
  %v1488 = vpack.c.b16 %v1474, %v1474
  %v1489 = vpack.c.b16 %v1475, %v1475
  %v1490 = vpack.c.b16 %v1476, %v1476
  %1505 = vst [vmem:[%s3] sm:$0xf] %v1477
  %1506 = vst [vmem:[%s3 + $0x4] sm:$0xf] %v1478
  %1507 = vst [vmem:[%s3 + $0x8] sm:$0xf] %v1479
  %1508 = vst [vmem:[%s3 + $0xc] sm:$0xf] %v1480
  %1509 = vst [vmem:[%s3 + $0x10] sm:$0xf] %v1481
  %1510 = vst [vmem:[%s3 + $0x14] sm:$0xf] %v1482
  %1511 = vst [vmem:[%s3 + $0x18] sm:$0xf] %v1483
  %1512 = vst [vmem:[%s3 + $0x1c] sm:$0xf] %v1484
  %1513 = vst [vmem:[%s3 + $0x20] sm:$0xf] %v1485
  %1514 = vst [vmem:[%s3 + $0x24] sm:$0xf] %v1486
  %1515 = vst [vmem:[%s3 + $0x28] sm:$0xf] %v1487
  %1516 = vst [vmem:[%s3 + $0x2c] sm:$0xf] %v1488
  %1517 = vst [vmem:[%s3 + $0x30] sm:$0xf] %v1489
  %1518 = vst [vmem:[%s3 + $0x34] sm:$0xf] %v1490
  // Predicated region
  $region14: #{mnist_classifier_forward.4} parent=0 // pred_check
    _
  $region15: #{mnist_classifier_forward.4} parent=0 // pred_check_branch
    %1520 = sbr.rel (0) target = $region17
  $region16: #{mnist_classifier_forward.4} parent=0 // pred_region
    _
  $region17: #{mnist_classifier_forward.4} parent=0 // pred_fallthru
    _
  // Predicated region
  $region18: #{mnist_classifier_forward.4} parent=0 // pred_check
    _
  $region19: #{mnist_classifier_forward.4} parent=0 // pred_check_branch
    %1522 = sbr.rel (0) target = $region21
  $region20: #{mnist_classifier_forward.4} parent=0 // pred_region
    _
  $region21: #{mnist_classifier_forward.4} parent=0 // pred_fallthru
    _

// kernel: mnist_classifier_forward.5
$region0: #{mnist_classifier_forward.5}
  #allocation0 [shape = 'u32[]', space=smem, size = 0x4, offset = 0x4, fixed_abs, tag = 'smem constant byte address 0x4 - core index']
  #allocation1 [shape = 'u32[144,128]{1,0:T(1,128)}', space=vmem, size = 0x12000, scoped, tag = 'internal scratch']
  %s0 = inlined_call_operand.vmem [shape: bf16[16,6272], index: 0, kind: input, shape index: {}]
  %s1 = inlined_call_operand.vmem [shape: bf16[6272,128], index: 1, kind: input, shape index: {}]
  %s2 = inlined_call_operand.vmem [shape: f32[1,128], index: 2, kind: input, shape index: {}]
  %s3 = inlined_call_operand.vmem [shape: bf16[128,128], index: 3, kind: input, shape index: {}]
  %s4 = inlined_call_operand.vmem [shape: f32[1,128], index: 4, kind: input, shape index: {}]
  %s5 = inlined_call_operand.vmem [shape: f32[16,128], index: 5, kind: output, shape index: {}]
  %s6 = sld [smem:[#allocation0]]
  $region30: #{mnist_classifier_forward.5} parent=0
    _
  %s8 = ssub.s32 1, %s6
  %s9 = scalar_select 0, %s8, %s6
  // Predicated region
  $region2: #{mnist_classifier_forward.5} parent=0 // pred_check
    _
  $region3: #{mnist_classifier_forward.5} parent=0 // pred_check_branch
    %11 = sbr.rel (0) target = $region5
  $region4: #{mnist_classifier_forward.5} parent=0 // pred_region
    _
  $region5: #{mnist_classifier_forward.5} parent=0 // pred_fallthru
    _
  // Predicated region
  $region6: #{mnist_classifier_forward.5} parent=0 // pred_check
    _
  $region7: #{mnist_classifier_forward.5} parent=0 // pred_check_branch
    %13 = sbr.rel (0) target = $region9
  $region8: #{mnist_classifier_forward.5} parent=0 // pred_region
    _
  $region9: #{mnist_classifier_forward.5} parent=0 // pred_fallthru
    _
  // Predicated region
  $region10: #{mnist_classifier_forward.5} parent=0 // pred_check
    _
  $region11: #{mnist_classifier_forward.5} parent=0 // pred_check_branch
    %15 = sbr.rel (0) target = $region13
  $region12: #{mnist_classifier_forward.5} parent=0 // pred_region
    _
  $region13: #{mnist_classifier_forward.5} parent=0 // pred_fallthru
    _
  // Predicated region
  $region14: #{mnist_classifier_forward.5} parent=0 // pred_check
    _
  $region15: #{mnist_classifier_forward.5} parent=0 // pred_check_branch
    %17 = sbr.rel (0) target = $region17
  $region16: #{mnist_classifier_forward.5} parent=0 // pred_region
    _
  $region17: #{mnist_classifier_forward.5} parent=0 // pred_fallthru
    _
  // Predicated region
  $region18: #{mnist_classifier_forward.5} parent=0 // pred_check
    _
  $region19: #{mnist_classifier_forward.5} parent=0 // pred_check_branch
    %19 = sbr.rel (0) target = $region21
  $region20: #{mnist_classifier_forward.5} parent=0 // pred_region
    _
  $region21: #{mnist_classifier_forward.5} parent=0 // pred_fallthru
    _
  %v21 = vld [vmem:[%s0] sm:$0xff]
  %v22 = vld [vmem:[%s0 + $0x8] sm:$0xff]
  %v23 = vld [vmem:[%s0 + $0x10] sm:$0xff]
  %v24 = vld [vmem:[%s0 + $0x18] sm:$0xff]
  %v25 = vld [vmem:[%s0 + $0x20] sm:$0xff]
  %v26 = vld [vmem:[%s0 + $0x28] sm:$0xff]
  %v27 = vld [vmem:[%s0 + $0x30] sm:$0xff]
  %v28 = vld [vmem:[%s0 + $0x38] sm:$0xff]
  %v29 = vld [vmem:[%s0 + $0x40] sm:$0xff]
  %v30 = vld [vmem:[%s0 + $0x48] sm:$0xff]
  %v31 = vld [vmem:[%s0 + $0x50] sm:$0xff]
  %v32 = vld [vmem:[%s0 + $0x58] sm:$0xff]
  %v33 = vld [vmem:[%s0 + $0x60] sm:$0xff]
  %v34 = vld [vmem:[%s0 + $0x68] sm:$0xff]
  %v35 = vld [vmem:[%s0 + $0x70] sm:$0xff]
  %v36 = vld [vmem:[%s0 + $0x78] sm:$0xff]
  %v37 = vld [vmem:[%s0 + $0x80] sm:$0xff]
  %v38 = vld [vmem:[%s0 + $0x88] sm:$0xff]
  %v39 = vld [vmem:[%s0 + $0x90] sm:$0xff]
  %v40 = vld [vmem:[%s0 + $0x98] sm:$0xff]
  %v41 = vld [vmem:[%s0 + $0xa0] sm:$0xff]
  %v42 = vld [vmem:[%s0 + $0xa8] sm:$0xff]
  %v43 = vld [vmem:[%s0 + $0xb0] sm:$0xff]
  %v44 = vld [vmem:[%s0 + $0xb8] sm:$0xff]
  %v45 = vld [vmem:[%s0 + $0xc0] sm:$0xf]
  %v46 = vld [vmem:[%s0 + $0xc4] sm:$0xff]
  %v47 = vld [vmem:[%s0 + $0xcc] sm:$0xff]
  %v48 = vld [vmem:[%s0 + $0xd4] sm:$0xff]
  %v49 = vld [vmem:[%s0 + $0xdc] sm:$0xff]
  %v50 = vld [vmem:[%s0 + $0xe4] sm:$0xff]
  %v51 = vld [vmem:[%s0 + $0xec] sm:$0xff]
  %v52 = vld [vmem:[%s0 + $0xf4] sm:$0xff]
  %v53 = vld [vmem:[%s0 + $0xfc] sm:$0xff]
  %v54 = vld [vmem:[%s0 + $0x104] sm:$0xff]
  %v55 = vld [vmem:[%s0 + $0x10c] sm:$0xff]
  %v56 = vld [vmem:[%s0 + $0x114] sm:$0xff]
  %v57 = vld [vmem:[%s0 + $0x11c] sm:$0xff]
  %v58 = vld [vmem:[%s0 + $0x124] sm:$0xff]
  %v59 = vld [vmem:[%s0 + $0x12c] sm:$0xff]
  %v60 = vld [vmem:[%s0 + $0x134] sm:$0xff]
  %v61 = vld [vmem:[%s0 + $0x13c] sm:$0xff]
  %v62 = vld [vmem:[%s0 + $0x144] sm:$0xff]
  %v63 = vld [vmem:[%s0 + $0x14c] sm:$0xff]
  %v64 = vld [vmem:[%s0 + $0x154] sm:$0xff]
  %v65 = vld [vmem:[%s0 + $0x15c] sm:$0xff]
  %v66 = vld [vmem:[%s0 + $0x164] sm:$0xff]
  %v67 = vld [vmem:[%s0 + $0x16c] sm:$0xff]
  %v68 = vld [vmem:[%s0 + $0x174] sm:$0xff]
  %v69 = vld [vmem:[%s0 + $0x17c] sm:$0xff]
  %v70 = vld [vmem:[%s0 + $0x184] sm:$0xf]
  %v71 = vld [vmem:[%s1] sm:$0xf]
  %v72 = vld [vmem:[%s1 + $0x4] sm:$0xf]
  %v73 = vld [vmem:[%s1 + $0x8] sm:$0xf]
  %v74 = vld [vmem:[%s1 + $0xc] sm:$0xf]
  %v75 = vld [vmem:[%s1 + $0x10] sm:$0xf]
  %v76 = vld [vmem:[%s1 + $0x14] sm:$0xf]
  %v77 = vld [vmem:[%s1 + $0x18] sm:$0xf]
  %v78 = vld [vmem:[%s1 + $0x1c] sm:$0xf]
  %v79 = vld [vmem:[%s1 + $0x20] sm:$0xf]
  %v80 = vld [vmem:[%s1 + $0x24] sm:$0xf]
  %v81 = vld [vmem:[%s1 + $0x28] sm:$0xf]
  %v82 = vld [vmem:[%s1 + $0x2c] sm:$0xf]
  %v83 = vld [vmem:[%s1 + $0x30] sm:$0xf]
  %v84 = vld [vmem:[%s1 + $0x34] sm:$0xf]
  %v85 = vld [vmem:[%s1 + $0x38] sm:$0xf]
  %v86 = vld [vmem:[%s1 + $0x3c] sm:$0xf]
  %v87 = vld [vmem:[%s1 + $0x40] sm:$0xf]
  %v88 = vld [vmem:[%s1 + $0x44] sm:$0xf]
  %v89 = vld [vmem:[%s1 + $0x48] sm:$0xf]
  %v90 = vld [vmem:[%s1 + $0x4c] sm:$0xf]
  %v91 = vld [vmem:[%s1 + $0x50] sm:$0xf]
  %v92 = vld [vmem:[%s1 + $0x54] sm:$0xf]
  %v93 = vld [vmem:[%s1 + $0x58] sm:$0xf]
  %v94 = vld [vmem:[%s1 + $0x5c] sm:$0xf]
  %v95 = vld [vmem:[%s1 + $0x60] sm:$0xf]
  %v96 = vld [vmem:[%s1 + $0x64] sm:$0xf]
  %v97 = vld [vmem:[%s1 + $0x68] sm:$0xf]
  %v98 = vld [vmem:[%s1 + $0x6c] sm:$0xf]
  %v99 = vld [vmem:[%s1 + $0x70] sm:$0xf]
  %v100 = vld [vmem:[%s1 + $0x74] sm:$0xf]
  %v101 = vld [vmem:[%s1 + $0x78] sm:$0xf]
  %v102 = vld [vmem:[%s1 + $0x7c] sm:$0xf]
  %v103 = vld [vmem:[%s1 + $0x80] sm:$0xf]
  %v104 = vld [vmem:[%s1 + $0x84] sm:$0xf]
  %v105 = vld [vmem:[%s1 + $0x88] sm:$0xf]
  %v106 = vld [vmem:[%s1 + $0x8c] sm:$0xf]
  %v107 = vld [vmem:[%s1 + $0x90] sm:$0xf]
  %v108 = vld [vmem:[%s1 + $0x94] sm:$0xf]
  %v109 = vld [vmem:[%s1 + $0x98] sm:$0xf]
  %v110 = vld [vmem:[%s1 + $0x9c] sm:$0xf]
  %v111 = vld [vmem:[%s1 + $0xa0] sm:$0xf]
  %v112 = vld [vmem:[%s1 + $0xa4] sm:$0xf]
  %v113 = vld [vmem:[%s1 + $0xa8] sm:$0xf]
  %v114 = vld [vmem:[%s1 + $0xac] sm:$0xf]
  %v115 = vld [vmem:[%s1 + $0xb0] sm:$0xf]
  %v116 = vld [vmem:[%s1 + $0xb4] sm:$0xf]
  %v117 = vld [vmem:[%s1 + $0xb8] sm:$0xf]
  %v118 = vld [vmem:[%s1 + $0xbc] sm:$0xf]
  %v119 = vld [vmem:[%s1 + $0xc0] sm:$0xf]
  %v120 = vld [vmem:[%s1 + $0xc4] sm:$0xf]
  %v121 = vld [vmem:[%s1 + $0xc8] sm:$0xf]
  %v122 = vld [vmem:[%s1 + $0xcc] sm:$0xf]
  %v123 = vld [vmem:[%s1 + $0xd0] sm:$0xf]
  %v124 = vld [vmem:[%s1 + $0xd4] sm:$0xf]
  %v125 = vld [vmem:[%s1 + $0xd8] sm:$0xf]
  %v126 = vld [vmem:[%s1 + $0xdc] sm:$0xf]
  %v127 = vld [vmem:[%s1 + $0xe0] sm:$0xf]
  %v128 = vld [vmem:[%s1 + $0xe4] sm:$0xf]
  %v129 = vld [vmem:[%s1 + $0xe8] sm:$0xf]
  %v130 = vld [vmem:[%s1 + $0xec] sm:$0xf]
  %v131 = vld [vmem:[%s1 + $0xf0] sm:$0xf]
  %v132 = vld [vmem:[%s1 + $0xf4] sm:$0xf]
  %v133 = vld [vmem:[%s1 + $0xf8] sm:$0xf]
  %v134 = vld [vmem:[%s1 + $0xfc] sm:$0xf]
  %v135 = vld [vmem:[%s1 + $0x100] sm:$0xf]
  %v136 = vld [vmem:[%s1 + $0x104] sm:$0xf]
  %v137 = vld [vmem:[%s1 + $0x108] sm:$0xf]
  %v138 = vld [vmem:[%s1 + $0x10c] sm:$0xf]
  %v139 = vld [vmem:[%s1 + $0x110] sm:$0xf]
  %v140 = vld [vmem:[%s1 + $0x114] sm:$0xf]
  %v141 = vld [vmem:[%s1 + $0x118] sm:$0xf]
  %v142 = vld [vmem:[%s1 + $0x11c] sm:$0xf]
  %v143 = vld [vmem:[%s1 + $0x120] sm:$0xf]
  %v144 = vld [vmem:[%s1 + $0x124] sm:$0xf]
  %v145 = vld [vmem:[%s1 + $0x128] sm:$0xf]
  %v146 = vld [vmem:[%s1 + $0x12c] sm:$0xf]
  %v147 = vld [vmem:[%s1 + $0x130] sm:$0xf]
  %v148 = vld [vmem:[%s1 + $0x134] sm:$0xf]
  %v149 = vld [vmem:[%s1 + $0x138] sm:$0xf]
  %v150 = vld [vmem:[%s1 + $0x13c] sm:$0xf]
  %v151 = vld [vmem:[%s1 + $0x140] sm:$0xf]
  %v152 = vld [vmem:[%s1 + $0x144] sm:$0xf]
  %v153 = vld [vmem:[%s1 + $0x148] sm:$0xf]
  %v154 = vld [vmem:[%s1 + $0x14c] sm:$0xf]
  %v155 = vld [vmem:[%s1 + $0x150] sm:$0xf]
  %v156 = vld [vmem:[%s1 + $0x154] sm:$0xf]
  %v157 = vld [vmem:[%s1 + $0x158] sm:$0xf]
  %v158 = vld [vmem:[%s1 + $0x15c] sm:$0xf]
  %v159 = vld [vmem:[%s1 + $0x160] sm:$0xf]
  %v160 = vld [vmem:[%s1 + $0x164] sm:$0xf]
  %v161 = vld [vmem:[%s1 + $0x168] sm:$0xf]
  %v162 = vld [vmem:[%s1 + $0x16c] sm:$0xf]
  %v163 = vld [vmem:[%s1 + $0x170] sm:$0xf]
  %v164 = vld [vmem:[%s1 + $0x174] sm:$0xf]
  %v165 = vld [vmem:[%s1 + $0x178] sm:$0xf]
  %v166 = vld [vmem:[%s1 + $0x17c] sm:$0xf]
  %v167 = vld [vmem:[%s1 + $0x180] sm:$0xf]
  %v168 = vld [vmem:[%s1 + $0x184] sm:$0xf]
  %v169 = vld [vmem:[%s1 + $0x188] sm:$0xf]
  %v170 = vld [vmem:[%s1 + $0x18c] sm:$0xf]
  %v171 = vld [vmem:[%s1 + $0x190] sm:$0xf]
  %v172 = vld [vmem:[%s1 + $0x194] sm:$0xf]
  %v173 = vld [vmem:[%s1 + $0x198] sm:$0xf]
  %v174 = vld [vmem:[%s1 + $0x19c] sm:$0xf]
  %v175 = vld [vmem:[%s1 + $0x1a0] sm:$0xf]
  %v176 = vld [vmem:[%s1 + $0x1a4] sm:$0xf]
  %v177 = vld [vmem:[%s1 + $0x1a8] sm:$0xf]
  %v178 = vld [vmem:[%s1 + $0x1ac] sm:$0xf]
  %v179 = vld [vmem:[%s1 + $0x1b0] sm:$0xf]
  %v180 = vld [vmem:[%s1 + $0x1b4] sm:$0xf]
  %v181 = vld [vmem:[%s1 + $0x1b8] sm:$0xf]
  %v182 = vld [vmem:[%s1 + $0x1bc] sm:$0xf]
  %v183 = vld [vmem:[%s1 + $0x1c0] sm:$0xf]
  %v184 = vld [vmem:[%s1 + $0x1c4] sm:$0xf]
  %v185 = vld [vmem:[%s1 + $0x1c8] sm:$0xf]
  %v186 = vld [vmem:[%s1 + $0x1cc] sm:$0xf]
  %v187 = vld [vmem:[%s1 + $0x1d0] sm:$0xf]
  %v188 = vld [vmem:[%s1 + $0x1d4] sm:$0xf]
  %v189 = vld [vmem:[%s1 + $0x1d8] sm:$0xf]
  %v190 = vld [vmem:[%s1 + $0x1dc] sm:$0xf]
  %v191 = vld [vmem:[%s1 + $0x1e0] sm:$0xf]
  %v192 = vld [vmem:[%s1 + $0x1e4] sm:$0xf]
  %v193 = vld [vmem:[%s1 + $0x1e8] sm:$0xf]
  %v194 = vld [vmem:[%s1 + $0x1ec] sm:$0xf]
  %v195 = vld [vmem:[%s1 + $0x1f0] sm:$0xf]
  %v196 = vld [vmem:[%s1 + $0x1f4] sm:$0xf]
  %v197 = vld [vmem:[%s1 + $0x1f8] sm:$0xf]
  %v198 = vld [vmem:[%s1 + $0x1fc] sm:$0xf]
  %v199 = vld [vmem:[%s1 + $0x200] sm:$0xf]
  %v200 = vld [vmem:[%s1 + $0x204] sm:$0xf]
  %v201 = vld [vmem:[%s1 + $0x208] sm:$0xf]
  %v202 = vld [vmem:[%s1 + $0x20c] sm:$0xf]
  %v203 = vld [vmem:[%s1 + $0x210] sm:$0xf]
  %v204 = vld [vmem:[%s1 + $0x214] sm:$0xf]
  %v205 = vld [vmem:[%s1 + $0x218] sm:$0xf]
  %v206 = vld [vmem:[%s1 + $0x21c] sm:$0xf]
  %v207 = vld [vmem:[%s1 + $0x220] sm:$0xf]
  %v208 = vld [vmem:[%s1 + $0x224] sm:$0xf]
  %v209 = vld [vmem:[%s1 + $0x228] sm:$0xf]
  %v210 = vld [vmem:[%s1 + $0x22c] sm:$0xf]
  %v211 = vld [vmem:[%s1 + $0x230] sm:$0xf]
  %v212 = vld [vmem:[%s1 + $0x234] sm:$0xf]
  %v213 = vld [vmem:[%s1 + $0x238] sm:$0xf]
  %v214 = vld [vmem:[%s1 + $0x23c] sm:$0xf]
  %v215 = vld [vmem:[%s1 + $0x240] sm:$0xf]
  %v216 = vld [vmem:[%s1 + $0x244] sm:$0xf]
  %v217 = vld [vmem:[%s1 + $0x248] sm:$0xf]
  %v218 = vld [vmem:[%s1 + $0x24c] sm:$0xf]
  %v219 = vld [vmem:[%s1 + $0x250] sm:$0xf]
  %v220 = vld [vmem:[%s1 + $0x254] sm:$0xf]
  %v221 = vld [vmem:[%s1 + $0x258] sm:$0xf]
  %v222 = vld [vmem:[%s1 + $0x25c] sm:$0xf]
  %v223 = vld [vmem:[%s1 + $0x260] sm:$0xf]
  %v224 = vld [vmem:[%s1 + $0x264] sm:$0xf]
  %v225 = vld [vmem:[%s1 + $0x268] sm:$0xf]
  %v226 = vld [vmem:[%s1 + $0x26c] sm:$0xf]
  %v227 = vld [vmem:[%s1 + $0x270] sm:$0xf]
  %v228 = vld [vmem:[%s1 + $0x274] sm:$0xf]
  %v229 = vld [vmem:[%s1 + $0x278] sm:$0xf]
  %v230 = vld [vmem:[%s1 + $0x27c] sm:$0xf]
  %v231 = vld [vmem:[%s1 + $0x280] sm:$0xf]
  %v232 = vld [vmem:[%s1 + $0x284] sm:$0xf]
  %v233 = vld [vmem:[%s1 + $0x288] sm:$0xf]
  %v234 = vld [vmem:[%s1 + $0x28c] sm:$0xf]
  %v235 = vld [vmem:[%s1 + $0x290] sm:$0xf]
  %v236 = vld [vmem:[%s1 + $0x294] sm:$0xf]
  %v237 = vld [vmem:[%s1 + $0x298] sm:$0xf]
  %v238 = vld [vmem:[%s1 + $0x29c] sm:$0xf]
  %v239 = vld [vmem:[%s1 + $0x2a0] sm:$0xf]
  %v240 = vld [vmem:[%s1 + $0x2a4] sm:$0xf]
  %v241 = vld [vmem:[%s1 + $0x2a8] sm:$0xf]
  %v242 = vld [vmem:[%s1 + $0x2ac] sm:$0xf]
  %v243 = vld [vmem:[%s1 + $0x2b0] sm:$0xf]
  %v244 = vld [vmem:[%s1 + $0x2b4] sm:$0xf]
  %v245 = vld [vmem:[%s1 + $0x2b8] sm:$0xf]
  %v246 = vld [vmem:[%s1 + $0x2bc] sm:$0xf]
  %v247 = vld [vmem:[%s1 + $0x2c0] sm:$0xf]
  %v248 = vld [vmem:[%s1 + $0x2c4] sm:$0xf]
  %v249 = vld [vmem:[%s1 + $0x2c8] sm:$0xf]
  %v250 = vld [vmem:[%s1 + $0x2cc] sm:$0xf]
  %v251 = vld [vmem:[%s1 + $0x2d0] sm:$0xf]
  %v252 = vld [vmem:[%s1 + $0x2d4] sm:$0xf]
  %v253 = vld [vmem:[%s1 + $0x2d8] sm:$0xf]
  %v254 = vld [vmem:[%s1 + $0x2dc] sm:$0xf]
  %v255 = vld [vmem:[%s1 + $0x2e0] sm:$0xf]
  %v256 = vld [vmem:[%s1 + $0x2e4] sm:$0xf]
  %v257 = vld [vmem:[%s1 + $0x2e8] sm:$0xf]
  %v258 = vld [vmem:[%s1 + $0x2ec] sm:$0xf]
  %v259 = vld [vmem:[%s1 + $0x2f0] sm:$0xf]
  %v260 = vld [vmem:[%s1 + $0x2f4] sm:$0xf]
  %v261 = vld [vmem:[%s1 + $0x2f8] sm:$0xf]
  %v262 = vld [vmem:[%s1 + $0x2fc] sm:$0xf]
  %v263 = vld [vmem:[%s1 + $0x300] sm:$0xf]
  %v264 = vld [vmem:[%s1 + $0x304] sm:$0xf]
  %v265 = vld [vmem:[%s1 + $0x308] sm:$0xf]
  %v266 = vld [vmem:[%s1 + $0x30c] sm:$0xf]
  %v267 = vld [vmem:[%s1 + $0x310] sm:$0xf]
  %v268 = vld [vmem:[%s1 + $0x314] sm:$0xf]
  %v269 = vld [vmem:[%s1 + $0x318] sm:$0xf]
  %v270 = vld [vmem:[%s1 + $0x31c] sm:$0xf]
  %v271 = vld [vmem:[%s1 + $0x320] sm:$0xf]
  %v272 = vld [vmem:[%s1 + $0x324] sm:$0xf]
  %v273 = vld [vmem:[%s1 + $0x328] sm:$0xf]
  %v274 = vld [vmem:[%s1 + $0x32c] sm:$0xf]
  %v275 = vld [vmem:[%s1 + $0x330] sm:$0xf]
  %v276 = vld [vmem:[%s1 + $0x334] sm:$0xf]
  %v277 = vld [vmem:[%s1 + $0x338] sm:$0xf]
  %v278 = vld [vmem:[%s1 + $0x33c] sm:$0xf]
  %v279 = vld [vmem:[%s1 + $0x340] sm:$0xf]
  %v280 = vld [vmem:[%s1 + $0x344] sm:$0xf]
  %v281 = vld [vmem:[%s1 + $0x348] sm:$0xf]
  %v282 = vld [vmem:[%s1 + $0x34c] sm:$0xf]
  %v283 = vld [vmem:[%s1 + $0x350] sm:$0xf]
  %v284 = vld [vmem:[%s1 + $0x354] sm:$0xf]
  %v285 = vld [vmem:[%s1 + $0x358] sm:$0xf]
  %v286 = vld [vmem:[%s1 + $0x35c] sm:$0xf]
  %v287 = vld [vmem:[%s1 + $0x360] sm:$0xf]
  %v288 = vld [vmem:[%s1 + $0x364] sm:$0xf]
  %v289 = vld [vmem:[%s1 + $0x368] sm:$0xf]
  %v290 = vld [vmem:[%s1 + $0x36c] sm:$0xf]
  %v291 = vld [vmem:[%s1 + $0x370] sm:$0xf]
  %v292 = vld [vmem:[%s1 + $0x374] sm:$0xf]
  %v293 = vld [vmem:[%s1 + $0x378] sm:$0xf]
  %v294 = vld [vmem:[%s1 + $0x37c] sm:$0xf]
  %v295 = vld [vmem:[%s1 + $0x380] sm:$0xf]
  %v296 = vld [vmem:[%s1 + $0x384] sm:$0xf]
  %v297 = vld [vmem:[%s1 + $0x388] sm:$0xf]
  %v298 = vld [vmem:[%s1 + $0x38c] sm:$0xf]
  %v299 = vld [vmem:[%s1 + $0x390] sm:$0xf]
  %v300 = vld [vmem:[%s1 + $0x394] sm:$0xf]
  %v301 = vld [vmem:[%s1 + $0x398] sm:$0xf]
  %v302 = vld [vmem:[%s1 + $0x39c] sm:$0xf]
  %v303 = vld [vmem:[%s1 + $0x3a0] sm:$0xf]
  %v304 = vld [vmem:[%s1 + $0x3a4] sm:$0xf]
  %v305 = vld [vmem:[%s1 + $0x3a8] sm:$0xf]
  %v306 = vld [vmem:[%s1 + $0x3ac] sm:$0xf]
  %v307 = vld [vmem:[%s1 + $0x3b0] sm:$0xf]
  %v308 = vld [vmem:[%s1 + $0x3b4] sm:$0xf]
  %v309 = vld [vmem:[%s1 + $0x3b8] sm:$0xf]
  %v310 = vld [vmem:[%s1 + $0x3bc] sm:$0xf]
  %v311 = vld [vmem:[%s1 + $0x3c0] sm:$0xf]
  %v312 = vld [vmem:[%s1 + $0x3c4] sm:$0xf]
  %v313 = vld [vmem:[%s1 + $0x3c8] sm:$0xf]
  %v314 = vld [vmem:[%s1 + $0x3cc] sm:$0xf]
  %v315 = vld [vmem:[%s1 + $0x3d0] sm:$0xf]
  %v316 = vld [vmem:[%s1 + $0x3d4] sm:$0xf]
  %v317 = vld [vmem:[%s1 + $0x3d8] sm:$0xf]
  %v318 = vld [vmem:[%s1 + $0x3dc] sm:$0xf]
  %v319 = vld [vmem:[%s1 + $0x3e0] sm:$0xf]
  %v320 = vld [vmem:[%s1 + $0x3e4] sm:$0xf]
  %v321 = vld [vmem:[%s1 + $0x3e8] sm:$0xf]
  %v322 = vld [vmem:[%s1 + $0x3ec] sm:$0xf]
  %v323 = vld [vmem:[%s1 + $0x3f0] sm:$0xf]
  %v324 = vld [vmem:[%s1 + $0x3f4] sm:$0xf]
  %v325 = vld [vmem:[%s1 + $0x3f8] sm:$0xf]
  %v326 = vld [vmem:[%s1 + $0x3fc] sm:$0xf]
  %v327 = vld [vmem:[%s1 + $0x400] sm:$0xf]
  %v328 = vld [vmem:[%s1 + $0x404] sm:$0xf]
  %v329 = vld [vmem:[%s1 + $0x408] sm:$0xf]
  %v330 = vld [vmem:[%s1 + $0x40c] sm:$0xf]
  %v331 = vld [vmem:[%s1 + $0x410] sm:$0xf]
  %v332 = vld [vmem:[%s1 + $0x414] sm:$0xf]
  %v333 = vld [vmem:[%s1 + $0x418] sm:$0xf]
  %v334 = vld [vmem:[%s1 + $0x41c] sm:$0xf]
  %v335 = vld [vmem:[%s1 + $0x420] sm:$0xf]
  %v336 = vld [vmem:[%s1 + $0x424] sm:$0xf]
  %v337 = vld [vmem:[%s1 + $0x428] sm:$0xf]
  %v338 = vld [vmem:[%s1 + $0x42c] sm:$0xf]
  %v339 = vld [vmem:[%s1 + $0x430] sm:$0xf]
  %v340 = vld [vmem:[%s1 + $0x434] sm:$0xf]
  %v341 = vld [vmem:[%s1 + $0x438] sm:$0xf]
  %v342 = vld [vmem:[%s1 + $0x43c] sm:$0xf]
  %v343 = vld [vmem:[%s1 + $0x440] sm:$0xf]
  %v344 = vld [vmem:[%s1 + $0x444] sm:$0xf]
  %v345 = vld [vmem:[%s1 + $0x448] sm:$0xf]
  %v346 = vld [vmem:[%s1 + $0x44c] sm:$0xf]
  %v347 = vld [vmem:[%s1 + $0x450] sm:$0xf]
  %v348 = vld [vmem:[%s1 + $0x454] sm:$0xf]
  %v349 = vld [vmem:[%s1 + $0x458] sm:$0xf]
  %v350 = vld [vmem:[%s1 + $0x45c] sm:$0xf]
  %v351 = vld [vmem:[%s1 + $0x460] sm:$0xf]
  %v352 = vld [vmem:[%s1 + $0x464] sm:$0xf]
  %v353 = vld [vmem:[%s1 + $0x468] sm:$0xf]
  %v354 = vld [vmem:[%s1 + $0x46c] sm:$0xf]
  %v355 = vld [vmem:[%s1 + $0x470] sm:$0xf]
  %v356 = vld [vmem:[%s1 + $0x474] sm:$0xf]
  %v357 = vld [vmem:[%s1 + $0x478] sm:$0xf]
  %v358 = vld [vmem:[%s1 + $0x47c] sm:$0xf]
  %v359 = vld [vmem:[%s1 + $0x480] sm:$0xf]
  %v360 = vld [vmem:[%s1 + $0x484] sm:$0xf]
  %v361 = vld [vmem:[%s1 + $0x488] sm:$0xf]
  %v362 = vld [vmem:[%s1 + $0x48c] sm:$0xf]
  %v363 = vld [vmem:[%s1 + $0x490] sm:$0xf]
  %v364 = vld [vmem:[%s1 + $0x494] sm:$0xf]
  %v365 = vld [vmem:[%s1 + $0x498] sm:$0xf]
  %v366 = vld [vmem:[%s1 + $0x49c] sm:$0xf]
  %v367 = vld [vmem:[%s1 + $0x4a0] sm:$0xf]
  %v368 = vld [vmem:[%s1 + $0x4a4] sm:$0xf]
  %v369 = vld [vmem:[%s1 + $0x4a8] sm:$0xf]
  %v370 = vld [vmem:[%s1 + $0x4ac] sm:$0xf]
  %v371 = vld [vmem:[%s1 + $0x4b0] sm:$0xf]
  %v372 = vld [vmem:[%s1 + $0x4b4] sm:$0xf]
  %v373 = vld [vmem:[%s1 + $0x4b8] sm:$0xf]
  %v374 = vld [vmem:[%s1 + $0x4bc] sm:$0xf]
  %v375 = vld [vmem:[%s1 + $0x4c0] sm:$0xf]
  %v376 = vld [vmem:[%s1 + $0x4c4] sm:$0xf]
  %v377 = vld [vmem:[%s1 + $0x4c8] sm:$0xf]
  %v378 = vld [vmem:[%s1 + $0x4cc] sm:$0xf]
  %v379 = vld [vmem:[%s1 + $0x4d0] sm:$0xf]
  %v380 = vld [vmem:[%s1 + $0x4d4] sm:$0xf]
  %v381 = vld [vmem:[%s1 + $0x4d8] sm:$0xf]
  %v382 = vld [vmem:[%s1 + $0x4dc] sm:$0xf]
  %v383 = vld [vmem:[%s1 + $0x4e0] sm:$0xf]
  %v384 = vld [vmem:[%s1 + $0x4e4] sm:$0xf]
  %v385 = vld [vmem:[%s1 + $0x4e8] sm:$0xf]
  %v386 = vld [vmem:[%s1 + $0x4ec] sm:$0xf]
  %v387 = vld [vmem:[%s1 + $0x4f0] sm:$0xf]
  %v388 = vld [vmem:[%s1 + $0x4f4] sm:$0xf]
  %v389 = vld [vmem:[%s1 + $0x4f8] sm:$0xf]
  %v390 = vld [vmem:[%s1 + $0x4fc] sm:$0xf]
  %v391 = vld [vmem:[%s1 + $0x500] sm:$0xf]
  %v392 = vld [vmem:[%s1 + $0x504] sm:$0xf]
  %v393 = vld [vmem:[%s1 + $0x508] sm:$0xf]
  %v394 = vld [vmem:[%s1 + $0x50c] sm:$0xf]
  %v395 = vld [vmem:[%s1 + $0x510] sm:$0xf]
  %v396 = vld [vmem:[%s1 + $0x514] sm:$0xf]
  %v397 = vld [vmem:[%s1 + $0x518] sm:$0xf]
  %v398 = vld [vmem:[%s1 + $0x51c] sm:$0xf]
  %v399 = vld [vmem:[%s1 + $0x520] sm:$0xf]
  %v400 = vld [vmem:[%s1 + $0x524] sm:$0xf]
  %v401 = vld [vmem:[%s1 + $0x528] sm:$0xf]
  %v402 = vld [vmem:[%s1 + $0x52c] sm:$0xf]
  %v403 = vld [vmem:[%s1 + $0x530] sm:$0xf]
  %v404 = vld [vmem:[%s1 + $0x534] sm:$0xf]
  %v405 = vld [vmem:[%s1 + $0x538] sm:$0xf]
  %v406 = vld [vmem:[%s1 + $0x53c] sm:$0xf]
  %v407 = vld [vmem:[%s1 + $0x540] sm:$0xf]
  %v408 = vld [vmem:[%s1 + $0x544] sm:$0xf]
  %v409 = vld [vmem:[%s1 + $0x548] sm:$0xf]
  %v410 = vld [vmem:[%s1 + $0x54c] sm:$0xf]
  %v411 = vld [vmem:[%s1 + $0x550] sm:$0xf]
  %v412 = vld [vmem:[%s1 + $0x554] sm:$0xf]
  %v413 = vld [vmem:[%s1 + $0x558] sm:$0xf]
  %v414 = vld [vmem:[%s1 + $0x55c] sm:$0xf]
  %v415 = vld [vmem:[%s1 + $0x560] sm:$0xf]
  %v416 = vld [vmem:[%s1 + $0x564] sm:$0xf]
  %v417 = vld [vmem:[%s1 + $0x568] sm:$0xf]
  %v418 = vld [vmem:[%s1 + $0x56c] sm:$0xf]
  %v419 = vld [vmem:[%s1 + $0x570] sm:$0xf]
  %v420 = vld [vmem:[%s1 + $0x574] sm:$0xf]
  %v421 = vld [vmem:[%s1 + $0x578] sm:$0xf]
  %v422 = vld [vmem:[%s1 + $0x57c] sm:$0xf]
  %v423 = vld [vmem:[%s1 + $0x580] sm:$0xf]
  %v424 = vld [vmem:[%s1 + $0x584] sm:$0xf]
  %v425 = vld [vmem:[%s1 + $0x588] sm:$0xf]
  %v426 = vld [vmem:[%s1 + $0x58c] sm:$0xf]
  %v427 = vld [vmem:[%s1 + $0x590] sm:$0xf]
  %v428 = vld [vmem:[%s1 + $0x594] sm:$0xf]
  %v429 = vld [vmem:[%s1 + $0x598] sm:$0xf]
  %v430 = vld [vmem:[%s1 + $0x59c] sm:$0xf]
  %v431 = vld [vmem:[%s1 + $0x5a0] sm:$0xf]
  %v432 = vld [vmem:[%s1 + $0x5a4] sm:$0xf]
  %v433 = vld [vmem:[%s1 + $0x5a8] sm:$0xf]
  %v434 = vld [vmem:[%s1 + $0x5ac] sm:$0xf]
  %v435 = vld [vmem:[%s1 + $0x5b0] sm:$0xf]
  %v436 = vld [vmem:[%s1 + $0x5b4] sm:$0xf]
  %v437 = vld [vmem:[%s1 + $0x5b8] sm:$0xf]
  %v438 = vld [vmem:[%s1 + $0x5bc] sm:$0xf]
  %v439 = vld [vmem:[%s1 + $0x5c0] sm:$0xf]
  %v440 = vld [vmem:[%s1 + $0x5c4] sm:$0xf]
  %v441 = vld [vmem:[%s1 + $0x5c8] sm:$0xf]
  %v442 = vld [vmem:[%s1 + $0x5cc] sm:$0xf]
  %v443 = vld [vmem:[%s1 + $0x5d0] sm:$0xf]
  %v444 = vld [vmem:[%s1 + $0x5d4] sm:$0xf]
  %v445 = vld [vmem:[%s1 + $0x5d8] sm:$0xf]
  %v446 = vld [vmem:[%s1 + $0x5dc] sm:$0xf]
  %v447 = vld [vmem:[%s1 + $0x5e0] sm:$0xf]
  %v448 = vld [vmem:[%s1 + $0x5e4] sm:$0xf]
  %v449 = vld [vmem:[%s1 + $0x5e8] sm:$0xf]
  %v450 = vld [vmem:[%s1 + $0x5ec] sm:$0xf]
  %v451 = vld [vmem:[%s1 + $0x5f0] sm:$0xf]
  %v452 = vld [vmem:[%s1 + $0x5f4] sm:$0xf]
  %v453 = vld [vmem:[%s1 + $0x5f8] sm:$0xf]
  %v454 = vld [vmem:[%s1 + $0x5fc] sm:$0xf]
  %v455 = vld [vmem:[%s1 + $0x600] sm:$0xf]
  %v456 = vld [vmem:[%s1 + $0x604] sm:$0xf]
  %v457 = vld [vmem:[%s1 + $0x608] sm:$0xf]
  %v458 = vld [vmem:[%s1 + $0x60c] sm:$0xf]
  %v459 = vld [vmem:[%s1 + $0x610] sm:$0xf]
  %v460 = vld [vmem:[%s1 + $0x614] sm:$0xf]
  %v461 = vld [vmem:[%s1 + $0x618] sm:$0xf]
  %v462 = vld [vmem:[%s1 + $0x61c] sm:$0xf]
  %v463 = vld [vmem:[%s1 + $0x620] sm:$0xf]
  %v464 = vld [vmem:[%s1 + $0x624] sm:$0xf]
  %v465 = vld [vmem:[%s1 + $0x628] sm:$0xf]
  %v466 = vld [vmem:[%s1 + $0x62c] sm:$0xf]
  %v467 = vld [vmem:[%s1 + $0x630] sm:$0xf]
  %v468 = vld [vmem:[%s1 + $0x634] sm:$0xf]
  %v469 = vld [vmem:[%s1 + $0x638] sm:$0xf]
  %v470 = vld [vmem:[%s1 + $0x63c] sm:$0xf]
  %v471 = vld [vmem:[%s1 + $0x640] sm:$0xf]
  %v472 = vld [vmem:[%s1 + $0x644] sm:$0xf]
  %v473 = vld [vmem:[%s1 + $0x648] sm:$0xf]
  %v474 = vld [vmem:[%s1 + $0x64c] sm:$0xf]
  %v475 = vld [vmem:[%s1 + $0x650] sm:$0xf]
  %v476 = vld [vmem:[%s1 + $0x654] sm:$0xf]
  %v477 = vld [vmem:[%s1 + $0x658] sm:$0xf]
  %v478 = vld [vmem:[%s1 + $0x65c] sm:$0xf]
  %v479 = vld [vmem:[%s1 + $0x660] sm:$0xf]
  %v480 = vld [vmem:[%s1 + $0x664] sm:$0xf]
  %v481 = vld [vmem:[%s1 + $0x668] sm:$0xf]
  %v482 = vld [vmem:[%s1 + $0x66c] sm:$0xf]
  %v483 = vld [vmem:[%s1 + $0x670] sm:$0xf]
  %v484 = vld [vmem:[%s1 + $0x674] sm:$0xf]
  %v485 = vld [vmem:[%s1 + $0x678] sm:$0xf]
  %v486 = vld [vmem:[%s1 + $0x67c] sm:$0xf]
  %v487 = vld [vmem:[%s1 + $0x680] sm:$0xf]
  %v488 = vld [vmem:[%s1 + $0x684] sm:$0xf]
  %v489 = vld [vmem:[%s1 + $0x688] sm:$0xf]
  %v490 = vld [vmem:[%s1 + $0x68c] sm:$0xf]
  %v491 = vld [vmem:[%s1 + $0x690] sm:$0xf]
  %v492 = vld [vmem:[%s1 + $0x694] sm:$0xf]
  %v493 = vld [vmem:[%s1 + $0x698] sm:$0xf]
  %v494 = vld [vmem:[%s1 + $0x69c] sm:$0xf]
  %v495 = vld [vmem:[%s1 + $0x6a0] sm:$0xf]
  %v496 = vld [vmem:[%s1 + $0x6a4] sm:$0xf]
  %v497 = vld [vmem:[%s1 + $0x6a8] sm:$0xf]
  %v498 = vld [vmem:[%s1 + $0x6ac] sm:$0xf]
  %v499 = vld [vmem:[%s1 + $0x6b0] sm:$0xf]
  %v500 = vld [vmem:[%s1 + $0x6b4] sm:$0xf]
  %v501 = vld [vmem:[%s1 + $0x6b8] sm:$0xf]
  %v502 = vld [vmem:[%s1 + $0x6bc] sm:$0xf]
  %v503 = vld [vmem:[%s1 + $0x6c0] sm:$0xf]
  %v504 = vld [vmem:[%s1 + $0x6c4] sm:$0xf]
  %v505 = vld [vmem:[%s1 + $0x6c8] sm:$0xf]
  %v506 = vld [vmem:[%s1 + $0x6cc] sm:$0xf]
  %v507 = vld [vmem:[%s1 + $0x6d0] sm:$0xf]
  %v508 = vld [vmem:[%s1 + $0x6d4] sm:$0xf]
  %v509 = vld [vmem:[%s1 + $0x6d8] sm:$0xf]
  %v510 = vld [vmem:[%s1 + $0x6dc] sm:$0xf]
  %v511 = vld [vmem:[%s1 + $0x6e0] sm:$0xf]
  %v512 = vld [vmem:[%s1 + $0x6e4] sm:$0xf]
  %v513 = vld [vmem:[%s1 + $0x6e8] sm:$0xf]
  %v514 = vld [vmem:[%s1 + $0x6ec] sm:$0xf]
  %v515 = vld [vmem:[%s1 + $0x6f0] sm:$0xf]
  %v516 = vld [vmem:[%s1 + $0x6f4] sm:$0xf]
  %v517 = vld [vmem:[%s1 + $0x6f8] sm:$0xf]
  %v518 = vld [vmem:[%s1 + $0x6fc] sm:$0xf]
  %v519 = vld [vmem:[%s1 + $0x700] sm:$0xf]
  %v520 = vld [vmem:[%s1 + $0x704] sm:$0xf]
  %v521 = vld [vmem:[%s1 + $0x708] sm:$0xf]
  %v522 = vld [vmem:[%s1 + $0x70c] sm:$0xf]
  %v523 = vld [vmem:[%s1 + $0x710] sm:$0xf]
  %v524 = vld [vmem:[%s1 + $0x714] sm:$0xf]
  %v525 = vld [vmem:[%s1 + $0x718] sm:$0xf]
  %v526 = vld [vmem:[%s1 + $0x71c] sm:$0xf]
  %v527 = vld [vmem:[%s1 + $0x720] sm:$0xf]
  %v528 = vld [vmem:[%s1 + $0x724] sm:$0xf]
  %v529 = vld [vmem:[%s1 + $0x728] sm:$0xf]
  %v530 = vld [vmem:[%s1 + $0x72c] sm:$0xf]
  %v531 = vld [vmem:[%s1 + $0x730] sm:$0xf]
  %v532 = vld [vmem:[%s1 + $0x734] sm:$0xf]
  %v533 = vld [vmem:[%s1 + $0x738] sm:$0xf]
  %v534 = vld [vmem:[%s1 + $0x73c] sm:$0xf]
  %v535 = vld [vmem:[%s1 + $0x740] sm:$0xf]
  %v536 = vld [vmem:[%s1 + $0x744] sm:$0xf]
  %v537 = vld [vmem:[%s1 + $0x748] sm:$0xf]
  %v538 = vld [vmem:[%s1 + $0x74c] sm:$0xf]
  %v539 = vld [vmem:[%s1 + $0x750] sm:$0xf]
  %v540 = vld [vmem:[%s1 + $0x754] sm:$0xf]
  %v541 = vld [vmem:[%s1 + $0x758] sm:$0xf]
  %v542 = vld [vmem:[%s1 + $0x75c] sm:$0xf]
  %v543 = vld [vmem:[%s1 + $0x760] sm:$0xf]
  %v544 = vld [vmem:[%s1 + $0x764] sm:$0xf]
  %v545 = vld [vmem:[%s1 + $0x768] sm:$0xf]
  %v546 = vld [vmem:[%s1 + $0x76c] sm:$0xf]
  %v547 = vld [vmem:[%s1 + $0x770] sm:$0xf]
  %v548 = vld [vmem:[%s1 + $0x774] sm:$0xf]
  %v549 = vld [vmem:[%s1 + $0x778] sm:$0xf]
  %v550 = vld [vmem:[%s1 + $0x77c] sm:$0xf]
  %v551 = vld [vmem:[%s1 + $0x780] sm:$0xf]
  %v552 = vld [vmem:[%s1 + $0x784] sm:$0xf]
  %v553 = vld [vmem:[%s1 + $0x788] sm:$0xf]
  %v554 = vld [vmem:[%s1 + $0x78c] sm:$0xf]
  %v555 = vld [vmem:[%s1 + $0x790] sm:$0xf]
  %v556 = vld [vmem:[%s1 + $0x794] sm:$0xf]
  %v557 = vld [vmem:[%s1 + $0x798] sm:$0xf]
  %v558 = vld [vmem:[%s1 + $0x79c] sm:$0xf]
  %v559 = vld [vmem:[%s1 + $0x7a0] sm:$0xf]
  %v560 = vld [vmem:[%s1 + $0x7a4] sm:$0xf]
  %v561 = vld [vmem:[%s1 + $0x7a8] sm:$0xf]
  %v562 = vld [vmem:[%s1 + $0x7ac] sm:$0xf]
  %v563 = vld [vmem:[%s1 + $0x7b0] sm:$0xf]
  %v564 = vld [vmem:[%s1 + $0x7b4] sm:$0xf]
  %v565 = vld [vmem:[%s1 + $0x7b8] sm:$0xf]
  %v566 = vld [vmem:[%s1 + $0x7bc] sm:$0xf]
  %v567 = vld [vmem:[%s1 + $0x7c0] sm:$0xf]
  %v568 = vld [vmem:[%s1 + $0x7c4] sm:$0xf]
  %v569 = vld [vmem:[%s1 + $0x7c8] sm:$0xf]
  %v570 = vld [vmem:[%s1 + $0x7cc] sm:$0xf]
  %v571 = vld [vmem:[%s1 + $0x7d0] sm:$0xf]
  %v572 = vld [vmem:[%s1 + $0x7d4] sm:$0xf]
  %v573 = vld [vmem:[%s1 + $0x7d8] sm:$0xf]
  %v574 = vld [vmem:[%s1 + $0x7dc] sm:$0xf]
  %v575 = vld [vmem:[%s1 + $0x7e0] sm:$0xf]
  %v576 = vld [vmem:[%s1 + $0x7e4] sm:$0xf]
  %v577 = vld [vmem:[%s1 + $0x7e8] sm:$0xf]
  %v578 = vld [vmem:[%s1 + $0x7ec] sm:$0xf]
  %v579 = vld [vmem:[%s1 + $0x7f0] sm:$0xf]
  %v580 = vld [vmem:[%s1 + $0x7f4] sm:$0xf]
  %v581 = vld [vmem:[%s1 + $0x7f8] sm:$0xf]
  %v582 = vld [vmem:[%s1 + $0x7fc] sm:$0xf]
  %v583 = vld [vmem:[%s1 + $0x800] sm:$0xf]
  %v584 = vld [vmem:[%s1 + $0x804] sm:$0xf]
  %v585 = vld [vmem:[%s1 + $0x808] sm:$0xf]
  %v586 = vld [vmem:[%s1 + $0x80c] sm:$0xf]
  %v587 = vld [vmem:[%s1 + $0x810] sm:$0xf]
  %v588 = vld [vmem:[%s1 + $0x814] sm:$0xf]
  %v589 = vld [vmem:[%s1 + $0x818] sm:$0xf]
  %v590 = vld [vmem:[%s1 + $0x81c] sm:$0xf]
  %v591 = vld [vmem:[%s1 + $0x820] sm:$0xf]
  %v592 = vld [vmem:[%s1 + $0x824] sm:$0xf]
  %v593 = vld [vmem:[%s1 + $0x828] sm:$0xf]
  %v594 = vld [vmem:[%s1 + $0x82c] sm:$0xf]
  %v595 = vld [vmem:[%s1 + $0x830] sm:$0xf]
  %v596 = vld [vmem:[%s1 + $0x834] sm:$0xf]
  %v597 = vld [vmem:[%s1 + $0x838] sm:$0xf]
  %v598 = vld [vmem:[%s1 + $0x83c] sm:$0xf]
  %v599 = vld [vmem:[%s1 + $0x840] sm:$0xf]
  %v600 = vld [vmem:[%s1 + $0x844] sm:$0xf]
  %v601 = vld [vmem:[%s1 + $0x848] sm:$0xf]
  %v602 = vld [vmem:[%s1 + $0x84c] sm:$0xf]
  %v603 = vld [vmem:[%s1 + $0x850] sm:$0xf]
  %v604 = vld [vmem:[%s1 + $0x854] sm:$0xf]
  %v605 = vld [vmem:[%s1 + $0x858] sm:$0xf]
  %v606 = vld [vmem:[%s1 + $0x85c] sm:$0xf]
  %v607 = vld [vmem:[%s1 + $0x860] sm:$0xf]
  %v608 = vld [vmem:[%s1 + $0x864] sm:$0xf]
  %v609 = vld [vmem:[%s1 + $0x868] sm:$0xf]
  %v610 = vld [vmem:[%s1 + $0x86c] sm:$0xf]
  %v611 = vld [vmem:[%s1 + $0x870] sm:$0xf]
  %v612 = vld [vmem:[%s1 + $0x874] sm:$0xf]
  %v613 = vld [vmem:[%s1 + $0x878] sm:$0xf]
  %v614 = vld [vmem:[%s1 + $0x87c] sm:$0xf]
  %v615 = vld [vmem:[%s1 + $0x880] sm:$0xf]
  %v616 = vld [vmem:[%s1 + $0x884] sm:$0xf]
  %v617 = vld [vmem:[%s1 + $0x888] sm:$0xf]
  %v618 = vld [vmem:[%s1 + $0x88c] sm:$0xf]
  %v619 = vld [vmem:[%s1 + $0x890] sm:$0xf]
  %v620 = vld [vmem:[%s1 + $0x894] sm:$0xf]
  %v621 = vld [vmem:[%s1 + $0x898] sm:$0xf]
  %v622 = vld [vmem:[%s1 + $0x89c] sm:$0xf]
  %v623 = vld [vmem:[%s1 + $0x8a0] sm:$0xf]
  %v624 = vld [vmem:[%s1 + $0x8a4] sm:$0xf]
  %v625 = vld [vmem:[%s1 + $0x8a8] sm:$0xf]
  %v626 = vld [vmem:[%s1 + $0x8ac] sm:$0xf]
  %v627 = vld [vmem:[%s1 + $0x8b0] sm:$0xf]
  %v628 = vld [vmem:[%s1 + $0x8b4] sm:$0xf]
  %v629 = vld [vmem:[%s1 + $0x8b8] sm:$0xf]
  %v630 = vld [vmem:[%s1 + $0x8bc] sm:$0xf]
  %v631 = vld [vmem:[%s1 + $0x8c0] sm:$0xf]
  %v632 = vld [vmem:[%s1 + $0x8c4] sm:$0xf]
  %v633 = vld [vmem:[%s1 + $0x8c8] sm:$0xf]
  %v634 = vld [vmem:[%s1 + $0x8cc] sm:$0xf]
  %v635 = vld [vmem:[%s1 + $0x8d0] sm:$0xf]
  %v636 = vld [vmem:[%s1 + $0x8d4] sm:$0xf]
  %v637 = vld [vmem:[%s1 + $0x8d8] sm:$0xf]
  %v638 = vld [vmem:[%s1 + $0x8dc] sm:$0xf]
  %v639 = vld [vmem:[%s1 + $0x8e0] sm:$0xf]
  %v640 = vld [vmem:[%s1 + $0x8e4] sm:$0xf]
  %v641 = vld [vmem:[%s1 + $0x8e8] sm:$0xf]
  %v642 = vld [vmem:[%s1 + $0x8ec] sm:$0xf]
  %v643 = vld [vmem:[%s1 + $0x8f0] sm:$0xf]
  %v644 = vld [vmem:[%s1 + $0x8f4] sm:$0xf]
  %v645 = vld [vmem:[%s1 + $0x8f8] sm:$0xf]
  %v646 = vld [vmem:[%s1 + $0x8fc] sm:$0xf]
  %v647 = vld [vmem:[%s1 + $0x900] sm:$0xf]
  %v648 = vld [vmem:[%s1 + $0x904] sm:$0xf]
  %v649 = vld [vmem:[%s1 + $0x908] sm:$0xf]
  %v650 = vld [vmem:[%s1 + $0x90c] sm:$0xf]
  %v651 = vld [vmem:[%s1 + $0x910] sm:$0xf]
  %v652 = vld [vmem:[%s1 + $0x914] sm:$0xf]
  %v653 = vld [vmem:[%s1 + $0x918] sm:$0xf]
  %v654 = vld [vmem:[%s1 + $0x91c] sm:$0xf]
  %v655 = vld [vmem:[%s1 + $0x920] sm:$0xf]
  %v656 = vld [vmem:[%s1 + $0x924] sm:$0xf]
  %v657 = vld [vmem:[%s1 + $0x928] sm:$0xf]
  %v658 = vld [vmem:[%s1 + $0x92c] sm:$0xf]
  %v659 = vld [vmem:[%s1 + $0x930] sm:$0xf]
  %v660 = vld [vmem:[%s1 + $0x934] sm:$0xf]
  %v661 = vld [vmem:[%s1 + $0x938] sm:$0xf]
  %v662 = vld [vmem:[%s1 + $0x93c] sm:$0xf]
  %v663 = vld [vmem:[%s1 + $0x940] sm:$0xf]
  %v664 = vld [vmem:[%s1 + $0x944] sm:$0xf]
  %v665 = vld [vmem:[%s1 + $0x948] sm:$0xf]
  %v666 = vld [vmem:[%s1 + $0x94c] sm:$0xf]
  %v667 = vld [vmem:[%s1 + $0x950] sm:$0xf]
  %v668 = vld [vmem:[%s1 + $0x954] sm:$0xf]
  %v669 = vld [vmem:[%s1 + $0x958] sm:$0xf]
  %v670 = vld [vmem:[%s1 + $0x95c] sm:$0xf]
  %v671 = vld [vmem:[%s1 + $0x960] sm:$0xf]
  %v672 = vld [vmem:[%s1 + $0x964] sm:$0xf]
  %v673 = vld [vmem:[%s1 + $0x968] sm:$0xf]
  %v674 = vld [vmem:[%s1 + $0x96c] sm:$0xf]
  %v675 = vld [vmem:[%s1 + $0x970] sm:$0xf]
  %v676 = vld [vmem:[%s1 + $0x974] sm:$0xf]
  %v677 = vld [vmem:[%s1 + $0x978] sm:$0xf]
  %v678 = vld [vmem:[%s1 + $0x97c] sm:$0xf]
  %v679 = vld [vmem:[%s1 + $0x980] sm:$0xf]
  %v680 = vld [vmem:[%s1 + $0x984] sm:$0xf]
  %v681 = vld [vmem:[%s1 + $0x988] sm:$0xf]
  %v682 = vld [vmem:[%s1 + $0x98c] sm:$0xf]
  %v683 = vld [vmem:[%s1 + $0x990] sm:$0xf]
  %v684 = vld [vmem:[%s1 + $0x994] sm:$0xf]
  %v685 = vld [vmem:[%s1 + $0x998] sm:$0xf]
  %v686 = vld [vmem:[%s1 + $0x99c] sm:$0xf]
  %v687 = vld [vmem:[%s1 + $0x9a0] sm:$0xf]
  %v688 = vld [vmem:[%s1 + $0x9a4] sm:$0xf]
  %v689 = vld [vmem:[%s1 + $0x9a8] sm:$0xf]
  %v690 = vld [vmem:[%s1 + $0x9ac] sm:$0xf]
  %v691 = vld [vmem:[%s1 + $0x9b0] sm:$0xf]
  %v692 = vld [vmem:[%s1 + $0x9b4] sm:$0xf]
  %v693 = vld [vmem:[%s1 + $0x9b8] sm:$0xf]
  %v694 = vld [vmem:[%s1 + $0x9bc] sm:$0xf]
  %v695 = vld [vmem:[%s1 + $0x9c0] sm:$0xf]
  %v696 = vld [vmem:[%s1 + $0x9c4] sm:$0xf]
  %v697 = vld [vmem:[%s1 + $0x9c8] sm:$0xf]
  %v698 = vld [vmem:[%s1 + $0x9cc] sm:$0xf]
  %v699 = vld [vmem:[%s1 + $0x9d0] sm:$0xf]
  %v700 = vld [vmem:[%s1 + $0x9d4] sm:$0xf]
  %v701 = vld [vmem:[%s1 + $0x9d8] sm:$0xf]
  %v702 = vld [vmem:[%s1 + $0x9dc] sm:$0xf]
  %v703 = vld [vmem:[%s1 + $0x9e0] sm:$0xf]
  %v704 = vld [vmem:[%s1 + $0x9e4] sm:$0xf]
  %v705 = vld [vmem:[%s1 + $0x9e8] sm:$0xf]
  %v706 = vld [vmem:[%s1 + $0x9ec] sm:$0xf]
  %v707 = vld [vmem:[%s1 + $0x9f0] sm:$0xf]
  %v708 = vld [vmem:[%s1 + $0x9f4] sm:$0xf]
  %v709 = vld [vmem:[%s1 + $0x9f8] sm:$0xf]
  %v710 = vld [vmem:[%s1 + $0x9fc] sm:$0xf]
  %v711 = vld [vmem:[%s1 + $0xa00] sm:$0xf]
  %v712 = vld [vmem:[%s1 + $0xa04] sm:$0xf]
  %v713 = vld [vmem:[%s1 + $0xa08] sm:$0xf]
  %v714 = vld [vmem:[%s1 + $0xa0c] sm:$0xf]
  %v715 = vld [vmem:[%s1 + $0xa10] sm:$0xf]
  %v716 = vld [vmem:[%s1 + $0xa14] sm:$0xf]
  %v717 = vld [vmem:[%s1 + $0xa18] sm:$0xf]
  %v718 = vld [vmem:[%s1 + $0xa1c] sm:$0xf]
  %v719 = vld [vmem:[%s1 + $0xa20] sm:$0xf]
  %v720 = vld [vmem:[%s1 + $0xa24] sm:$0xf]
  %v721 = vld [vmem:[%s1 + $0xa28] sm:$0xf]
  %v722 = vld [vmem:[%s1 + $0xa2c] sm:$0xf]
  %v723 = vld [vmem:[%s1 + $0xa30] sm:$0xf]
  %v724 = vld [vmem:[%s1 + $0xa34] sm:$0xf]
  %v725 = vld [vmem:[%s1 + $0xa38] sm:$0xf]
  %v726 = vld [vmem:[%s1 + $0xa3c] sm:$0xf]
  %v727 = vld [vmem:[%s1 + $0xa40] sm:$0xf]
  %v728 = vld [vmem:[%s1 + $0xa44] sm:$0xf]
  %v729 = vld [vmem:[%s1 + $0xa48] sm:$0xf]
  %v730 = vld [vmem:[%s1 + $0xa4c] sm:$0xf]
  %v731 = vld [vmem:[%s1 + $0xa50] sm:$0xf]
  %v732 = vld [vmem:[%s1 + $0xa54] sm:$0xf]
  %v733 = vld [vmem:[%s1 + $0xa58] sm:$0xf]
  %v734 = vld [vmem:[%s1 + $0xa5c] sm:$0xf]
  %v735 = vld [vmem:[%s1 + $0xa60] sm:$0xf]
  %v736 = vld [vmem:[%s1 + $0xa64] sm:$0xf]
  %v737 = vld [vmem:[%s1 + $0xa68] sm:$0xf]
  %v738 = vld [vmem:[%s1 + $0xa6c] sm:$0xf]
  %v739 = vld [vmem:[%s1 + $0xa70] sm:$0xf]
  %v740 = vld [vmem:[%s1 + $0xa74] sm:$0xf]
  %v741 = vld [vmem:[%s1 + $0xa78] sm:$0xf]
  %v742 = vld [vmem:[%s1 + $0xa7c] sm:$0xf]
  %v743 = vld [vmem:[%s1 + $0xa80] sm:$0xf]
  %v744 = vld [vmem:[%s1 + $0xa84] sm:$0xf]
  %v745 = vld [vmem:[%s1 + $0xa88] sm:$0xf]
  %v746 = vld [vmem:[%s1 + $0xa8c] sm:$0xf]
  %v747 = vld [vmem:[%s1 + $0xa90] sm:$0xf]
  %v748 = vld [vmem:[%s1 + $0xa94] sm:$0xf]
  %v749 = vld [vmem:[%s1 + $0xa98] sm:$0xf]
  %v750 = vld [vmem:[%s1 + $0xa9c] sm:$0xf]
  %v751 = vld [vmem:[%s1 + $0xaa0] sm:$0xf]
  %v752 = vld [vmem:[%s1 + $0xaa4] sm:$0xf]
  %v753 = vld [vmem:[%s1 + $0xaa8] sm:$0xf]
  %v754 = vld [vmem:[%s1 + $0xaac] sm:$0xf]
  %v755 = vld [vmem:[%s1 + $0xab0] sm:$0xf]
  %v756 = vld [vmem:[%s1 + $0xab4] sm:$0xf]
  %v757 = vld [vmem:[%s1 + $0xab8] sm:$0xf]
  %v758 = vld [vmem:[%s1 + $0xabc] sm:$0xf]
  %v759 = vld [vmem:[%s1 + $0xac0] sm:$0xf]
  %v760 = vld [vmem:[%s1 + $0xac4] sm:$0xf]
  %v761 = vld [vmem:[%s1 + $0xac8] sm:$0xf]
  %v762 = vld [vmem:[%s1 + $0xacc] sm:$0xf]
  %v763 = vld [vmem:[%s1 + $0xad0] sm:$0xf]
  %v764 = vld [vmem:[%s1 + $0xad4] sm:$0xf]
  %v765 = vld [vmem:[%s1 + $0xad8] sm:$0xf]
  %v766 = vld [vmem:[%s1 + $0xadc] sm:$0xf]
  %v767 = vld [vmem:[%s1 + $0xae0] sm:$0xf]
  %v768 = vld [vmem:[%s1 + $0xae4] sm:$0xf]
  %v769 = vld [vmem:[%s1 + $0xae8] sm:$0xf]
  %v770 = vld [vmem:[%s1 + $0xaec] sm:$0xf]
  %v771 = vld [vmem:[%s1 + $0xaf0] sm:$0xf]
  %v772 = vld [vmem:[%s1 + $0xaf4] sm:$0xf]
  %v773 = vld [vmem:[%s1 + $0xaf8] sm:$0xf]
  %v774 = vld [vmem:[%s1 + $0xafc] sm:$0xf]
  %v775 = vld [vmem:[%s1 + $0xb00] sm:$0xf]
  %v776 = vld [vmem:[%s1 + $0xb04] sm:$0xf]
  %v777 = vld [vmem:[%s1 + $0xb08] sm:$0xf]
  %v778 = vld [vmem:[%s1 + $0xb0c] sm:$0xf]
  %v779 = vld [vmem:[%s1 + $0xb10] sm:$0xf]
  %v780 = vld [vmem:[%s1 + $0xb14] sm:$0xf]
  %v781 = vld [vmem:[%s1 + $0xb18] sm:$0xf]
  %v782 = vld [vmem:[%s1 + $0xb1c] sm:$0xf]
  %v783 = vld [vmem:[%s1 + $0xb20] sm:$0xf]
  %v784 = vld [vmem:[%s1 + $0xb24] sm:$0xf]
  %v785 = vld [vmem:[%s1 + $0xb28] sm:$0xf]
  %v786 = vld [vmem:[%s1 + $0xb2c] sm:$0xf]
  %v787 = vld [vmem:[%s1 + $0xb30] sm:$0xf]
  %v788 = vld [vmem:[%s1 + $0xb34] sm:$0xf]
  %v789 = vld [vmem:[%s1 + $0xb38] sm:$0xf]
  %v790 = vld [vmem:[%s1 + $0xb3c] sm:$0xf]
  %v791 = vld [vmem:[%s1 + $0xb40] sm:$0xf]
  %v792 = vld [vmem:[%s1 + $0xb44] sm:$0xf]
  %v793 = vld [vmem:[%s1 + $0xb48] sm:$0xf]
  %v794 = vld [vmem:[%s1 + $0xb4c] sm:$0xf]
  %v795 = vld [vmem:[%s1 + $0xb50] sm:$0xf]
  %v796 = vld [vmem:[%s1 + $0xb54] sm:$0xf]
  %v797 = vld [vmem:[%s1 + $0xb58] sm:$0xf]
  %v798 = vld [vmem:[%s1 + $0xb5c] sm:$0xf]
  %v799 = vld [vmem:[%s1 + $0xb60] sm:$0xf]
  %v800 = vld [vmem:[%s1 + $0xb64] sm:$0xf]
  %v801 = vld [vmem:[%s1 + $0xb68] sm:$0xf]
  %v802 = vld [vmem:[%s1 + $0xb6c] sm:$0xf]
  %v803 = vld [vmem:[%s1 + $0xb70] sm:$0xf]
  %v804 = vld [vmem:[%s1 + $0xb74] sm:$0xf]
  %v805 = vld [vmem:[%s1 + $0xb78] sm:$0xf]
  %v806 = vld [vmem:[%s1 + $0xb7c] sm:$0xf]
  %v807 = vld [vmem:[%s1 + $0xb80] sm:$0xf]
  %v808 = vld [vmem:[%s1 + $0xb84] sm:$0xf]
  %v809 = vld [vmem:[%s1 + $0xb88] sm:$0xf]
  %v810 = vld [vmem:[%s1 + $0xb8c] sm:$0xf]
  %v811 = vld [vmem:[%s1 + $0xb90] sm:$0xf]
  %v812 = vld [vmem:[%s1 + $0xb94] sm:$0xf]
  %v813 = vld [vmem:[%s1 + $0xb98] sm:$0xf]
  %v814 = vld [vmem:[%s1 + $0xb9c] sm:$0xf]
  %v815 = vld [vmem:[%s1 + $0xba0] sm:$0xf]
  %v816 = vld [vmem:[%s1 + $0xba4] sm:$0xf]
  %v817 = vld [vmem:[%s1 + $0xba8] sm:$0xf]
  %v818 = vld [vmem:[%s1 + $0xbac] sm:$0xf]
  %v819 = vld [vmem:[%s1 + $0xbb0] sm:$0xf]
  %v820 = vld [vmem:[%s1 + $0xbb4] sm:$0xf]
  %v821 = vld [vmem:[%s1 + $0xbb8] sm:$0xf]
  %v822 = vld [vmem:[%s1 + $0xbbc] sm:$0xf]
  %v823 = vld [vmem:[%s1 + $0xbc0] sm:$0xf]
  %v824 = vld [vmem:[%s1 + $0xbc4] sm:$0xf]
  %v825 = vld [vmem:[%s1 + $0xbc8] sm:$0xf]
  %v826 = vld [vmem:[%s1 + $0xbcc] sm:$0xf]
  %v827 = vld [vmem:[%s1 + $0xbd0] sm:$0xf]
  %v828 = vld [vmem:[%s1 + $0xbd4] sm:$0xf]
  %v829 = vld [vmem:[%s1 + $0xbd8] sm:$0xf]
  %v830 = vld [vmem:[%s1 + $0xbdc] sm:$0xf]
  %v831 = vld [vmem:[%s1 + $0xbe0] sm:$0xf]
  %v832 = vld [vmem:[%s1 + $0xbe4] sm:$0xf]
  %v833 = vld [vmem:[%s1 + $0xbe8] sm:$0xf]
  %v834 = vld [vmem:[%s1 + $0xbec] sm:$0xf]
  %v835 = vld [vmem:[%s1 + $0xbf0] sm:$0xf]
  %v836 = vld [vmem:[%s1 + $0xbf4] sm:$0xf]
  %v837 = vld [vmem:[%s1 + $0xbf8] sm:$0xf]
  %v838 = vld [vmem:[%s1 + $0xbfc] sm:$0xf]
  %v839 = vld [vmem:[%s1 + $0xc00] sm:$0xf]
  %v840 = vld [vmem:[%s1 + $0xc04] sm:$0xf]
  %v841 = vld [vmem:[%s1 + $0xc08] sm:$0xf]
  %v842 = vld [vmem:[%s1 + $0xc0c] sm:$0xf]
  %v843 = vld [vmem:[%s1 + $0xc10] sm:$0xf]
  %v844 = vld [vmem:[%s1 + $0xc14] sm:$0xf]
  %v845 = vld [vmem:[%s1 + $0xc18] sm:$0xf]
  %v846 = vld [vmem:[%s1 + $0xc1c] sm:$0xf]
  %v847 = vld [vmem:[%s1 + $0xc20] sm:$0xf]
  %v848 = vld [vmem:[%s1 + $0xc24] sm:$0xf]
  %v849 = vld [vmem:[%s1 + $0xc28] sm:$0xf]
  %v850 = vld [vmem:[%s1 + $0xc2c] sm:$0xf]
  %v851 = vld [vmem:[%s1 + $0xc30] sm:$0xf]
  %v852 = vld [vmem:[%s1 + $0xc34] sm:$0xf]
  %v853 = vld [vmem:[%s1 + $0xc38] sm:$0xf]
  %v854 = vld [vmem:[%s1 + $0xc3c] sm:$0xf]
  %v855 = vld [vmem:[%s2] sm:$0x1]
  %v857 = vlaneseq
  %v858 = vshrl.u32 %v857, 7
  %v859 = vsub.s32 0, %v858
  %v860 = vrot.slane %v855, %v859
  %v912 = vunpack.c.l.b16 %v21
  %v913 = vunpack.c.h.b16 %v21
  %v914 = vunpack.c.l.b16 %v22
  %v915 = vunpack.c.h.b16 %v22
  %v916 = vunpack.c.l.b16 %v23
  %v917 = vunpack.c.h.b16 %v23
  %v918 = vunpack.c.l.b16 %v24
  %v919 = vunpack.c.h.b16 %v24
  %v920 = vunpack.c.l.b16 %v25
  %v921 = vunpack.c.h.b16 %v25
  %v922 = vunpack.c.l.b16 %v26
  %v923 = vunpack.c.h.b16 %v26
  %v924 = vunpack.c.l.b16 %v27
  %v925 = vunpack.c.h.b16 %v27
  %v926 = vunpack.c.l.b16 %v28
  %v927 = vunpack.c.h.b16 %v28
  %v928 = vunpack.c.l.b16 %v29
  %v929 = vunpack.c.h.b16 %v29
  %v930 = vunpack.c.l.b16 %v30
  %v931 = vunpack.c.h.b16 %v30
  %v932 = vunpack.c.l.b16 %v31
  %v933 = vunpack.c.h.b16 %v31
  %v934 = vunpack.c.l.b16 %v32
  %v935 = vunpack.c.h.b16 %v32
  %v936 = vunpack.c.l.b16 %v33
  %v937 = vunpack.c.h.b16 %v33
  %v938 = vunpack.c.l.b16 %v34
  %v939 = vunpack.c.h.b16 %v34
  %v940 = vunpack.c.l.b16 %v35
  %v941 = vunpack.c.h.b16 %v35
  %v942 = vunpack.c.l.b16 %v36
  %v943 = vunpack.c.h.b16 %v36
  %v944 = vunpack.c.l.b16 %v37
  %v945 = vunpack.c.h.b16 %v37
  %v946 = vunpack.c.l.b16 %v38
  %v947 = vunpack.c.h.b16 %v38
  %v948 = vunpack.c.l.b16 %v39
  %v949 = vunpack.c.h.b16 %v39
  %v950 = vunpack.c.l.b16 %v40
  %v951 = vunpack.c.h.b16 %v40
  %v952 = vunpack.c.l.b16 %v41
  %v953 = vunpack.c.h.b16 %v41
  %v954 = vunpack.c.l.b16 %v42
  %v955 = vunpack.c.h.b16 %v42
  %v956 = vunpack.c.l.b16 %v43
  %v957 = vunpack.c.h.b16 %v43
  %v958 = vunpack.c.l.b16 %v44
  %v959 = vunpack.c.h.b16 %v44
  %v960 = vunpack.c.l.b16 %v45
  %v961 = vunpack.c.l.b16 %v46
  %v962 = vunpack.c.h.b16 %v46
  %v963 = vunpack.c.l.b16 %v47
  %v964 = vunpack.c.h.b16 %v47
  %v965 = vunpack.c.l.b16 %v48
  %v966 = vunpack.c.h.b16 %v48
  %v967 = vunpack.c.l.b16 %v49
  %v968 = vunpack.c.h.b16 %v49
  %v969 = vunpack.c.l.b16 %v50
  %v970 = vunpack.c.h.b16 %v50
  %v971 = vunpack.c.l.b16 %v51
  %v972 = vunpack.c.h.b16 %v51
  %v973 = vunpack.c.l.b16 %v52
  %v974 = vunpack.c.h.b16 %v52
  %v975 = vunpack.c.l.b16 %v53
  %v976 = vunpack.c.h.b16 %v53
  %v977 = vunpack.c.l.b16 %v54
  %v978 = vunpack.c.h.b16 %v54
  %v979 = vunpack.c.l.b16 %v55
  %v980 = vunpack.c.h.b16 %v55
  %v981 = vunpack.c.l.b16 %v56
  %v982 = vunpack.c.h.b16 %v56
  %v983 = vunpack.c.l.b16 %v57
  %v984 = vunpack.c.h.b16 %v57
  %v985 = vunpack.c.l.b16 %v58
  %v986 = vunpack.c.h.b16 %v58
  %v987 = vunpack.c.l.b16 %v59
  %v988 = vunpack.c.h.b16 %v59
  %v989 = vunpack.c.l.b16 %v60
  %v990 = vunpack.c.h.b16 %v60
  %v991 = vunpack.c.l.b16 %v61
  %v992 = vunpack.c.h.b16 %v61
  %v993 = vunpack.c.l.b16 %v62
  %v994 = vunpack.c.h.b16 %v62
  %v995 = vunpack.c.l.b16 %v63
  %v996 = vunpack.c.h.b16 %v63
  %v997 = vunpack.c.l.b16 %v64
  %v998 = vunpack.c.h.b16 %v64
  %v999 = vunpack.c.l.b16 %v65
  %v1000 = vunpack.c.h.b16 %v65
  %v1001 = vunpack.c.l.b16 %v66
  %v1002 = vunpack.c.h.b16 %v66
  %v1003 = vunpack.c.l.b16 %v67
  %v1004 = vunpack.c.h.b16 %v67
  %v1005 = vunpack.c.l.b16 %v68
  %v1006 = vunpack.c.h.b16 %v68
  %v1007 = vunpack.c.l.b16 %v69
  %v1008 = vunpack.c.h.b16 %v69
  %v1009 = vunpack.c.l.b16 %v70
  %v1010 = vpack.c.b16 %v961, %v912
  %v1011 = vpack.c.b16 %v962, %v913
  %v1012 = vpack.c.b16 %v963, %v914
  %v1013 = vpack.c.b16 %v964, %v915
  %v1014 = vpack.c.b16 %v965, %v916
  %v1015 = vpack.c.b16 %v966, %v917
  %v1016 = vpack.c.b16 %v967, %v918
  %v1017 = vpack.c.b16 %v968, %v919
  %v1018 = vpack.c.b16 %v969, %v920
  %v1019 = vpack.c.b16 %v970, %v921
  %v1020 = vpack.c.b16 %v971, %v922
  %v1021 = vpack.c.b16 %v972, %v923
  %v1022 = vpack.c.b16 %v973, %v924
  %v1023 = vpack.c.b16 %v974, %v925
  %v1024 = vpack.c.b16 %v975, %v926
  %v1025 = vpack.c.b16 %v976, %v927
  %v1026 = vpack.c.b16 %v977, %v928
  %v1027 = vpack.c.b16 %v978, %v929
  %v1028 = vpack.c.b16 %v979, %v930
  %v1029 = vpack.c.b16 %v980, %v931
  %v1030 = vpack.c.b16 %v981, %v932
  %v1031 = vpack.c.b16 %v982, %v933
  %v1032 = vpack.c.b16 %v983, %v934
  %v1033 = vpack.c.b16 %v984, %v935
  %v1034 = vpack.c.b16 %v985, %v936
  %v1035 = vpack.c.b16 %v986, %v937
  %v1036 = vpack.c.b16 %v987, %v938
  %v1037 = vpack.c.b16 %v988, %v939
  %v1038 = vpack.c.b16 %v989, %v940
  %v1039 = vpack.c.b16 %v990, %v941
  %v1040 = vpack.c.b16 %v991, %v942
  %v1041 = vpack.c.b16 %v992, %v943
  %v1042 = vpack.c.b16 %v993, %v944
  %v1043 = vpack.c.b16 %v994, %v945
  %v1044 = vpack.c.b16 %v995, %v946
  %v1045 = vpack.c.b16 %v996, %v947
  %v1046 = vpack.c.b16 %v997, %v948
  %v1047 = vpack.c.b16 %v998, %v949
  %v1048 = vpack.c.b16 %v999, %v950
  %v1049 = vpack.c.b16 %v1000, %v951
  %v1050 = vpack.c.b16 %v1001, %v952
  %v1051 = vpack.c.b16 %v1002, %v953
  %v1052 = vpack.c.b16 %v1003, %v954
  %v1053 = vpack.c.b16 %v1004, %v955
  %v1054 = vpack.c.b16 %v1005, %v956
  %v1055 = vpack.c.b16 %v1006, %v957
  %v1056 = vpack.c.b16 %v1007, %v958
  %v1057 = vpack.c.b16 %v1008, %v959
  %v1058 = vpack.c.b16 %v1009, %v960
  %v1892 = vunpack.c.l.b16 %v71
  %v1893 = vunpack.c.l.b16 %v72
  %v1894 = vunpack.c.l.b16 %v73
  %v1895 = vunpack.c.l.b16 %v74
  %v1896 = vunpack.c.l.b16 %v75
  %v1897 = vunpack.c.l.b16 %v76
  %v1898 = vunpack.c.l.b16 %v77
  %v1899 = vunpack.c.l.b16 %v78
  %v1900 = vunpack.c.l.b16 %v79
  %v1901 = vunpack.c.l.b16 %v80
  %v1902 = vunpack.c.l.b16 %v81
  %v1903 = vunpack.c.l.b16 %v82
  %v1904 = vunpack.c.l.b16 %v83
  %v1905 = vunpack.c.l.b16 %v84
  %v1906 = vunpack.c.l.b16 %v85
  %v1907 = vunpack.c.l.b16 %v86
  %v1908 = vunpack.c.l.b16 %v87
  %v1909 = vunpack.c.l.b16 %v88
  %v1910 = vunpack.c.l.b16 %v89
  %v1911 = vunpack.c.l.b16 %v90
  %v1912 = vunpack.c.l.b16 %v91
  %v1913 = vunpack.c.l.b16 %v92
  %v1914 = vunpack.c.l.b16 %v93
  %v1915 = vunpack.c.l.b16 %v94
  %v1916 = vunpack.c.l.b16 %v95
  %v1917 = vunpack.c.l.b16 %v96
  %v1918 = vunpack.c.l.b16 %v97
  %v1919 = vunpack.c.l.b16 %v98
  %v1920 = vunpack.c.l.b16 %v99
  %v1921 = vunpack.c.l.b16 %v100
  %v1922 = vunpack.c.l.b16 %v101
  %v1923 = vunpack.c.l.b16 %v102
  %v1924 = vunpack.c.l.b16 %v103
  %v1925 = vunpack.c.l.b16 %v104
  %v1926 = vunpack.c.l.b16 %v105
  %v1927 = vunpack.c.l.b16 %v106
  %v1928 = vunpack.c.l.b16 %v107
  %v1929 = vunpack.c.l.b16 %v108
  %v1930 = vunpack.c.l.b16 %v109
  %v1931 = vunpack.c.l.b16 %v110
  %v1932 = vunpack.c.l.b16 %v111
  %v1933 = vunpack.c.l.b16 %v112
  %v1934 = vunpack.c.l.b16 %v113
  %v1935 = vunpack.c.l.b16 %v114
  %v1936 = vunpack.c.l.b16 %v115
  %v1937 = vunpack.c.l.b16 %v116
  %v1938 = vunpack.c.l.b16 %v117
  %v1939 = vunpack.c.l.b16 %v118
  %v1940 = vunpack.c.l.b16 %v119
  %v1941 = vunpack.c.l.b16 %v120
  %v1942 = vunpack.c.l.b16 %v121
  %v1943 = vunpack.c.l.b16 %v122
  %v1944 = vunpack.c.l.b16 %v123
  %v1945 = vunpack.c.l.b16 %v124
  %v1946 = vunpack.c.l.b16 %v125
  %v1947 = vunpack.c.l.b16 %v126
  %v1948 = vunpack.c.l.b16 %v127
  %v1949 = vunpack.c.l.b16 %v128
  %v1950 = vunpack.c.l.b16 %v129
  %v1951 = vunpack.c.l.b16 %v130
  %v1952 = vunpack.c.l.b16 %v131
  %v1953 = vunpack.c.l.b16 %v132
  %v1954 = vunpack.c.l.b16 %v133
  %v1955 = vunpack.c.l.b16 %v134
  %v1956 = vunpack.c.l.b16 %v135
  %v1957 = vunpack.c.l.b16 %v136
  %v1958 = vunpack.c.l.b16 %v137
  %v1959 = vunpack.c.l.b16 %v138
  %v1960 = vunpack.c.l.b16 %v139
  %v1961 = vunpack.c.l.b16 %v140
  %v1962 = vunpack.c.l.b16 %v141
  %v1963 = vunpack.c.l.b16 %v142
  %v1964 = vunpack.c.l.b16 %v143
  %v1965 = vunpack.c.l.b16 %v144
  %v1966 = vunpack.c.l.b16 %v145
  %v1967 = vunpack.c.l.b16 %v146
  %v1968 = vunpack.c.l.b16 %v147
  %v1969 = vunpack.c.l.b16 %v148
  %v1970 = vunpack.c.l.b16 %v149
  %v1971 = vunpack.c.l.b16 %v150
  %v1972 = vunpack.c.l.b16 %v151
  %v1973 = vunpack.c.l.b16 %v152
  %v1974 = vunpack.c.l.b16 %v153
  %v1975 = vunpack.c.l.b16 %v154
  %v1976 = vunpack.c.l.b16 %v155
  %v1977 = vunpack.c.l.b16 %v156
  %v1978 = vunpack.c.l.b16 %v157
  %v1979 = vunpack.c.l.b16 %v158
  %v1980 = vunpack.c.l.b16 %v159
  %v1981 = vunpack.c.l.b16 %v160
  %v1982 = vunpack.c.l.b16 %v161
  %v1983 = vunpack.c.l.b16 %v162
  %v1984 = vunpack.c.l.b16 %v163
  %v1985 = vunpack.c.l.b16 %v164
  %v1986 = vunpack.c.l.b16 %v165
  %v1987 = vunpack.c.l.b16 %v166
  %v1988 = vunpack.c.l.b16 %v167
  %v1989 = vunpack.c.l.b16 %v168
  %v1990 = vunpack.c.l.b16 %v169
  %v1991 = vunpack.c.l.b16 %v170
  %v1992 = vunpack.c.l.b16 %v171
  %v1993 = vunpack.c.l.b16 %v172
  %v1994 = vunpack.c.l.b16 %v173
  %v1995 = vunpack.c.l.b16 %v174
  %v1996 = vunpack.c.l.b16 %v175
  %v1997 = vunpack.c.l.b16 %v176
  %v1998 = vunpack.c.l.b16 %v177
  %v1999 = vunpack.c.l.b16 %v178
  %v2000 = vunpack.c.l.b16 %v179
  %v2001 = vunpack.c.l.b16 %v180
  %v2002 = vunpack.c.l.b16 %v181
  %v2003 = vunpack.c.l.b16 %v182
  %v2004 = vunpack.c.l.b16 %v183
  %v2005 = vunpack.c.l.b16 %v184
  %v2006 = vunpack.c.l.b16 %v185
  %v2007 = vunpack.c.l.b16 %v186
  %v2008 = vunpack.c.l.b16 %v187
  %v2009 = vunpack.c.l.b16 %v188
  %v2010 = vunpack.c.l.b16 %v189
  %v2011 = vunpack.c.l.b16 %v190
  %v2012 = vunpack.c.l.b16 %v191
  %v2013 = vunpack.c.l.b16 %v192
  %v2014 = vunpack.c.l.b16 %v193
  %v2015 = vunpack.c.l.b16 %v194
  %v2016 = vunpack.c.l.b16 %v195
  %v2017 = vunpack.c.l.b16 %v196
  %v2018 = vunpack.c.l.b16 %v197
  %v2019 = vunpack.c.l.b16 %v198
  %v2020 = vunpack.c.l.b16 %v199
  %v2021 = vunpack.c.l.b16 %v200
  %v2022 = vunpack.c.l.b16 %v201
  %v2023 = vunpack.c.l.b16 %v202
  %v2024 = vunpack.c.l.b16 %v203
  %v2025 = vunpack.c.l.b16 %v204
  %v2026 = vunpack.c.l.b16 %v205
  %v2027 = vunpack.c.l.b16 %v206
  %v2028 = vunpack.c.l.b16 %v207
  %v2029 = vunpack.c.l.b16 %v208
  %v2030 = vunpack.c.l.b16 %v209
  %v2031 = vunpack.c.l.b16 %v210
  %v2032 = vunpack.c.l.b16 %v211
  %v2033 = vunpack.c.l.b16 %v212
  %v2034 = vunpack.c.l.b16 %v213
  %v2035 = vunpack.c.l.b16 %v214
  %v2036 = vunpack.c.l.b16 %v215
  %v2037 = vunpack.c.l.b16 %v216
  %v2038 = vunpack.c.l.b16 %v217
  %v2039 = vunpack.c.l.b16 %v218
  %v2040 = vunpack.c.l.b16 %v219
  %v2041 = vunpack.c.l.b16 %v220
  %v2042 = vunpack.c.l.b16 %v221
  %v2043 = vunpack.c.l.b16 %v222
  %v2044 = vunpack.c.l.b16 %v223
  %v2045 = vunpack.c.l.b16 %v224
  %v2046 = vunpack.c.l.b16 %v225
  %v2047 = vunpack.c.l.b16 %v226
  %v2048 = vunpack.c.l.b16 %v227
  %v2049 = vunpack.c.l.b16 %v228
  %v2050 = vunpack.c.l.b16 %v229
  %v2051 = vunpack.c.l.b16 %v230
  %v2052 = vunpack.c.l.b16 %v231
  %v2053 = vunpack.c.l.b16 %v232
  %v2054 = vunpack.c.l.b16 %v233
  %v2055 = vunpack.c.l.b16 %v234
  %v2056 = vunpack.c.l.b16 %v235
  %v2057 = vunpack.c.l.b16 %v236
  %v2058 = vunpack.c.l.b16 %v237
  %v2059 = vunpack.c.l.b16 %v238
  %v2060 = vunpack.c.l.b16 %v239
  %v2061 = vunpack.c.l.b16 %v240
  %v2062 = vunpack.c.l.b16 %v241
  %v2063 = vunpack.c.l.b16 %v242
  %v2064 = vunpack.c.l.b16 %v243
  %v2065 = vunpack.c.l.b16 %v244
  %v2066 = vunpack.c.l.b16 %v245
  %v2067 = vunpack.c.l.b16 %v246
  %v2068 = vunpack.c.l.b16 %v247
  %v2069 = vunpack.c.l.b16 %v248
  %v2070 = vunpack.c.l.b16 %v249
  %v2071 = vunpack.c.l.b16 %v250
  %v2072 = vunpack.c.l.b16 %v251
  %v2073 = vunpack.c.l.b16 %v252
  %v2074 = vunpack.c.l.b16 %v253
  %v2075 = vunpack.c.l.b16 %v254
  %v2076 = vunpack.c.l.b16 %v255
  %v2077 = vunpack.c.l.b16 %v256
  %v2078 = vunpack.c.l.b16 %v257
  %v2079 = vunpack.c.l.b16 %v258
  %v2080 = vunpack.c.l.b16 %v259
  %v2081 = vunpack.c.l.b16 %v260
  %v2082 = vunpack.c.l.b16 %v261
  %v2083 = vunpack.c.l.b16 %v262
  %v2084 = vunpack.c.l.b16 %v263
  %v2085 = vunpack.c.l.b16 %v264
  %v2086 = vunpack.c.l.b16 %v265
  %v2087 = vunpack.c.l.b16 %v266
  %v2088 = vunpack.c.l.b16 %v267
  %v2089 = vunpack.c.l.b16 %v268
  %v2090 = vunpack.c.l.b16 %v269
  %v2091 = vunpack.c.l.b16 %v270
  %v2092 = vunpack.c.l.b16 %v271
  %v2093 = vunpack.c.l.b16 %v272
  %v2094 = vunpack.c.l.b16 %v273
  %v2095 = vunpack.c.l.b16 %v274
  %v2096 = vunpack.c.l.b16 %v275
  %v2097 = vunpack.c.l.b16 %v276
  %v2098 = vunpack.c.l.b16 %v277
  %v2099 = vunpack.c.l.b16 %v278
  %v2100 = vunpack.c.l.b16 %v279
  %v2101 = vunpack.c.l.b16 %v280
  %v2102 = vunpack.c.l.b16 %v281
  %v2103 = vunpack.c.l.b16 %v282
  %v2104 = vunpack.c.l.b16 %v283
  %v2105 = vunpack.c.l.b16 %v284
  %v2106 = vunpack.c.l.b16 %v285
  %v2107 = vunpack.c.l.b16 %v286
  %v2108 = vunpack.c.l.b16 %v287
  %v2109 = vunpack.c.l.b16 %v288
  %v2110 = vunpack.c.l.b16 %v289
  %v2111 = vunpack.c.l.b16 %v290
  %v2112 = vunpack.c.l.b16 %v291
  %v2113 = vunpack.c.l.b16 %v292
  %v2114 = vunpack.c.l.b16 %v293
  %v2115 = vunpack.c.l.b16 %v294
  %v2116 = vunpack.c.l.b16 %v295
  %v2117 = vunpack.c.l.b16 %v296
  %v2118 = vunpack.c.l.b16 %v297
  %v2119 = vunpack.c.l.b16 %v298
  %v2120 = vunpack.c.l.b16 %v299
  %v2121 = vunpack.c.l.b16 %v300
  %v2122 = vunpack.c.l.b16 %v301
  %v2123 = vunpack.c.l.b16 %v302
  %v2124 = vunpack.c.l.b16 %v303
  %v2125 = vunpack.c.l.b16 %v304
  %v2126 = vunpack.c.l.b16 %v305
  %v2127 = vunpack.c.l.b16 %v306
  %v2128 = vunpack.c.l.b16 %v307
  %v2129 = vunpack.c.l.b16 %v308
  %v2130 = vunpack.c.l.b16 %v309
  %v2131 = vunpack.c.l.b16 %v310
  %v2132 = vunpack.c.l.b16 %v311
  %v2133 = vunpack.c.l.b16 %v312
  %v2134 = vunpack.c.l.b16 %v313
  %v2135 = vunpack.c.l.b16 %v314
  %v2136 = vunpack.c.l.b16 %v315
  %v2137 = vunpack.c.l.b16 %v316
  %v2138 = vunpack.c.l.b16 %v317
  %v2139 = vunpack.c.l.b16 %v318
  %v2140 = vunpack.c.l.b16 %v319
  %v2141 = vunpack.c.l.b16 %v320
  %v2142 = vunpack.c.l.b16 %v321
  %v2143 = vunpack.c.l.b16 %v322
  %v2144 = vunpack.c.l.b16 %v323
  %v2145 = vunpack.c.l.b16 %v324
  %v2146 = vunpack.c.l.b16 %v325
  %v2147 = vunpack.c.l.b16 %v326
  %v2148 = vunpack.c.l.b16 %v327
  %v2149 = vunpack.c.l.b16 %v328
  %v2150 = vunpack.c.l.b16 %v329
  %v2151 = vunpack.c.l.b16 %v330
  %v2152 = vunpack.c.l.b16 %v331
  %v2153 = vunpack.c.l.b16 %v332
  %v2154 = vunpack.c.l.b16 %v333
  %v2155 = vunpack.c.l.b16 %v334
  %v2156 = vunpack.c.l.b16 %v335
  %v2157 = vunpack.c.l.b16 %v336
  %v2158 = vunpack.c.l.b16 %v337
  %v2159 = vunpack.c.l.b16 %v338
  %v2160 = vunpack.c.l.b16 %v339
  %v2161 = vunpack.c.l.b16 %v340
  %v2162 = vunpack.c.l.b16 %v341
  %v2163 = vunpack.c.l.b16 %v342
  %v2164 = vunpack.c.l.b16 %v343
  %v2165 = vunpack.c.l.b16 %v344
  %v2166 = vunpack.c.l.b16 %v345
  %v2167 = vunpack.c.l.b16 %v346
  %v2168 = vunpack.c.l.b16 %v347
  %v2169 = vunpack.c.l.b16 %v348
  %v2170 = vunpack.c.l.b16 %v349
  %v2171 = vunpack.c.l.b16 %v350
  %v2172 = vunpack.c.l.b16 %v351
  %v2173 = vunpack.c.l.b16 %v352
  %v2174 = vunpack.c.l.b16 %v353
  %v2175 = vunpack.c.l.b16 %v354
  %v2176 = vunpack.c.l.b16 %v355
  %v2177 = vunpack.c.l.b16 %v356
  %v2178 = vunpack.c.l.b16 %v357
  %v2179 = vunpack.c.l.b16 %v358
  %v2180 = vunpack.c.l.b16 %v359
  %v2181 = vunpack.c.l.b16 %v360
  %v2182 = vunpack.c.l.b16 %v361
  %v2183 = vunpack.c.l.b16 %v362
  %v2184 = vunpack.c.l.b16 %v363
  %v2185 = vunpack.c.l.b16 %v364
  %v2186 = vunpack.c.l.b16 %v365
  %v2187 = vunpack.c.l.b16 %v366
  %v2188 = vunpack.c.l.b16 %v367
  %v2189 = vunpack.c.l.b16 %v368
  %v2190 = vunpack.c.l.b16 %v369
  %v2191 = vunpack.c.l.b16 %v370
  %v2192 = vunpack.c.l.b16 %v371
  %v2193 = vunpack.c.l.b16 %v372
  %v2194 = vunpack.c.l.b16 %v373
  %v2195 = vunpack.c.l.b16 %v374
  %v2196 = vunpack.c.l.b16 %v375
  %v2197 = vunpack.c.l.b16 %v376
  %v2198 = vunpack.c.l.b16 %v377
  %v2199 = vunpack.c.l.b16 %v378
  %v2200 = vunpack.c.l.b16 %v379
  %v2201 = vunpack.c.l.b16 %v380
  %v2202 = vunpack.c.l.b16 %v381
  %v2203 = vunpack.c.l.b16 %v382
  %v2204 = vunpack.c.l.b16 %v383
  %v2205 = vunpack.c.l.b16 %v384
  %v2206 = vunpack.c.l.b16 %v385
  %v2207 = vunpack.c.l.b16 %v386
  %v2208 = vunpack.c.l.b16 %v387
  %v2209 = vunpack.c.l.b16 %v388
  %v2210 = vunpack.c.l.b16 %v389
  %v2211 = vunpack.c.l.b16 %v390
  %v2212 = vunpack.c.l.b16 %v391
  %v2213 = vunpack.c.l.b16 %v392
  %v2214 = vunpack.c.l.b16 %v393
  %v2215 = vunpack.c.l.b16 %v394
  %v2216 = vunpack.c.l.b16 %v395
  %v2217 = vunpack.c.l.b16 %v396
  %v2218 = vunpack.c.l.b16 %v397
  %v2219 = vunpack.c.l.b16 %v398
  %v2220 = vunpack.c.l.b16 %v399
  %v2221 = vunpack.c.l.b16 %v400
  %v2222 = vunpack.c.l.b16 %v401
  %v2223 = vunpack.c.l.b16 %v402
  %v2224 = vunpack.c.l.b16 %v403
  %v2225 = vunpack.c.l.b16 %v404
  %v2226 = vunpack.c.l.b16 %v405
  %v2227 = vunpack.c.l.b16 %v406
  %v2228 = vunpack.c.l.b16 %v407
  %v2229 = vunpack.c.l.b16 %v408
  %v2230 = vunpack.c.l.b16 %v409
  %v2231 = vunpack.c.l.b16 %v410
  %v2232 = vunpack.c.l.b16 %v411
  %v2233 = vunpack.c.l.b16 %v412
  %v2234 = vunpack.c.l.b16 %v413
  %v2235 = vunpack.c.l.b16 %v414
  %v2236 = vunpack.c.l.b16 %v415
  %v2237 = vunpack.c.l.b16 %v416
  %v2238 = vunpack.c.l.b16 %v417
  %v2239 = vunpack.c.l.b16 %v418
  %v2240 = vunpack.c.l.b16 %v419
  %v2241 = vunpack.c.l.b16 %v420
  %v2242 = vunpack.c.l.b16 %v421
  %v2243 = vunpack.c.l.b16 %v422
  %v2244 = vunpack.c.l.b16 %v423
  %v2245 = vunpack.c.l.b16 %v424
  %v2246 = vunpack.c.l.b16 %v425
  %v2247 = vunpack.c.l.b16 %v426
  %v2248 = vunpack.c.l.b16 %v427
  %v2249 = vunpack.c.l.b16 %v428
  %v2250 = vunpack.c.l.b16 %v429
  %v2251 = vunpack.c.l.b16 %v430
  %v2252 = vunpack.c.l.b16 %v431
  %v2253 = vunpack.c.l.b16 %v432
  %v2254 = vunpack.c.l.b16 %v433
  %v2255 = vunpack.c.l.b16 %v434
  %v2256 = vunpack.c.l.b16 %v435
  %v2257 = vunpack.c.l.b16 %v436
  %v2258 = vunpack.c.l.b16 %v437
  %v2259 = vunpack.c.l.b16 %v438
  %v2260 = vunpack.c.l.b16 %v439
  %v2261 = vunpack.c.l.b16 %v440
  %v2262 = vunpack.c.l.b16 %v441
  %v2263 = vunpack.c.l.b16 %v442
  %v2264 = vunpack.c.l.b16 %v443
  %v2265 = vunpack.c.l.b16 %v444
  %v2266 = vunpack.c.l.b16 %v445
  %v2267 = vunpack.c.l.b16 %v446
  %v2268 = vunpack.c.l.b16 %v447
  %v2269 = vunpack.c.l.b16 %v448
  %v2270 = vunpack.c.l.b16 %v449
  %v2271 = vunpack.c.l.b16 %v450
  %v2272 = vunpack.c.l.b16 %v451
  %v2273 = vunpack.c.l.b16 %v452
  %v2274 = vunpack.c.l.b16 %v453
  %v2275 = vunpack.c.l.b16 %v454
  %v2276 = vunpack.c.l.b16 %v455
  %v2277 = vunpack.c.l.b16 %v456
  %v2278 = vunpack.c.l.b16 %v457
  %v2279 = vunpack.c.l.b16 %v458
  %v2280 = vunpack.c.l.b16 %v459
  %v2281 = vunpack.c.l.b16 %v460
  %v2282 = vunpack.c.l.b16 %v461
  %v2283 = vunpack.c.l.b16 %v462
  %v2284 = vunpack.c.l.b16 %v463
  %v2285 = vunpack.c.l.b16 %v464
  %v2286 = vunpack.c.l.b16 %v465
  %v2287 = vunpack.c.l.b16 %v466
  %v2288 = vunpack.c.l.b16 %v467
  %v2289 = vunpack.c.l.b16 %v468
  %v2290 = vunpack.c.l.b16 %v469
  %v2291 = vunpack.c.l.b16 %v470
  %v2292 = vunpack.c.l.b16 %v471
  %v2293 = vunpack.c.l.b16 %v472
  %v2294 = vunpack.c.l.b16 %v473
  %v2295 = vunpack.c.l.b16 %v474
  %v2296 = vunpack.c.l.b16 %v475
  %v2297 = vunpack.c.l.b16 %v476
  %v2298 = vunpack.c.l.b16 %v477
  %v2299 = vunpack.c.l.b16 %v478
  %v2300 = vunpack.c.l.b16 %v479
  %v2301 = vunpack.c.l.b16 %v480
  %v2302 = vunpack.c.l.b16 %v481
  %v2303 = vunpack.c.l.b16 %v482
  %v2304 = vunpack.c.l.b16 %v483
  %v2305 = vunpack.c.l.b16 %v484
  %v2306 = vunpack.c.l.b16 %v485
  %v2307 = vunpack.c.l.b16 %v486
  %v2308 = vunpack.c.l.b16 %v487
  %v2309 = vunpack.c.l.b16 %v488
  %v2310 = vunpack.c.l.b16 %v489
  %v2311 = vunpack.c.l.b16 %v490
  %v2312 = vunpack.c.l.b16 %v491
  %v2313 = vunpack.c.l.b16 %v492
  %v2314 = vunpack.c.l.b16 %v493
  %v2315 = vunpack.c.l.b16 %v494
  %v2316 = vunpack.c.l.b16 %v495
  %v2317 = vunpack.c.l.b16 %v496
  %v2318 = vunpack.c.l.b16 %v497
  %v2319 = vunpack.c.l.b16 %v498
  %v2320 = vunpack.c.l.b16 %v499
  %v2321 = vunpack.c.l.b16 %v500
  %v2322 = vunpack.c.l.b16 %v501
  %v2323 = vunpack.c.l.b16 %v502
  %v2324 = vunpack.c.l.b16 %v503
  %v2325 = vunpack.c.l.b16 %v504
  %v2326 = vunpack.c.l.b16 %v505
  %v2327 = vunpack.c.l.b16 %v506
  %v2328 = vunpack.c.l.b16 %v507
  %v2329 = vunpack.c.l.b16 %v508
  %v2330 = vunpack.c.l.b16 %v509
  %v2331 = vunpack.c.l.b16 %v510
  %v2332 = vunpack.c.l.b16 %v511
  %v2333 = vunpack.c.l.b16 %v512
  %v2334 = vunpack.c.l.b16 %v513
  %v2335 = vunpack.c.l.b16 %v514
  %v2336 = vunpack.c.l.b16 %v515
  %v2337 = vunpack.c.l.b16 %v516
  %v2338 = vunpack.c.l.b16 %v517
  %v2339 = vunpack.c.l.b16 %v518
  %v2340 = vunpack.c.l.b16 %v519
  %v2341 = vunpack.c.l.b16 %v520
  %v2342 = vunpack.c.l.b16 %v521
  %v2343 = vunpack.c.l.b16 %v522
  %v2344 = vunpack.c.l.b16 %v523
  %v2345 = vunpack.c.l.b16 %v524
  %v2346 = vunpack.c.l.b16 %v525
  %v2347 = vunpack.c.l.b16 %v526
  %v2348 = vunpack.c.l.b16 %v527
  %v2349 = vunpack.c.l.b16 %v528
  %v2350 = vunpack.c.l.b16 %v529
  %v2351 = vunpack.c.l.b16 %v530
  %v2352 = vunpack.c.l.b16 %v531
  %v2353 = vunpack.c.l.b16 %v532
  %v2354 = vunpack.c.l.b16 %v533
  %v2355 = vunpack.c.l.b16 %v534
  %v2356 = vunpack.c.l.b16 %v535
  %v2357 = vunpack.c.l.b16 %v536
  %v2358 = vunpack.c.l.b16 %v537
  %v2359 = vunpack.c.l.b16 %v538
  %v2360 = vunpack.c.l.b16 %v539
  %v2361 = vunpack.c.l.b16 %v540
  %v2362 = vunpack.c.l.b16 %v541
  %v2363 = vunpack.c.l.b16 %v542
  %v2364 = vunpack.c.l.b16 %v543
  %v2365 = vunpack.c.l.b16 %v544
  %v2366 = vunpack.c.l.b16 %v545
  %v2367 = vunpack.c.l.b16 %v546
  %v2368 = vunpack.c.l.b16 %v547
  %v2369 = vunpack.c.l.b16 %v548
  %v2370 = vunpack.c.l.b16 %v549
  %v2371 = vunpack.c.l.b16 %v550
  %v2372 = vunpack.c.l.b16 %v551
  %v2373 = vunpack.c.l.b16 %v552
  %v2374 = vunpack.c.l.b16 %v553
  %v2375 = vunpack.c.l.b16 %v554
  %v2376 = vunpack.c.l.b16 %v555
  %v2377 = vunpack.c.l.b16 %v556
  %v2378 = vunpack.c.l.b16 %v557
  %v2379 = vunpack.c.l.b16 %v558
  %v2380 = vunpack.c.l.b16 %v559
  %v2381 = vunpack.c.l.b16 %v560
  %v2382 = vunpack.c.l.b16 %v561
  %v2383 = vunpack.c.l.b16 %v562
  %v2384 = vunpack.c.l.b16 %v563
  %v2385 = vunpack.c.l.b16 %v564
  %v2386 = vunpack.c.l.b16 %v565
  %v2387 = vunpack.c.l.b16 %v566
  %v2388 = vunpack.c.l.b16 %v567
  %v2389 = vunpack.c.l.b16 %v568
  %v2390 = vunpack.c.l.b16 %v569
  %v2391 = vunpack.c.l.b16 %v570
  %v2392 = vunpack.c.l.b16 %v571
  %v2393 = vunpack.c.l.b16 %v572
  %v2394 = vunpack.c.l.b16 %v573
  %v2395 = vunpack.c.l.b16 %v574
  %v2396 = vunpack.c.l.b16 %v575
  %v2397 = vunpack.c.l.b16 %v576
  %v2398 = vunpack.c.l.b16 %v577
  %v2399 = vunpack.c.l.b16 %v578
  %v2400 = vunpack.c.l.b16 %v579
  %v2401 = vunpack.c.l.b16 %v580
  %v2402 = vunpack.c.l.b16 %v581
  %v2403 = vunpack.c.l.b16 %v582
  %v2404 = vunpack.c.l.b16 %v583
  %v2405 = vunpack.c.l.b16 %v584
  %v2406 = vunpack.c.l.b16 %v585
  %v2407 = vunpack.c.l.b16 %v586
  %v2408 = vunpack.c.l.b16 %v587
  %v2409 = vunpack.c.l.b16 %v588
  %v2410 = vunpack.c.l.b16 %v589
  %v2411 = vunpack.c.l.b16 %v590
  %v2412 = vunpack.c.l.b16 %v591
  %v2413 = vunpack.c.l.b16 %v592
  %v2414 = vunpack.c.l.b16 %v593
  %v2415 = vunpack.c.l.b16 %v594
  %v2416 = vunpack.c.l.b16 %v595
  %v2417 = vunpack.c.l.b16 %v596
  %v2418 = vunpack.c.l.b16 %v597
  %v2419 = vunpack.c.l.b16 %v598
  %v2420 = vunpack.c.l.b16 %v599
  %v2421 = vunpack.c.l.b16 %v600
  %v2422 = vunpack.c.l.b16 %v601
  %v2423 = vunpack.c.l.b16 %v602
  %v2424 = vunpack.c.l.b16 %v603
  %v2425 = vunpack.c.l.b16 %v604
  %v2426 = vunpack.c.l.b16 %v605
  %v2427 = vunpack.c.l.b16 %v606
  %v2428 = vunpack.c.l.b16 %v607
  %v2429 = vunpack.c.l.b16 %v608
  %v2430 = vunpack.c.l.b16 %v609
  %v2431 = vunpack.c.l.b16 %v610
  %v2432 = vunpack.c.l.b16 %v611
  %v2433 = vunpack.c.l.b16 %v612
  %v2434 = vunpack.c.l.b16 %v613
  %v2435 = vunpack.c.l.b16 %v614
  %v2436 = vunpack.c.l.b16 %v615
  %v2437 = vunpack.c.l.b16 %v616
  %v2438 = vunpack.c.l.b16 %v617
  %v2439 = vunpack.c.l.b16 %v618
  %v2440 = vunpack.c.l.b16 %v619
  %v2441 = vunpack.c.l.b16 %v620
  %v2442 = vunpack.c.l.b16 %v621
  %v2443 = vunpack.c.l.b16 %v622
  %v2444 = vunpack.c.l.b16 %v623
  %v2445 = vunpack.c.l.b16 %v624
  %v2446 = vunpack.c.l.b16 %v625
  %v2447 = vunpack.c.l.b16 %v626
  %v2448 = vunpack.c.l.b16 %v627
  %v2449 = vunpack.c.l.b16 %v628
  %v2450 = vunpack.c.l.b16 %v629
  %v2451 = vunpack.c.l.b16 %v630
  %v2452 = vunpack.c.l.b16 %v631
  %v2453 = vunpack.c.l.b16 %v632
  %v2454 = vunpack.c.l.b16 %v633
  %v2455 = vunpack.c.l.b16 %v634
  %v2456 = vunpack.c.l.b16 %v635
  %v2457 = vunpack.c.l.b16 %v636
  %v2458 = vunpack.c.l.b16 %v637
  %v2459 = vunpack.c.l.b16 %v638
  %v2460 = vunpack.c.l.b16 %v639
  %v2461 = vunpack.c.l.b16 %v640
  %v2462 = vunpack.c.l.b16 %v641
  %v2463 = vunpack.c.l.b16 %v642
  %v2464 = vunpack.c.l.b16 %v643
  %v2465 = vunpack.c.l.b16 %v644
  %v2466 = vunpack.c.l.b16 %v645
  %v2467 = vunpack.c.l.b16 %v646
  %v2468 = vunpack.c.l.b16 %v647
  %v2469 = vunpack.c.l.b16 %v648
  %v2470 = vunpack.c.l.b16 %v649
  %v2471 = vunpack.c.l.b16 %v650
  %v2472 = vunpack.c.l.b16 %v651
  %v2473 = vunpack.c.l.b16 %v652
  %v2474 = vunpack.c.l.b16 %v653
  %v2475 = vunpack.c.l.b16 %v654
  %v2476 = vunpack.c.l.b16 %v655
  %v2477 = vunpack.c.l.b16 %v656
  %v2478 = vunpack.c.l.b16 %v657
  %v2479 = vunpack.c.l.b16 %v658
  %v2480 = vunpack.c.l.b16 %v659
  %v2481 = vunpack.c.l.b16 %v660
  %v2482 = vunpack.c.l.b16 %v661
  %v2483 = vunpack.c.l.b16 %v662
  %v2484 = vunpack.c.l.b16 %v663
  %v2485 = vunpack.c.l.b16 %v664
  %v2486 = vunpack.c.l.b16 %v665
  %v2487 = vunpack.c.l.b16 %v666
  %v2488 = vunpack.c.l.b16 %v667
  %v2489 = vunpack.c.l.b16 %v668
  %v2490 = vunpack.c.l.b16 %v669
  %v2491 = vunpack.c.l.b16 %v670
  %v2492 = vunpack.c.l.b16 %v671
  %v2493 = vunpack.c.l.b16 %v672
  %v2494 = vunpack.c.l.b16 %v673
  %v2495 = vunpack.c.l.b16 %v674
  %v2496 = vunpack.c.l.b16 %v675
  %v2497 = vunpack.c.l.b16 %v676
  %v2498 = vunpack.c.l.b16 %v677
  %v2499 = vunpack.c.l.b16 %v678
  %v2500 = vunpack.c.l.b16 %v679
  %v2501 = vunpack.c.l.b16 %v680
  %v2502 = vunpack.c.l.b16 %v681
  %v2503 = vunpack.c.l.b16 %v682
  %v2504 = vunpack.c.l.b16 %v683
  %v2505 = vunpack.c.l.b16 %v684
  %v2506 = vunpack.c.l.b16 %v685
  %v2507 = vunpack.c.l.b16 %v686
  %v2508 = vunpack.c.l.b16 %v687
  %v2509 = vunpack.c.l.b16 %v688
  %v2510 = vunpack.c.l.b16 %v689
  %v2511 = vunpack.c.l.b16 %v690
  %v2512 = vunpack.c.l.b16 %v691
  %v2513 = vunpack.c.l.b16 %v692
  %v2514 = vunpack.c.l.b16 %v693
  %v2515 = vunpack.c.l.b16 %v694
  %v2516 = vunpack.c.l.b16 %v695
  %v2517 = vunpack.c.l.b16 %v696
  %v2518 = vunpack.c.l.b16 %v697
  %v2519 = vunpack.c.l.b16 %v698
  %v2520 = vunpack.c.l.b16 %v699
  %v2521 = vunpack.c.l.b16 %v700
  %v2522 = vunpack.c.l.b16 %v701
  %v2523 = vunpack.c.l.b16 %v702
  %v2524 = vunpack.c.l.b16 %v703
  %v2525 = vunpack.c.l.b16 %v704
  %v2526 = vunpack.c.l.b16 %v705
  %v2527 = vunpack.c.l.b16 %v706
  %v2528 = vunpack.c.l.b16 %v707
  %v2529 = vunpack.c.l.b16 %v708
  %v2530 = vunpack.c.l.b16 %v709
  %v2531 = vunpack.c.l.b16 %v710
  %v2532 = vunpack.c.l.b16 %v711
  %v2533 = vunpack.c.l.b16 %v712
  %v2534 = vunpack.c.l.b16 %v713
  %v2535 = vunpack.c.l.b16 %v714
  %v2536 = vunpack.c.l.b16 %v715
  %v2537 = vunpack.c.l.b16 %v716
  %v2538 = vunpack.c.l.b16 %v717
  %v2539 = vunpack.c.l.b16 %v718
  %v2540 = vunpack.c.l.b16 %v719
  %v2541 = vunpack.c.l.b16 %v720
  %v2542 = vunpack.c.l.b16 %v721
  %v2543 = vunpack.c.l.b16 %v722
  %v2544 = vunpack.c.l.b16 %v723
  %v2545 = vunpack.c.l.b16 %v724
  %v2546 = vunpack.c.l.b16 %v725
  %v2547 = vunpack.c.l.b16 %v726
  %v2548 = vunpack.c.l.b16 %v727
  %v2549 = vunpack.c.l.b16 %v728
  %v2550 = vunpack.c.l.b16 %v729
  %v2551 = vunpack.c.l.b16 %v730
  %v2552 = vunpack.c.l.b16 %v731
  %v2553 = vunpack.c.l.b16 %v732
  %v2554 = vunpack.c.l.b16 %v733
  %v2555 = vunpack.c.l.b16 %v734
  %v2556 = vunpack.c.l.b16 %v735
  %v2557 = vunpack.c.l.b16 %v736
  %v2558 = vunpack.c.l.b16 %v737
  %v2559 = vunpack.c.l.b16 %v738
  %v2560 = vunpack.c.l.b16 %v739
  %v2561 = vunpack.c.l.b16 %v740
  %v2562 = vunpack.c.l.b16 %v741
  %v2563 = vunpack.c.l.b16 %v742
  %v2564 = vunpack.c.l.b16 %v743
  %v2565 = vunpack.c.l.b16 %v744
  %v2566 = vunpack.c.l.b16 %v745
  %v2567 = vunpack.c.l.b16 %v746
  %v2568 = vunpack.c.l.b16 %v747
  %v2569 = vunpack.c.l.b16 %v748
  %v2570 = vunpack.c.l.b16 %v749
  %v2571 = vunpack.c.l.b16 %v750
  %v2572 = vunpack.c.l.b16 %v751
  %v2573 = vunpack.c.l.b16 %v752
  %v2574 = vunpack.c.l.b16 %v753
  %v2575 = vunpack.c.l.b16 %v754
  %v2576 = vunpack.c.l.b16 %v755
  %v2577 = vunpack.c.l.b16 %v756
  %v2578 = vunpack.c.l.b16 %v757
  %v2579 = vunpack.c.l.b16 %v758
  %v2580 = vunpack.c.l.b16 %v759
  %v2581 = vunpack.c.l.b16 %v760
  %v2582 = vunpack.c.l.b16 %v761
  %v2583 = vunpack.c.l.b16 %v762
  %v2584 = vunpack.c.l.b16 %v763
  %v2585 = vunpack.c.l.b16 %v764
  %v2586 = vunpack.c.l.b16 %v765
  %v2587 = vunpack.c.l.b16 %v766
  %v2588 = vunpack.c.l.b16 %v767
  %v2589 = vunpack.c.l.b16 %v768
  %v2590 = vunpack.c.l.b16 %v769
  %v2591 = vunpack.c.l.b16 %v770
  %v2592 = vunpack.c.l.b16 %v771
  %v2593 = vunpack.c.l.b16 %v772
  %v2594 = vunpack.c.l.b16 %v773
  %v2595 = vunpack.c.l.b16 %v774
  %v2596 = vunpack.c.l.b16 %v775
  %v2597 = vunpack.c.l.b16 %v776
  %v2598 = vunpack.c.l.b16 %v777
  %v2599 = vunpack.c.l.b16 %v778
  %v2600 = vunpack.c.l.b16 %v779
  %v2601 = vunpack.c.l.b16 %v780
  %v2602 = vunpack.c.l.b16 %v781
  %v2603 = vunpack.c.l.b16 %v782
  %v2604 = vunpack.c.l.b16 %v783
  %v2605 = vunpack.c.l.b16 %v784
  %v2606 = vunpack.c.l.b16 %v785
  %v2607 = vunpack.c.l.b16 %v786
  %v2608 = vunpack.c.l.b16 %v787
  %v2609 = vunpack.c.l.b16 %v788
  %v2610 = vunpack.c.l.b16 %v789
  %v2611 = vunpack.c.l.b16 %v790
  %v2612 = vunpack.c.l.b16 %v791
  %v2613 = vunpack.c.l.b16 %v792
  %v2614 = vunpack.c.l.b16 %v793
  %v2615 = vunpack.c.l.b16 %v794
  %v2616 = vunpack.c.l.b16 %v795
  %v2617 = vunpack.c.l.b16 %v796
  %v2618 = vunpack.c.l.b16 %v797
  %v2619 = vunpack.c.l.b16 %v798
  %v2620 = vunpack.c.l.b16 %v799
  %v2621 = vunpack.c.l.b16 %v800
  %v2622 = vunpack.c.l.b16 %v801
  %v2623 = vunpack.c.l.b16 %v802
  %v2624 = vunpack.c.l.b16 %v803
  %v2625 = vunpack.c.l.b16 %v804
  %v2626 = vunpack.c.l.b16 %v805
  %v2627 = vunpack.c.l.b16 %v806
  %v2628 = vunpack.c.l.b16 %v807
  %v2629 = vunpack.c.l.b16 %v808
  %v2630 = vunpack.c.l.b16 %v809
  %v2631 = vunpack.c.l.b16 %v810
  %v2632 = vunpack.c.l.b16 %v811
  %v2633 = vunpack.c.l.b16 %v812
  %v2634 = vunpack.c.l.b16 %v813
  %v2635 = vunpack.c.l.b16 %v814
  %v2636 = vunpack.c.l.b16 %v815
  %v2637 = vunpack.c.l.b16 %v816
  %v2638 = vunpack.c.l.b16 %v817
  %v2639 = vunpack.c.l.b16 %v818
  %v2640 = vunpack.c.l.b16 %v819
  %v2641 = vunpack.c.l.b16 %v820
  %v2642 = vunpack.c.l.b16 %v821
  %v2643 = vunpack.c.l.b16 %v822
  %v2644 = vunpack.c.l.b16 %v823
  %v2645 = vunpack.c.l.b16 %v824
  %v2646 = vunpack.c.l.b16 %v825
  %v2647 = vunpack.c.l.b16 %v826
  %v2648 = vunpack.c.l.b16 %v827
  %v2649 = vunpack.c.l.b16 %v828
  %v2650 = vunpack.c.l.b16 %v829
  %v2651 = vunpack.c.l.b16 %v830
  %v2652 = vunpack.c.l.b16 %v831
  %v2653 = vunpack.c.l.b16 %v832
  %v2654 = vunpack.c.l.b16 %v833
  %v2655 = vunpack.c.l.b16 %v834
  %v2656 = vunpack.c.l.b16 %v835
  %v2657 = vunpack.c.l.b16 %v836
  %v2658 = vunpack.c.l.b16 %v837
  %v2659 = vunpack.c.l.b16 %v838
  %v2660 = vunpack.c.l.b16 %v839
  %v2661 = vunpack.c.l.b16 %v840
  %v2662 = vunpack.c.l.b16 %v841
  %v2663 = vunpack.c.l.b16 %v842
  %v2664 = vunpack.c.l.b16 %v843
  %v2665 = vunpack.c.l.b16 %v844
  %v2666 = vunpack.c.l.b16 %v845
  %v2667 = vunpack.c.l.b16 %v846
  %v2668 = vunpack.c.l.b16 %v847
  %v2669 = vunpack.c.l.b16 %v848
  %v2670 = vunpack.c.l.b16 %v849
  %v2671 = vunpack.c.l.b16 %v850
  %v2672 = vunpack.c.l.b16 %v851
  %v2673 = vunpack.c.l.b16 %v852
  %v2674 = vunpack.c.l.b16 %v853
  %v2675 = vunpack.c.l.b16 %v854
  %v2676 = vpack.c.b16 %v1893, %v1892
  %v2677 = vpack.c.b16 %v1895, %v1894
  %v2678 = vpack.c.b16 %v1897, %v1896
  %v2679 = vpack.c.b16 %v1899, %v1898
  %v2680 = vpack.c.b16 %v1901, %v1900
  %v2681 = vpack.c.b16 %v1903, %v1902
  %v2682 = vpack.c.b16 %v1905, %v1904
  %v2683 = vpack.c.b16 %v1907, %v1906
  %v2684 = vpack.c.b16 %v1909, %v1908
  %v2685 = vpack.c.b16 %v1911, %v1910
  %v2686 = vpack.c.b16 %v1913, %v1912
  %v2687 = vpack.c.b16 %v1915, %v1914
  %v2688 = vpack.c.b16 %v1917, %v1916
  %v2689 = vpack.c.b16 %v1919, %v1918
  %v2690 = vpack.c.b16 %v1921, %v1920
  %v2691 = vpack.c.b16 %v1923, %v1922
  %v2692 = vpack.c.b16 %v1925, %v1924
  %v2693 = vpack.c.b16 %v1927, %v1926
  %v2694 = vpack.c.b16 %v1929, %v1928
  %v2695 = vpack.c.b16 %v1931, %v1930
  %v2696 = vpack.c.b16 %v1933, %v1932
  %v2697 = vpack.c.b16 %v1935, %v1934
  %v2698 = vpack.c.b16 %v1937, %v1936
  %v2699 = vpack.c.b16 %v1939, %v1938
  %v2700 = vpack.c.b16 %v1941, %v1940
  %v2701 = vpack.c.b16 %v1943, %v1942
  %v2702 = vpack.c.b16 %v1945, %v1944
  %v2703 = vpack.c.b16 %v1947, %v1946
  %v2704 = vpack.c.b16 %v1949, %v1948
  %v2705 = vpack.c.b16 %v1951, %v1950
  %v2706 = vpack.c.b16 %v1953, %v1952
  %v2707 = vpack.c.b16 %v1955, %v1954
  %v2708 = vpack.c.b16 %v1957, %v1956
  %v2709 = vpack.c.b16 %v1959, %v1958
  %v2710 = vpack.c.b16 %v1961, %v1960
  %v2711 = vpack.c.b16 %v1963, %v1962
  %v2712 = vpack.c.b16 %v1965, %v1964
  %v2713 = vpack.c.b16 %v1967, %v1966
  %v2714 = vpack.c.b16 %v1969, %v1968
  %v2715 = vpack.c.b16 %v1971, %v1970
  %v2716 = vpack.c.b16 %v1973, %v1972
  %v2717 = vpack.c.b16 %v1975, %v1974
  %v2718 = vpack.c.b16 %v1977, %v1976
  %v2719 = vpack.c.b16 %v1979, %v1978
  %v2720 = vpack.c.b16 %v1981, %v1980
  %v2721 = vpack.c.b16 %v1983, %v1982
  %v2722 = vpack.c.b16 %v1985, %v1984
  %v2723 = vpack.c.b16 %v1987, %v1986
  %v2724 = vpack.c.b16 %v1989, %v1988
  %v2725 = vpack.c.b16 %v1991, %v1990
  %v2726 = vpack.c.b16 %v1993, %v1992
  %v2727 = vpack.c.b16 %v1995, %v1994
  %v2728 = vpack.c.b16 %v1997, %v1996
  %v2729 = vpack.c.b16 %v1999, %v1998
  %v2730 = vpack.c.b16 %v2001, %v2000
  %v2731 = vpack.c.b16 %v2003, %v2002
  %v2732 = vpack.c.b16 %v2005, %v2004
  %v2733 = vpack.c.b16 %v2007, %v2006
  %v2734 = vpack.c.b16 %v2009, %v2008
  %v2735 = vpack.c.b16 %v2011, %v2010
  %v2736 = vpack.c.b16 %v2013, %v2012
  %v2737 = vpack.c.b16 %v2015, %v2014
  %v2738 = vpack.c.b16 %v2017, %v2016
  %v2739 = vpack.c.b16 %v2019, %v2018
  %v2740 = vpack.c.b16 %v2021, %v2020
  %v2741 = vpack.c.b16 %v2023, %v2022
  %v2742 = vpack.c.b16 %v2025, %v2024
  %v2743 = vpack.c.b16 %v2027, %v2026
  %v2744 = vpack.c.b16 %v2029, %v2028
  %v2745 = vpack.c.b16 %v2031, %v2030
  %v2746 = vpack.c.b16 %v2033, %v2032
  %v2747 = vpack.c.b16 %v2035, %v2034
  %v2748 = vpack.c.b16 %v2037, %v2036
  %v2749 = vpack.c.b16 %v2039, %v2038
  %v2750 = vpack.c.b16 %v2041, %v2040
  %v2751 = vpack.c.b16 %v2043, %v2042
  %v2752 = vpack.c.b16 %v2045, %v2044
  %v2753 = vpack.c.b16 %v2047, %v2046
  %v2754 = vpack.c.b16 %v2049, %v2048
  %v2755 = vpack.c.b16 %v2051, %v2050
  %v2756 = vpack.c.b16 %v2053, %v2052
  %v2757 = vpack.c.b16 %v2055, %v2054
  %v2758 = vpack.c.b16 %v2057, %v2056
  %v2759 = vpack.c.b16 %v2059, %v2058
  %v2760 = vpack.c.b16 %v2061, %v2060
  %v2761 = vpack.c.b16 %v2063, %v2062
  %v2762 = vpack.c.b16 %v2065, %v2064
  %v2763 = vpack.c.b16 %v2067, %v2066
  %v2764 = vpack.c.b16 %v2069, %v2068
  %v2765 = vpack.c.b16 %v2071, %v2070
  %v2766 = vpack.c.b16 %v2073, %v2072
  %v2767 = vpack.c.b16 %v2075, %v2074
  %v2768 = vpack.c.b16 %v2077, %v2076
  %v2769 = vpack.c.b16 %v2079, %v2078
  %v2770 = vpack.c.b16 %v2081, %v2080
  %v2771 = vpack.c.b16 %v2083, %v2082
  %v2772 = vpack.c.b16 %v2085, %v2084
  %v2773 = vpack.c.b16 %v2087, %v2086
  %v2774 = vpack.c.b16 %v2089, %v2088
  %v2775 = vpack.c.b16 %v2091, %v2090
  %v2776 = vpack.c.b16 %v2093, %v2092
  %v2777 = vpack.c.b16 %v2095, %v2094
  %v2778 = vpack.c.b16 %v2097, %v2096
  %v2779 = vpack.c.b16 %v2099, %v2098
  %v2780 = vpack.c.b16 %v2101, %v2100
  %v2781 = vpack.c.b16 %v2103, %v2102
  %v2782 = vpack.c.b16 %v2105, %v2104
  %v2783 = vpack.c.b16 %v2107, %v2106
  %v2784 = vpack.c.b16 %v2109, %v2108
  %v2785 = vpack.c.b16 %v2111, %v2110
  %v2786 = vpack.c.b16 %v2113, %v2112
  %v2787 = vpack.c.b16 %v2115, %v2114
  %v2788 = vpack.c.b16 %v2117, %v2116
  %v2789 = vpack.c.b16 %v2119, %v2118
  %v2790 = vpack.c.b16 %v2121, %v2120
  %v2791 = vpack.c.b16 %v2123, %v2122
  %v2792 = vpack.c.b16 %v2125, %v2124
  %v2793 = vpack.c.b16 %v2127, %v2126
  %v2794 = vpack.c.b16 %v2129, %v2128
  %v2795 = vpack.c.b16 %v2131, %v2130
  %v2796 = vpack.c.b16 %v2133, %v2132
  %v2797 = vpack.c.b16 %v2135, %v2134
  %v2798 = vpack.c.b16 %v2137, %v2136
  %v2799 = vpack.c.b16 %v2139, %v2138
  %v2800 = vpack.c.b16 %v2141, %v2140
  %v2801 = vpack.c.b16 %v2143, %v2142
  %v2802 = vpack.c.b16 %v2145, %v2144
  %v2803 = vpack.c.b16 %v2147, %v2146
  %v2804 = vpack.c.b16 %v2149, %v2148
  %v2805 = vpack.c.b16 %v2151, %v2150
  %v2806 = vpack.c.b16 %v2153, %v2152
  %v2807 = vpack.c.b16 %v2155, %v2154
  %v2808 = vpack.c.b16 %v2157, %v2156
  %v2809 = vpack.c.b16 %v2159, %v2158
  %v2810 = vpack.c.b16 %v2161, %v2160
  %v2811 = vpack.c.b16 %v2163, %v2162
  %v2812 = vpack.c.b16 %v2165, %v2164
  %v2813 = vpack.c.b16 %v2167, %v2166
  %v2814 = vpack.c.b16 %v2169, %v2168
  %v2815 = vpack.c.b16 %v2171, %v2170
  %v2816 = vpack.c.b16 %v2173, %v2172
  %v2817 = vpack.c.b16 %v2175, %v2174
  %v2818 = vpack.c.b16 %v2177, %v2176
  %v2819 = vpack.c.b16 %v2179, %v2178
  %v2820 = vpack.c.b16 %v2181, %v2180
  %v2821 = vpack.c.b16 %v2183, %v2182
  %v2822 = vpack.c.b16 %v2185, %v2184
  %v2823 = vpack.c.b16 %v2187, %v2186
  %v2824 = vpack.c.b16 %v2189, %v2188
  %v2825 = vpack.c.b16 %v2191, %v2190
  %v2826 = vpack.c.b16 %v2193, %v2192
  %v2827 = vpack.c.b16 %v2195, %v2194
  %v2828 = vpack.c.b16 %v2197, %v2196
  %v2829 = vpack.c.b16 %v2199, %v2198
  %v2830 = vpack.c.b16 %v2201, %v2200
  %v2831 = vpack.c.b16 %v2203, %v2202
  %v2832 = vpack.c.b16 %v2205, %v2204
  %v2833 = vpack.c.b16 %v2207, %v2206
  %v2834 = vpack.c.b16 %v2209, %v2208
  %v2835 = vpack.c.b16 %v2211, %v2210
  %v2836 = vpack.c.b16 %v2213, %v2212
  %v2837 = vpack.c.b16 %v2215, %v2214
  %v2838 = vpack.c.b16 %v2217, %v2216
  %v2839 = vpack.c.b16 %v2219, %v2218
  %v2840 = vpack.c.b16 %v2221, %v2220
  %v2841 = vpack.c.b16 %v2223, %v2222
  %v2842 = vpack.c.b16 %v2225, %v2224
  %v2843 = vpack.c.b16 %v2227, %v2226
  %v2844 = vpack.c.b16 %v2229, %v2228
  %v2845 = vpack.c.b16 %v2231, %v2230
  %v2846 = vpack.c.b16 %v2233, %v2232
  %v2847 = vpack.c.b16 %v2235, %v2234
  %v2848 = vpack.c.b16 %v2237, %v2236
  %v2849 = vpack.c.b16 %v2239, %v2238
  %v2850 = vpack.c.b16 %v2241, %v2240
  %v2851 = vpack.c.b16 %v2243, %v2242
  %v2852 = vpack.c.b16 %v2245, %v2244
  %v2853 = vpack.c.b16 %v2247, %v2246
  %v2854 = vpack.c.b16 %v2249, %v2248
  %v2855 = vpack.c.b16 %v2251, %v2250
  %v2856 = vpack.c.b16 %v2253, %v2252
  %v2857 = vpack.c.b16 %v2255, %v2254
  %v2858 = vpack.c.b16 %v2257, %v2256
  %v2859 = vpack.c.b16 %v2259, %v2258
  %v2860 = vpack.c.b16 %v2261, %v2260
  %v2861 = vpack.c.b16 %v2263, %v2262
  %v2862 = vpack.c.b16 %v2265, %v2264
  %v2863 = vpack.c.b16 %v2267, %v2266
  %v2864 = vpack.c.b16 %v2269, %v2268
  %v2865 = vpack.c.b16 %v2271, %v2270
  %v2866 = vpack.c.b16 %v2273, %v2272
  %v2867 = vpack.c.b16 %v2275, %v2274
  %v2868 = vpack.c.b16 %v2277, %v2276
  %v2869 = vpack.c.b16 %v2279, %v2278
  %v2870 = vpack.c.b16 %v2281, %v2280
  %v2871 = vpack.c.b16 %v2283, %v2282
  %v2872 = vpack.c.b16 %v2285, %v2284
  %v2873 = vpack.c.b16 %v2287, %v2286
  %v2874 = vpack.c.b16 %v2289, %v2288
  %v2875 = vpack.c.b16 %v2291, %v2290
  %v2876 = vpack.c.b16 %v2293, %v2292
  %v2877 = vpack.c.b16 %v2295, %v2294
  %v2878 = vpack.c.b16 %v2297, %v2296
  %v2879 = vpack.c.b16 %v2299, %v2298
  %v2880 = vpack.c.b16 %v2301, %v2300
  %v2881 = vpack.c.b16 %v2303, %v2302
  %v2882 = vpack.c.b16 %v2305, %v2304
  %v2883 = vpack.c.b16 %v2307, %v2306
  %v2884 = vpack.c.b16 %v2309, %v2308
  %v2885 = vpack.c.b16 %v2311, %v2310
  %v2886 = vpack.c.b16 %v2313, %v2312
  %v2887 = vpack.c.b16 %v2315, %v2314
  %v2888 = vpack.c.b16 %v2317, %v2316
  %v2889 = vpack.c.b16 %v2319, %v2318
  %v2890 = vpack.c.b16 %v2321, %v2320
  %v2891 = vpack.c.b16 %v2323, %v2322
  %v2892 = vpack.c.b16 %v2325, %v2324
  %v2893 = vpack.c.b16 %v2327, %v2326
  %v2894 = vpack.c.b16 %v2329, %v2328
  %v2895 = vpack.c.b16 %v2331, %v2330
  %v2896 = vpack.c.b16 %v2333, %v2332
  %v2897 = vpack.c.b16 %v2335, %v2334
  %v2898 = vpack.c.b16 %v2337, %v2336
  %v2899 = vpack.c.b16 %v2339, %v2338
  %v2900 = vpack.c.b16 %v2341, %v2340
  %v2901 = vpack.c.b16 %v2343, %v2342
  %v2902 = vpack.c.b16 %v2345, %v2344
  %v2903 = vpack.c.b16 %v2347, %v2346
  %v2904 = vpack.c.b16 %v2349, %v2348
  %v2905 = vpack.c.b16 %v2351, %v2350
  %v2906 = vpack.c.b16 %v2353, %v2352
  %v2907 = vpack.c.b16 %v2355, %v2354
  %v2908 = vpack.c.b16 %v2357, %v2356
  %v2909 = vpack.c.b16 %v2359, %v2358
  %v2910 = vpack.c.b16 %v2361, %v2360
  %v2911 = vpack.c.b16 %v2363, %v2362
  %v2912 = vpack.c.b16 %v2365, %v2364
  %v2913 = vpack.c.b16 %v2367, %v2366
  %v2914 = vpack.c.b16 %v2369, %v2368
  %v2915 = vpack.c.b16 %v2371, %v2370
  %v2916 = vpack.c.b16 %v2373, %v2372
  %v2917 = vpack.c.b16 %v2375, %v2374
  %v2918 = vpack.c.b16 %v2377, %v2376
  %v2919 = vpack.c.b16 %v2379, %v2378
  %v2920 = vpack.c.b16 %v2381, %v2380
  %v2921 = vpack.c.b16 %v2383, %v2382
  %v2922 = vpack.c.b16 %v2385, %v2384
  %v2923 = vpack.c.b16 %v2387, %v2386
  %v2924 = vpack.c.b16 %v2389, %v2388
  %v2925 = vpack.c.b16 %v2391, %v2390
  %v2926 = vpack.c.b16 %v2393, %v2392
  %v2927 = vpack.c.b16 %v2395, %v2394
  %v2928 = vpack.c.b16 %v2397, %v2396
  %v2929 = vpack.c.b16 %v2399, %v2398
  %v2930 = vpack.c.b16 %v2401, %v2400
  %v2931 = vpack.c.b16 %v2403, %v2402
  %v2932 = vpack.c.b16 %v2405, %v2404
  %v2933 = vpack.c.b16 %v2407, %v2406
  %v2934 = vpack.c.b16 %v2409, %v2408
  %v2935 = vpack.c.b16 %v2411, %v2410
  %v2936 = vpack.c.b16 %v2413, %v2412
  %v2937 = vpack.c.b16 %v2415, %v2414
  %v2938 = vpack.c.b16 %v2417, %v2416
  %v2939 = vpack.c.b16 %v2419, %v2418
  %v2940 = vpack.c.b16 %v2421, %v2420
  %v2941 = vpack.c.b16 %v2423, %v2422
  %v2942 = vpack.c.b16 %v2425, %v2424
  %v2943 = vpack.c.b16 %v2427, %v2426
  %v2944 = vpack.c.b16 %v2429, %v2428
  %v2945 = vpack.c.b16 %v2431, %v2430
  %v2946 = vpack.c.b16 %v2433, %v2432
  %v2947 = vpack.c.b16 %v2435, %v2434
  %v2948 = vpack.c.b16 %v2437, %v2436
  %v2949 = vpack.c.b16 %v2439, %v2438
  %v2950 = vpack.c.b16 %v2441, %v2440
  %v2951 = vpack.c.b16 %v2443, %v2442
  %v2952 = vpack.c.b16 %v2445, %v2444
  %v2953 = vpack.c.b16 %v2447, %v2446
  %v2954 = vpack.c.b16 %v2449, %v2448
  %v2955 = vpack.c.b16 %v2451, %v2450
  %v2956 = vpack.c.b16 %v2453, %v2452
  %v2957 = vpack.c.b16 %v2455, %v2454
  %v2958 = vpack.c.b16 %v2457, %v2456
  %v2959 = vpack.c.b16 %v2459, %v2458
  %v2960 = vpack.c.b16 %v2461, %v2460
  %v2961 = vpack.c.b16 %v2463, %v2462
  %v2962 = vpack.c.b16 %v2465, %v2464
  %v2963 = vpack.c.b16 %v2467, %v2466
  %v2964 = vpack.c.b16 %v2469, %v2468
  %v2965 = vpack.c.b16 %v2471, %v2470
  %v2966 = vpack.c.b16 %v2473, %v2472
  %v2967 = vpack.c.b16 %v2475, %v2474
  %v2968 = vpack.c.b16 %v2477, %v2476
  %v2969 = vpack.c.b16 %v2479, %v2478
  %v2970 = vpack.c.b16 %v2481, %v2480
  %v2971 = vpack.c.b16 %v2483, %v2482
  %v2972 = vpack.c.b16 %v2485, %v2484
  %v2973 = vpack.c.b16 %v2487, %v2486
  %v2974 = vpack.c.b16 %v2489, %v2488
  %v2975 = vpack.c.b16 %v2491, %v2490
  %v2976 = vpack.c.b16 %v2493, %v2492
  %v2977 = vpack.c.b16 %v2495, %v2494
  %v2978 = vpack.c.b16 %v2497, %v2496
  %v2979 = vpack.c.b16 %v2499, %v2498
  %v2980 = vpack.c.b16 %v2501, %v2500
  %v2981 = vpack.c.b16 %v2503, %v2502
  %v2982 = vpack.c.b16 %v2505, %v2504
  %v2983 = vpack.c.b16 %v2507, %v2506
  %v2984 = vpack.c.b16 %v2509, %v2508
  %v2985 = vpack.c.b16 %v2511, %v2510
  %v2986 = vpack.c.b16 %v2513, %v2512
  %v2987 = vpack.c.b16 %v2515, %v2514
  %v2988 = vpack.c.b16 %v2517, %v2516
  %v2989 = vpack.c.b16 %v2519, %v2518
  %v2990 = vpack.c.b16 %v2521, %v2520
  %v2991 = vpack.c.b16 %v2523, %v2522
  %v2992 = vpack.c.b16 %v2525, %v2524
  %v2993 = vpack.c.b16 %v2527, %v2526
  %v2994 = vpack.c.b16 %v2529, %v2528
  %v2995 = vpack.c.b16 %v2531, %v2530
  %v2996 = vpack.c.b16 %v2533, %v2532
  %v2997 = vpack.c.b16 %v2535, %v2534
  %v2998 = vpack.c.b16 %v2537, %v2536
  %v2999 = vpack.c.b16 %v2539, %v2538
  %v3000 = vpack.c.b16 %v2541, %v2540
  %v3001 = vpack.c.b16 %v2543, %v2542
  %v3002 = vpack.c.b16 %v2545, %v2544
  %v3003 = vpack.c.b16 %v2547, %v2546
  %v3004 = vpack.c.b16 %v2549, %v2548
  %v3005 = vpack.c.b16 %v2551, %v2550
  %v3006 = vpack.c.b16 %v2553, %v2552
  %v3007 = vpack.c.b16 %v2555, %v2554
  %v3008 = vpack.c.b16 %v2557, %v2556
  %v3009 = vpack.c.b16 %v2559, %v2558
  %v3010 = vpack.c.b16 %v2561, %v2560
  %v3011 = vpack.c.b16 %v2563, %v2562
  %v3012 = vpack.c.b16 %v2565, %v2564
  %v3013 = vpack.c.b16 %v2567, %v2566
  %v3014 = vpack.c.b16 %v2569, %v2568
  %v3015 = vpack.c.b16 %v2571, %v2570
  %v3016 = vpack.c.b16 %v2573, %v2572
  %v3017 = vpack.c.b16 %v2575, %v2574
  %v3018 = vpack.c.b16 %v2577, %v2576
  %v3019 = vpack.c.b16 %v2579, %v2578
  %v3020 = vpack.c.b16 %v2581, %v2580
  %v3021 = vpack.c.b16 %v2583, %v2582
  %v3022 = vpack.c.b16 %v2585, %v2584
  %v3023 = vpack.c.b16 %v2587, %v2586
  %v3024 = vpack.c.b16 %v2589, %v2588
  %v3025 = vpack.c.b16 %v2591, %v2590
  %v3026 = vpack.c.b16 %v2593, %v2592
  %v3027 = vpack.c.b16 %v2595, %v2594
  %v3028 = vpack.c.b16 %v2597, %v2596
  %v3029 = vpack.c.b16 %v2599, %v2598
  %v3030 = vpack.c.b16 %v2601, %v2600
  %v3031 = vpack.c.b16 %v2603, %v2602
  %v3032 = vpack.c.b16 %v2605, %v2604
  %v3033 = vpack.c.b16 %v2607, %v2606
  %v3034 = vpack.c.b16 %v2609, %v2608
  %v3035 = vpack.c.b16 %v2611, %v2610
  %v3036 = vpack.c.b16 %v2613, %v2612
  %v3037 = vpack.c.b16 %v2615, %v2614
  %v3038 = vpack.c.b16 %v2617, %v2616
  %v3039 = vpack.c.b16 %v2619, %v2618
  %v3040 = vpack.c.b16 %v2621, %v2620
  %v3041 = vpack.c.b16 %v2623, %v2622
  %v3042 = vpack.c.b16 %v2625, %v2624
  %v3043 = vpack.c.b16 %v2627, %v2626
  %v3044 = vpack.c.b16 %v2629, %v2628
  %v3045 = vpack.c.b16 %v2631, %v2630
  %v3046 = vpack.c.b16 %v2633, %v2632
  %v3047 = vpack.c.b16 %v2635, %v2634
  %v3048 = vpack.c.b16 %v2637, %v2636
  %v3049 = vpack.c.b16 %v2639, %v2638
  %v3050 = vpack.c.b16 %v2641, %v2640
  %v3051 = vpack.c.b16 %v2643, %v2642
  %v3052 = vpack.c.b16 %v2645, %v2644
  %v3053 = vpack.c.b16 %v2647, %v2646
  %v3054 = vpack.c.b16 %v2649, %v2648
  %v3055 = vpack.c.b16 %v2651, %v2650
  %v3056 = vpack.c.b16 %v2653, %v2652
  %v3057 = vpack.c.b16 %v2655, %v2654
  %v3058 = vpack.c.b16 %v2657, %v2656
  %v3059 = vpack.c.b16 %v2659, %v2658
  %v3060 = vpack.c.b16 %v2661, %v2660
  %v3061 = vpack.c.b16 %v2663, %v2662
  %v3062 = vpack.c.b16 %v2665, %v2664
  %v3063 = vpack.c.b16 %v2667, %v2666
  %v3064 = vpack.c.b16 %v2669, %v2668
  %v3065 = vpack.c.b16 %v2671, %v2670
  %v3066 = vpack.c.b16 %v2673, %v2672
  %v3067 = vpack.c.b16 %v2675, %v2674
  %3460 = vmatprep.subr.bf16.mxu0 0
  %3461 = vmatpush1.bf16.msra.mxu0 %v2676
  %3462 = vmatprep.subr.bf16.mxu0 0
  %3463 = vmatpush1.bf16.msra.mxu0 %v2677
  %3464 = vmatprep.subr.bf16.mxu0 0
  %3465 = vmatpush1.bf16.msra.mxu0 %v2678
  %3466 = vmatprep.subr.bf16.mxu0 0
  %3467 = vmatpush1.bf16.msra.mxu0 %v2679
  %3468 = vmatprep.subr.bf16.mxu0 0
  %3469 = vmatpush1.bf16.msra.mxu0 %v2680
  %3470 = vmatprep.subr.bf16.mxu0 0
  %3471 = vmatpush1.bf16.msra.mxu0 %v2681
  %3472 = vmatprep.subr.bf16.mxu0 0
  %3473 = vmatpush1.bf16.msra.mxu0 %v2682
  %3474 = vmatprep.subr.bf16.mxu0 0
  %3475 = vmatpush1.bf16.msra.mxu0 %v2683
  %3476 = vmatprep.subr.bf16.mxu0 0
  %3477 = vmatpush1.bf16.msra.mxu0 %v2684
  %3478 = vmatprep.subr.bf16.mxu0 0
  %3479 = vmatpush1.bf16.msra.mxu0 %v2685
  %3480 = vmatprep.subr.bf16.mxu0 0
  %3481 = vmatpush1.bf16.msra.mxu0 %v2686
  %3482 = vmatprep.subr.bf16.mxu0 0
  %3483 = vmatpush1.bf16.msra.mxu0 %v2687
  %3484 = vmatprep.subr.bf16.mxu0 0
  %3485 = vmatpush1.bf16.msra.mxu0 %v2688
  %3486 = vmatprep.subr.bf16.mxu0 0
  %3487 = vmatpush1.bf16.msra.mxu0 %v2689
  %3488 = vmatprep.subr.bf16.mxu0 0
  %3489 = vmatpush1.bf16.msra.mxu0 %v2690
  %3490 = vmatprep.subr.bf16.mxu0 0
  %3491 = vmatpush1.bf16.msra.mxu0 %v2691
  %3492 = vmatprep.mubr.bf16.mxu0 %v1011
  %3493 = vmatmul.mubr.bf16.gmra.mrb[0].mxu0 %v1010
  %v3494 = vpop.f32.mrb[0].mxu0
  %v3495 = vadd.f32 %v860, %v3494
  %v3496 = vpop.f32.mrb[0].mxu0
  %v3497 = vpop.f32.mrb[0].mxu0
  %v3498 = vadd.f32 %v860, %v3497
  %v3499 = vpop.f32.mrb[0].mxu0
  %3500 = vdwg.mxu0
  %3501 = vmatprep.subr.bf16.mxu0 0
  %3502 = vmatpush1.bf16.msra.mxu0 %v2692
  %3503 = vmatprep.subr.bf16.mxu0 0
  %3504 = vmatpush1.bf16.msra.mxu0 %v2693
  %3505 = vmatprep.subr.bf16.mxu0 0
  %3506 = vmatpush1.bf16.msra.mxu0 %v2694
  %3507 = vmatprep.subr.bf16.mxu0 0
  %3508 = vmatpush1.bf16.msra.mxu0 %v2695
  %3509 = vmatprep.subr.bf16.mxu0 0
  %3510 = vmatpush1.bf16.msra.mxu0 %v2696
  %3511 = vmatprep.subr.bf16.mxu0 0
  %3512 = vmatpush1.bf16.msra.mxu0 %v2697
  %3513 = vmatprep.subr.bf16.mxu0 0
  %3514 = vmatpush1.bf16.msra.mxu0 %v2698
  %3515 = vmatprep.subr.bf16.mxu0 0
  %3516 = vmatpush1.bf16.msra.mxu0 %v2699
  %3517 = vmatprep.subr.bf16.mxu0 0
  %3518 = vmatpush1.bf16.msra.mxu0 %v2700
  %3519 = vmatprep.subr.bf16.mxu0 0
  %3520 = vmatpush1.bf16.msra.mxu0 %v2701
  %3521 = vmatprep.subr.bf16.mxu0 0
  %3522 = vmatpush1.bf16.msra.mxu0 %v2702
  %3523 = vmatprep.subr.bf16.mxu0 0
  %3524 = vmatpush1.bf16.msra.mxu0 %v2703
  %3525 = vmatprep.subr.bf16.mxu0 0
  %3526 = vmatpush1.bf16.msra.mxu0 %v2704
  %3527 = vmatprep.subr.bf16.mxu0 0
  %3528 = vmatpush1.bf16.msra.mxu0 %v2705
  %3529 = vmatprep.subr.bf16.mxu0 0
  %3530 = vmatpush1.bf16.msra.mxu0 %v2706
  %3531 = vmatprep.subr.bf16.mxu0 0
  %3532 = vmatpush1.bf16.msra.mxu0 %v2707
  %3533 = vmatprep.mubr.bf16.mxu0 %v1013
  %3534 = vmatmul.mubr.bf16.gmra.mrb[0].mxu0 %v1012
  %v3535 = vpop.f32.mrb[0].mxu0
  %v3536 = vadd.f32 %v3495, %v3535
  %v3537 = vpop.f32.mrb[0].mxu0
  %v3538 = vpop.f32.mrb[0].mxu0
  %v3539 = vadd.f32 %v3498, %v3538
  %v3540 = vpop.f32.mrb[0].mxu0
  %3541 = vdwg.mxu0
  %3542 = vmatprep.subr.bf16.mxu0 0
  %3543 = vmatpush1.bf16.msra.mxu0 %v2708
  %3544 = vmatprep.subr.bf16.mxu0 0
  %3545 = vmatpush1.bf16.msra.mxu0 %v2709
  %3546 = vmatprep.subr.bf16.mxu0 0
  %3547 = vmatpush1.bf16.msra.mxu0 %v2710
  %3548 = vmatprep.subr.bf16.mxu0 0
  %3549 = vmatpush1.bf16.msra.mxu0 %v2711
  %3550 = vmatprep.subr.bf16.mxu0 0
  %3551 = vmatpush1.bf16.msra.mxu0 %v2712
  %3552 = vmatprep.subr.bf16.mxu0 0
  %3553 = vmatpush1.bf16.msra.mxu0 %v2713
  %3554 = vmatprep.subr.bf16.mxu0 0
  %3555 = vmatpush1.bf16.msra.mxu0 %v2714
  %3556 = vmatprep.subr.bf16.mxu0 0
  %3557 = vmatpush1.bf16.msra.mxu0 %v2715
  %3558 = vmatprep.subr.bf16.mxu0 0
  %3559 = vmatpush1.bf16.msra.mxu0 %v2716
  %3560 = vmatprep.subr.bf16.mxu0 0
  %3561 = vmatpush1.bf16.msra.mxu0 %v2717
  %3562 = vmatprep.subr.bf16.mxu0 0
  %3563 = vmatpush1.bf16.msra.mxu0 %v2718
  %3564 = vmatprep.subr.bf16.mxu0 0
  %3565 = vmatpush1.bf16.msra.mxu0 %v2719
  %3566 = vmatprep.subr.bf16.mxu0 0
  %3567 = vmatpush1.bf16.msra.mxu0 %v2720
  %3568 = vmatprep.subr.bf16.mxu0 0
  %3569 = vmatpush1.bf16.msra.mxu0 %v2721
  %3570 = vmatprep.subr.bf16.mxu0 0
  %3571 = vmatpush1.bf16.msra.mxu0 %v2722
  %3572 = vmatprep.subr.bf16.mxu0 0
  %3573 = vmatpush1.bf16.msra.mxu0 %v2723
  %3574 = vmatprep.mubr.bf16.mxu0 %v1015
  %3575 = vmatmul.mubr.bf16.gmra.mrb[0].mxu0 %v1014
  %v3576 = vpop.f32.mrb[0].mxu0
  %v3577 = vadd.f32 %v3536, %v3576
  %v3578 = vpop.f32.mrb[0].mxu0
  %v3579 = vpop.f32.mrb[0].mxu0
  %v3580 = vadd.f32 %v3539, %v3579
  %v3581 = vpop.f32.mrb[0].mxu0
  %3582 = vdwg.mxu0
  %3583 = vmatprep.subr.bf16.mxu0 0
  %3584 = vmatpush1.bf16.msra.mxu0 %v2724
  %3585 = vmatprep.subr.bf16.mxu0 0
  %3586 = vmatpush1.bf16.msra.mxu0 %v2725
  %3587 = vmatprep.subr.bf16.mxu0 0
  %3588 = vmatpush1.bf16.msra.mxu0 %v2726
  %3589 = vmatprep.subr.bf16.mxu0 0
  %3590 = vmatpush1.bf16.msra.mxu0 %v2727
  %3591 = vmatprep.subr.bf16.mxu0 0
  %3592 = vmatpush1.bf16.msra.mxu0 %v2728
  %3593 = vmatprep.subr.bf16.mxu0 0
  %3594 = vmatpush1.bf16.msra.mxu0 %v2729
  %3595 = vmatprep.subr.bf16.mxu0 0
  %3596 = vmatpush1.bf16.msra.mxu0 %v2730
  %3597 = vmatprep.subr.bf16.mxu0 0
  %3598 = vmatpush1.bf16.msra.mxu0 %v2731
  %3599 = vmatprep.subr.bf16.mxu0 0
  %3600 = vmatpush1.bf16.msra.mxu0 %v2732
  %3601 = vmatprep.subr.bf16.mxu0 0
  %3602 = vmatpush1.bf16.msra.mxu0 %v2733
  %3603 = vmatprep.subr.bf16.mxu0 0
  %3604 = vmatpush1.bf16.msra.mxu0 %v2734
  %3605 = vmatprep.subr.bf16.mxu0 0
  %3606 = vmatpush1.bf16.msra.mxu0 %v2735
  %3607 = vmatprep.subr.bf16.mxu0 0
  %3608 = vmatpush1.bf16.msra.mxu0 %v2736
  %3609 = vmatprep.subr.bf16.mxu0 0
  %3610 = vmatpush1.bf16.msra.mxu0 %v2737
  %3611 = vmatprep.subr.bf16.mxu0 0
  %3612 = vmatpush1.bf16.msra.mxu0 %v2738
  %3613 = vmatprep.subr.bf16.mxu0 0
  %3614 = vmatpush1.bf16.msra.mxu0 %v2739
  %3615 = vmatprep.mubr.bf16.mxu0 %v1017
  %3616 = vmatmul.mubr.bf16.gmra.mrb[0].mxu0 %v1016
  %v3617 = vpop.f32.mrb[0].mxu0
  %v3618 = vadd.f32 %v3577, %v3617
  %v3619 = vpop.f32.mrb[0].mxu0
  %v3620 = vpop.f32.mrb[0].mxu0
  %v3621 = vadd.f32 %v3580, %v3620
  %v3622 = vpop.f32.mrb[0].mxu0
  %3623 = vdwg.mxu0
  %3624 = vmatprep.subr.bf16.mxu0 0
  %3625 = vmatpush1.bf16.msra.mxu0 %v2740
  %3626 = vmatprep.subr.bf16.mxu0 0
  %3627 = vmatpush1.bf16.msra.mxu0 %v2741
  %3628 = vmatprep.subr.bf16.mxu0 0
  %3629 = vmatpush1.bf16.msra.mxu0 %v2742
  %3630 = vmatprep.subr.bf16.mxu0 0
  %3631 = vmatpush1.bf16.msra.mxu0 %v2743
  %3632 = vmatprep.subr.bf16.mxu0 0
  %3633 = vmatpush1.bf16.msra.mxu0 %v2744
  %3634 = vmatprep.subr.bf16.mxu0 0
  %3635 = vmatpush1.bf16.msra.mxu0 %v2745
  %3636 = vmatprep.subr.bf16.mxu0 0
  %3637 = vmatpush1.bf16.msra.mxu0 %v2746
  %3638 = vmatprep.subr.bf16.mxu0 0
  %3639 = vmatpush1.bf16.msra.mxu0 %v2747
  %3640 = vmatprep.subr.bf16.mxu0 0
  %3641 = vmatpush1.bf16.msra.mxu0 %v2748
  %3642 = vmatprep.subr.bf16.mxu0 0
  %3643 = vmatpush1.bf16.msra.mxu0 %v2749
  %3644 = vmatprep.subr.bf16.mxu0 0
  %3645 = vmatpush1.bf16.msra.mxu0 %v2750
  %3646 = vmatprep.subr.bf16.mxu0 0
  %3647 = vmatpush1.bf16.msra.mxu0 %v2751
  %3648 = vmatprep.subr.bf16.mxu0 0
  %3649 = vmatpush1.bf16.msra.mxu0 %v2752
  %3650 = vmatprep.subr.bf16.mxu0 0
  %3651 = vmatpush1.bf16.msra.mxu0 %v2753
  %3652 = vmatprep.subr.bf16.mxu0 0
  %3653 = vmatpush1.bf16.msra.mxu0 %v2754
  %3654 = vmatprep.subr.bf16.mxu0 0
  %3655 = vmatpush1.bf16.msra.mxu0 %v2755
  %3656 = vmatprep.mubr.bf16.mxu0 %v1019
  %3657 = vmatmul.mubr.bf16.gmra.mrb[0].mxu0 %v1018
  %v3658 = vpop.f32.mrb[0].mxu0
  %v3659 = vadd.f32 %v3618, %v3658
  %v3660 = vpop.f32.mrb[0].mxu0
  %v3661 = vpop.f32.mrb[0].mxu0
  %v3662 = vadd.f32 %v3621, %v3661
  %v3663 = vpop.f32.mrb[0].mxu0
  %3664 = vdwg.mxu0
  %3665 = vmatprep.subr.bf16.mxu0 0
  %3666 = vmatpush1.bf16.msra.mxu0 %v2756
  %3667 = vmatprep.subr.bf16.mxu0 0
  %3668 = vmatpush1.bf16.msra.mxu0 %v2757
  %3669 = vmatprep.subr.bf16.mxu0 0
  %3670 = vmatpush1.bf16.msra.mxu0 %v2758
  %3671 = vmatprep.subr.bf16.mxu0 0
  %3672 = vmatpush1.bf16.msra.mxu0 %v2759
  %3673 = vmatprep.subr.bf16.mxu0 0
  %3674 = vmatpush1.bf16.msra.mxu0 %v2760
  %3675 = vmatprep.subr.bf16.mxu0 0
  %3676 = vmatpush1.bf16.msra.mxu0 %v2761
  %3677 = vmatprep.subr.bf16.mxu0 0
  %3678 = vmatpush1.bf16.msra.mxu0 %v2762
  %3679 = vmatprep.subr.bf16.mxu0 0
  %3680 = vmatpush1.bf16.msra.mxu0 %v2763
  %3681 = vmatprep.subr.bf16.mxu0 0
  %3682 = vmatpush1.bf16.msra.mxu0 %v2764
  %3683 = vmatprep.subr.bf16.mxu0 0
  %3684 = vmatpush1.bf16.msra.mxu0 %v2765
  %3685 = vmatprep.subr.bf16.mxu0 0
  %3686 = vmatpush1.bf16.msra.mxu0 %v2766
  %3687 = vmatprep.subr.bf16.mxu0 0
  %3688 = vmatpush1.bf16.msra.mxu0 %v2767
  %3689 = vmatprep.subr.bf16.mxu0 0
  %3690 = vmatpush1.bf16.msra.mxu0 %v2768
  %3691 = vmatprep.subr.bf16.mxu0 0
  %3692 = vmatpush1.bf16.msra.mxu0 %v2769
  %3693 = vmatprep.subr.bf16.mxu0 0
  %3694 = vmatpush1.bf16.msra.mxu0 %v2770
  %3695 = vmatprep.subr.bf16.mxu0 0
  %3696 = vmatpush1.bf16.msra.mxu0 %v2771
  %3697 = vmatprep.mubr.bf16.mxu0 %v1021
  %3698 = vmatmul.mubr.bf16.gmra.mrb[0].mxu0 %v1020
  %v3699 = vpop.f32.mrb[0].mxu0
  %v3700 = vadd.f32 %v3659, %v3699
  %v3701 = vpop.f32.mrb[0].mxu0
  %v3702 = vpop.f32.mrb[0].mxu0
  %v3703 = vadd.f32 %v3662, %v3702
  %v3704 = vpop.f32.mrb[0].mxu0
  %3705 = vdwg.mxu0
  %3706 = vmatprep.subr.bf16.mxu0 0
  %3707 = vmatpush1.bf16.msra.mxu0 %v2772
  %3708 = vmatprep.subr.bf16.mxu0 0
  %3709 = vmatpush1.bf16.msra.mxu0 %v2773
  %3710 = vmatprep.subr.bf16.mxu0 0
  %3711 = vmatpush1.bf16.msra.mxu0 %v2774
  %3712 = vmatprep.subr.bf16.mxu0 0
  %3713 = vmatpush1.bf16.msra.mxu0 %v2775
  %3714 = vmatprep.subr.bf16.mxu0 0
  %3715 = vmatpush1.bf16.msra.mxu0 %v2776
  %3716 = vmatprep.subr.bf16.mxu0 0
  %3717 = vmatpush1.bf16.msra.mxu0 %v2777
  %3718 = vmatprep.subr.bf16.mxu0 0
  %3719 = vmatpush1.bf16.msra.mxu0 %v2778
  %3720 = vmatprep.subr.bf16.mxu0 0
  %3721 = vmatpush1.bf16.msra.mxu0 %v2779
  %3722 = vmatprep.subr.bf16.mxu0 0
  %3723 = vmatpush1.bf16.msra.mxu0 %v2780
  %3724 = vmatprep.subr.bf16.mxu0 0
  %3725 = vmatpush1.bf16.msra.mxu0 %v2781
  %3726 = vmatprep.subr.bf16.mxu0 0
  %3727 = vmatpush1.bf16.msra.mxu0 %v2782
  %3728 = vmatprep.subr.bf16.mxu0 0
  %3729 = vmatpush1.bf16.msra.mxu0 %v2783
  %3730 = vmatprep.subr.bf16.mxu0 0
  %3731 = vmatpush1.bf16.msra.mxu0 %v2784
  %3732 = vmatprep.subr.bf16.mxu0 0
  %3733 = vmatpush1.bf16.msra.mxu0 %v2785
  %3734 = vmatprep.subr.bf16.mxu0 0
  %3735 = vmatpush1.bf16.msra.mxu0 %v2786
  %3736 = vmatprep.subr.bf16.mxu0 0
  %3737 = vmatpush1.bf16.msra.mxu0 %v2787
  %3738 = vmatprep.mubr.bf16.mxu0 %v1023
  %3739 = vmatmul.mubr.bf16.gmra.mrb[0].mxu0 %v1022
  %v3740 = vpop.f32.mrb[0].mxu0
  %v3741 = vadd.f32 %v3700, %v3740
  %v3742 = vpop.f32.mrb[0].mxu0
  %v3743 = vpop.f32.mrb[0].mxu0
  %v3744 = vadd.f32 %v3703, %v3743
  %v3745 = vpop.f32.mrb[0].mxu0
  %3746 = vdwg.mxu0
  %3747 = vmatprep.subr.bf16.mxu0 0
  %3748 = vmatpush1.bf16.msra.mxu0 %v2788
  %3749 = vmatprep.subr.bf16.mxu0 0
  %3750 = vmatpush1.bf16.msra.mxu0 %v2789
  %3751 = vmatprep.subr.bf16.mxu0 0
  %3752 = vmatpush1.bf16.msra.mxu0 %v2790
  %3753 = vmatprep.subr.bf16.mxu0 0
  %3754 = vmatpush1.bf16.msra.mxu0 %v2791
  %3755 = vmatprep.subr.bf16.mxu0 0
  %3756 = vmatpush1.bf16.msra.mxu0 %v2792
  %3757 = vmatprep.subr.bf16.mxu0 0
  %3758 = vmatpush1.bf16.msra.mxu0 %v2793
  %3759 = vmatprep.subr.bf16.mxu0 0
  %3760 = vmatpush1.bf16.msra.mxu0 %v2794
  %3761 = vmatprep.subr.bf16.mxu0 0
  %3762 = vmatpush1.bf16.msra.mxu0 %v2795
  %3763 = vmatprep.subr.bf16.mxu0 0
  %3764 = vmatpush1.bf16.msra.mxu0 %v2796
  %3765 = vmatprep.subr.bf16.mxu0 0
  %3766 = vmatpush1.bf16.msra.mxu0 %v2797
  %3767 = vmatprep.subr.bf16.mxu0 0
  %3768 = vmatpush1.bf16.msra.mxu0 %v2798
  %3769 = vmatprep.subr.bf16.mxu0 0
  %3770 = vmatpush1.bf16.msra.mxu0 %v2799
  %3771 = vmatprep.subr.bf16.mxu0 0
  %3772 = vmatpush1.bf16.msra.mxu0 %v2800
  %3773 = vmatprep.subr.bf16.mxu0 0
  %3774 = vmatpush1.bf16.msra.mxu0 %v2801
  %3775 = vmatprep.subr.bf16.mxu0 0
  %3776 = vmatpush1.bf16.msra.mxu0 %v2802
  %3777 = vmatprep.subr.bf16.mxu0 0
  %3778 = vmatpush1.bf16.msra.mxu0 %v2803
  %3779 = vmatprep.mubr.bf16.mxu0 %v1025
  %3780 = vmatmul.mubr.bf16.gmra.mrb[0].mxu0 %v1024
  %v3781 = vpop.f32.mrb[0].mxu0
  %v3782 = vadd.f32 %v3741, %v3781
  %v3783 = vpop.f32.mrb[0].mxu0
  %v3784 = vpop.f32.mrb[0].mxu0
  %v3785 = vadd.f32 %v3744, %v3784
  %v3786 = vpop.f32.mrb[0].mxu0
  %3787 = vdwg.mxu0
  %3788 = vmatprep.subr.bf16.mxu0 0
  %3789 = vmatpush1.bf16.msra.mxu0 %v2804
  %3790 = vmatprep.subr.bf16.mxu0 0
  %3791 = vmatpush1.bf16.msra.mxu0 %v2805
  %3792 = vmatprep.subr.bf16.mxu0 0
  %3793 = vmatpush1.bf16.msra.mxu0 %v2806
  %3794 = vmatprep.subr.bf16.mxu0 0
  %3795 = vmatpush1.bf16.msra.mxu0 %v2807
  %3796 = vmatprep.subr.bf16.mxu0 0
  %3797 = vmatpush1.bf16.msra.mxu0 %v2808
  %3798 = vmatprep.subr.bf16.mxu0 0
  %3799 = vmatpush1.bf16.msra.mxu0 %v2809
  %3800 = vmatprep.subr.bf16.mxu0 0
  %3801 = vmatpush1.bf16.msra.mxu0 %v2810
  %3802 = vmatprep.subr.bf16.mxu0 0
  %3803 = vmatpush1.bf16.msra.mxu0 %v2811
  %3804 = vmatprep.subr.bf16.mxu0 0
  %3805 = vmatpush1.bf16.msra.mxu0 %v2812
  %3806 = vmatprep.subr.bf16.mxu0 0
  %3807 = vmatpush1.bf16.msra.mxu0 %v2813
  %3808 = vmatprep.subr.bf16.mxu0 0
  %3809 = vmatpush1.bf16.msra.mxu0 %v2814
  %3810 = vmatprep.subr.bf16.mxu0 0
  %3811 = vmatpush1.bf16.msra.mxu0 %v2815
  %3812 = vmatprep.subr.bf16.mxu0 0
  %3813 = vmatpush1.bf16.msra.mxu0 %v2816
  %3814 = vmatprep.subr.bf16.mxu0 0
  %3815 = vmatpush1.bf16.msra.mxu0 %v2817
  %3816 = vmatprep.subr.bf16.mxu0 0
  %3817 = vmatpush1.bf16.msra.mxu0 %v2818
  %3818 = vmatprep.subr.bf16.mxu0 0
  %3819 = vmatpush1.bf16.msra.mxu0 %v2819
  %3820 = vmatprep.mubr.bf16.mxu0 %v1027
  %3821 = vmatmul.mubr.bf16.gmra.mrb[0].mxu0 %v1026
  %v3822 = vpop.f32.mrb[0].mxu0
  %v3823 = vadd.f32 %v3782, %v3822
  %v3824 = vpop.f32.mrb[0].mxu0
  %v3825 = vpop.f32.mrb[0].mxu0
  %v3826 = vadd.f32 %v3785, %v3825
  %v3827 = vpop.f32.mrb[0].mxu0
  %3828 = vdwg.mxu0
  %3829 = vmatprep.subr.bf16.mxu0 0
  %3830 = vmatpush1.bf16.msra.mxu0 %v2820
  %3831 = vmatprep.subr.bf16.mxu0 0
  %3832 = vmatpush1.bf16.msra.mxu0 %v2821
  %3833 = vmatprep.subr.bf16.mxu0 0
  %3834 = vmatpush1.bf16.msra.mxu0 %v2822
  %3835 = vmatprep.subr.bf16.mxu0 0
  %3836 = vmatpush1.bf16.msra.mxu0 %v2823
  %3837 = vmatprep.subr.bf16.mxu0 0
  %3838 = vmatpush1.bf16.msra.mxu0 %v2824
  %3839 = vmatprep.subr.bf16.mxu0 0
  %3840 = vmatpush1.bf16.msra.mxu0 %v2825
  %3841 = vmatprep.subr.bf16.mxu0 0
  %3842 = vmatpush1.bf16.msra.mxu0 %v2826
  %3843 = vmatprep.subr.bf16.mxu0 0
  %3844 = vmatpush1.bf16.msra.mxu0 %v2827
  %3845 = vmatprep.subr.bf16.mxu0 0
  %3846 = vmatpush1.bf16.msra.mxu0 %v2828
  %3847 = vmatprep.subr.bf16.mxu0 0
  %3848 = vmatpush1.bf16.msra.mxu0 %v2829
  %3849 = vmatprep.subr.bf16.mxu0 0
  %3850 = vmatpush1.bf16.msra.mxu0 %v2830
  %3851 = vmatprep.subr.bf16.mxu0 0
  %3852 = vmatpush1.bf16.msra.mxu0 %v2831
  %3853 = vmatprep.subr.bf16.mxu0 0
  %3854 = vmatpush1.bf16.msra.mxu0 %v2832
  %3855 = vmatprep.subr.bf16.mxu0 0
  %3856 = vmatpush1.bf16.msra.mxu0 %v2833
  %3857 = vmatprep.subr.bf16.mxu0 0
  %3858 = vmatpush1.bf16.msra.mxu0 %v2834
  %3859 = vmatprep.subr.bf16.mxu0 0
  %3860 = vmatpush1.bf16.msra.mxu0 %v2835
  %3861 = vmatprep.mubr.bf16.mxu0 %v1029
  %3862 = vmatmul.mubr.bf16.gmra.mrb[0].mxu0 %v1028
  %v3863 = vpop.f32.mrb[0].mxu0
  %v3864 = vadd.f32 %v3823, %v3863
  %v3865 = vpop.f32.mrb[0].mxu0
  %v3866 = vpop.f32.mrb[0].mxu0
  %v3867 = vadd.f32 %v3826, %v3866
  %v3868 = vpop.f32.mrb[0].mxu0
  %3869 = vdwg.mxu0
  %3870 = vmatprep.subr.bf16.mxu0 0
  %3871 = vmatpush1.bf16.msra.mxu0 %v2836
  %3872 = vmatprep.subr.bf16.mxu0 0
  %3873 = vmatpush1.bf16.msra.mxu0 %v2837
  %3874 = vmatprep.subr.bf16.mxu0 0
  %3875 = vmatpush1.bf16.msra.mxu0 %v2838
  %3876 = vmatprep.subr.bf16.mxu0 0
  %3877 = vmatpush1.bf16.msra.mxu0 %v2839
  %3878 = vmatprep.subr.bf16.mxu0 0
  %3879 = vmatpush1.bf16.msra.mxu0 %v2840
  %3880 = vmatprep.subr.bf16.mxu0 0
  %3881 = vmatpush1.bf16.msra.mxu0 %v2841
  %3882 = vmatprep.subr.bf16.mxu0 0
  %3883 = vmatpush1.bf16.msra.mxu0 %v2842
  %3884 = vmatprep.subr.bf16.mxu0 0
  %3885 = vmatpush1.bf16.msra.mxu0 %v2843
  %3886 = vmatprep.subr.bf16.mxu0 0
  %3887 = vmatpush1.bf16.msra.mxu0 %v2844
  %3888 = vmatprep.subr.bf16.mxu0 0
  %3889 = vmatpush1.bf16.msra.mxu0 %v2845
  %3890 = vmatprep.subr.bf16.mxu0 0
  %3891 = vmatpush1.bf16.msra.mxu0 %v2846
  %3892 = vmatprep.subr.bf16.mxu0 0
  %3893 = vmatpush1.bf16.msra.mxu0 %v2847
  %3894 = vmatprep.subr.bf16.mxu0 0
  %3895 = vmatpush1.bf16.msra.mxu0 %v2848
  %3896 = vmatprep.subr.bf16.mxu0 0
  %3897 = vmatpush1.bf16.msra.mxu0 %v2849
  %3898 = vmatprep.subr.bf16.mxu0 0
  %3899 = vmatpush1.bf16.msra.mxu0 %v2850
  %3900 = vmatprep.subr.bf16.mxu0 0
  %3901 = vmatpush1.bf16.msra.mxu0 %v2851
  %3902 = vmatprep.mubr.bf16.mxu0 %v1031
  %3903 = vmatmul.mubr.bf16.gmra.mrb[0].mxu0 %v1030
  %v3904 = vpop.f32.mrb[0].mxu0
  %v3905 = vadd.f32 %v3864, %v3904
  %v3906 = vpop.f32.mrb[0].mxu0
  %v3907 = vpop.f32.mrb[0].mxu0
  %v3908 = vadd.f32 %v3867, %v3907
  %v3909 = vpop.f32.mrb[0].mxu0
  %3910 = vdwg.mxu0
  %3911 = vmatprep.subr.bf16.mxu0 0
  %3912 = vmatpush1.bf16.msra.mxu0 %v2852
  %3913 = vmatprep.subr.bf16.mxu0 0
  %3914 = vmatpush1.bf16.msra.mxu0 %v2853
  %3915 = vmatprep.subr.bf16.mxu0 0
  %3916 = vmatpush1.bf16.msra.mxu0 %v2854
  %3917 = vmatprep.subr.bf16.mxu0 0
  %3918 = vmatpush1.bf16.msra.mxu0 %v2855
  %3919 = vmatprep.subr.bf16.mxu0 0
  %3920 = vmatpush1.bf16.msra.mxu0 %v2856
  %3921 = vmatprep.subr.bf16.mxu0 0
  %3922 = vmatpush1.bf16.msra.mxu0 %v2857
  %3923 = vmatprep.subr.bf16.mxu0 0
  %3924 = vmatpush1.bf16.msra.mxu0 %v2858
  %3925 = vmatprep.subr.bf16.mxu0 0
  %3926 = vmatpush1.bf16.msra.mxu0 %v2859
  %3927 = vmatprep.subr.bf16.mxu0 0
  %3928 = vmatpush1.bf16.msra.mxu0 %v2860
  %3929 = vmatprep.subr.bf16.mxu0 0
  %3930 = vmatpush1.bf16.msra.mxu0 %v2861
  %3931 = vmatprep.subr.bf16.mxu0 0
  %3932 = vmatpush1.bf16.msra.mxu0 %v2862
  %3933 = vmatprep.subr.bf16.mxu0 0
  %3934 = vmatpush1.bf16.msra.mxu0 %v2863
  %3935 = vmatprep.subr.bf16.mxu0 0
  %3936 = vmatpush1.bf16.msra.mxu0 %v2864
  %3937 = vmatprep.subr.bf16.mxu0 0
  %3938 = vmatpush1.bf16.msra.mxu0 %v2865
  %3939 = vmatprep.subr.bf16.mxu0 0
  %3940 = vmatpush1.bf16.msra.mxu0 %v2866
  %3941 = vmatprep.subr.bf16.mxu0 0
  %3942 = vmatpush1.bf16.msra.mxu0 %v2867
  %3943 = vmatprep.mubr.bf16.mxu0 %v1033
  %3944 = vmatmul.mubr.bf16.gmra.mrb[0].mxu0 %v1032
  %v3945 = vpop.f32.mrb[0].mxu0
  %v3946 = vadd.f32 %v3905, %v3945
  %v3947 = vpop.f32.mrb[0].mxu0
  %v3948 = vpop.f32.mrb[0].mxu0
  %v3949 = vadd.f32 %v3908, %v3948
  %v3950 = vpop.f32.mrb[0].mxu0
  %3951 = vdwg.mxu0
  %3952 = vmatprep.subr.bf16.mxu0 0
  %3953 = vmatpush1.bf16.msra.mxu0 %v2868
  %3954 = vmatprep.subr.bf16.mxu0 0
  %3955 = vmatpush1.bf16.msra.mxu0 %v2869
  %3956 = vmatprep.subr.bf16.mxu0 0
  %3957 = vmatpush1.bf16.msra.mxu0 %v2870
  %3958 = vmatprep.subr.bf16.mxu0 0
  %3959 = vmatpush1.bf16.msra.mxu0 %v2871
  %3960 = vmatprep.subr.bf16.mxu0 0
  %3961 = vmatpush1.bf16.msra.mxu0 %v2872
  %3962 = vmatprep.subr.bf16.mxu0 0
  %3963 = vmatpush1.bf16.msra.mxu0 %v2873
  %3964 = vmatprep.subr.bf16.mxu0 0
  %3965 = vmatpush1.bf16.msra.mxu0 %v2874
  %3966 = vmatprep.subr.bf16.mxu0 0
  %3967 = vmatpush1.bf16.msra.mxu0 %v2875
  %3968 = vmatprep.subr.bf16.mxu0 0
  %3969 = vmatpush1.bf16.msra.mxu0 %v2876
  %3970 = vmatprep.subr.bf16.mxu0 0
  %3971 = vmatpush1.bf16.msra.mxu0 %v2877
  %3972 = vmatprep.subr.bf16.mxu0 0
  %3973 = vmatpush1.bf16.msra.mxu0 %v2878
  %3974 = vmatprep.subr.bf16.mxu0 0
  %3975 = vmatpush1.bf16.msra.mxu0 %v2879
  %3976 = vmatprep.subr.bf16.mxu0 0
  %3977 = vmatpush1.bf16.msra.mxu0 %v2880
  %3978 = vmatprep.subr.bf16.mxu0 0
  %3979 = vmatpush1.bf16.msra.mxu0 %v2881
  %3980 = vmatprep.subr.bf16.mxu0 0
  %3981 = vmatpush1.bf16.msra.mxu0 %v2882
  %3982 = vmatprep.subr.bf16.mxu0 0
  %3983 = vmatpush1.bf16.msra.mxu0 %v2883
  %3984 = vmatprep.mubr.bf16.mxu0 %v1035
  %3985 = vmatmul.mubr.bf16.gmra.mrb[0].mxu0 %v1034
  %v3986 = vpop.f32.mrb[0].mxu0
  %v3987 = vadd.f32 %v3946, %v3986
  %v3988 = vpop.f32.mrb[0].mxu0
  %v3989 = vpop.f32.mrb[0].mxu0
  %v3990 = vadd.f32 %v3949, %v3989
  %v3991 = vpop.f32.mrb[0].mxu0
  %3992 = vdwg.mxu0
  %3993 = vmatprep.subr.bf16.mxu0 0
  %3994 = vmatpush1.bf16.msra.mxu0 %v2884
  %3995 = vmatprep.subr.bf16.mxu0 0
  %3996 = vmatpush1.bf16.msra.mxu0 %v2885
  %3997 = vmatprep.subr.bf16.mxu0 0
  %3998 = vmatpush1.bf16.msra.mxu0 %v2886
  %3999 = vmatprep.subr.bf16.mxu0 0
  %4000 = vmatpush1.bf16.msra.mxu0 %v2887
  %4001 = vmatprep.subr.bf16.mxu0 0
  %4002 = vmatpush1.bf16.msra.mxu0 %v2888
  %4003 = vmatprep.subr.bf16.mxu0 0
  %4004 = vmatpush1.bf16.msra.mxu0 %v2889
  %4005 = vmatprep.subr.bf16.mxu0 0
  %4006 = vmatpush1.bf16.msra.mxu0 %v2890
  %4007 = vmatprep.subr.bf16.mxu0 0
  %4008 = vmatpush1.bf16.msra.mxu0 %v2891
  %4009 = vmatprep.subr.bf16.mxu0 0
  %4010 = vmatpush1.bf16.msra.mxu0 %v2892
  %4011 = vmatprep.subr.bf16.mxu0 0
  %4012 = vmatpush1.bf16.msra.mxu0 %v2893
  %4013 = vmatprep.subr.bf16.mxu0 0
  %4014 = vmatpush1.bf16.msra.mxu0 %v2894
  %4015 = vmatprep.subr.bf16.mxu0 0
  %4016 = vmatpush1.bf16.msra.mxu0 %v2895
  %4017 = vmatprep.subr.bf16.mxu0 0
  %4018 = vmatpush1.bf16.msra.mxu0 %v2896
  %4019 = vmatprep.subr.bf16.mxu0 0
  %4020 = vmatpush1.bf16.msra.mxu0 %v2897
  %4021 = vmatprep.subr.bf16.mxu0 0
  %4022 = vmatpush1.bf16.msra.mxu0 %v2898
  %4023 = vmatprep.subr.bf16.mxu0 0
  %4024 = vmatpush1.bf16.msra.mxu0 %v2899
  %4025 = vmatprep.mubr.bf16.mxu0 %v1037
  %4026 = vmatmul.mubr.bf16.gmra.mrb[0].mxu0 %v1036
  %v4027 = vpop.f32.mrb[0].mxu0
  %v4028 = vadd.f32 %v3987, %v4027
  %v4029 = vpop.f32.mrb[0].mxu0
  %v4030 = vpop.f32.mrb[0].mxu0
  %v4031 = vadd.f32 %v3990, %v4030
  %v4032 = vpop.f32.mrb[0].mxu0
  %4033 = vdwg.mxu0
  %4034 = vmatprep.subr.bf16.mxu0 0
  %4035 = vmatpush1.bf16.msra.mxu0 %v2900
  %4036 = vmatprep.subr.bf16.mxu0 0
  %4037 = vmatpush1.bf16.msra.mxu0 %v2901
  %4038 = vmatprep.subr.bf16.mxu0 0
  %4039 = vmatpush1.bf16.msra.mxu0 %v2902
  %4040 = vmatprep.subr.bf16.mxu0 0
  %4041 = vmatpush1.bf16.msra.mxu0 %v2903
  %4042 = vmatprep.subr.bf16.mxu0 0
  %4043 = vmatpush1.bf16.msra.mxu0 %v2904
  %4044 = vmatprep.subr.bf16.mxu0 0
  %4045 = vmatpush1.bf16.msra.mxu0 %v2905
  %4046 = vmatprep.subr.bf16.mxu0 0
  %4047 = vmatpush1.bf16.msra.mxu0 %v2906
  %4048 = vmatprep.subr.bf16.mxu0 0
  %4049 = vmatpush1.bf16.msra.mxu0 %v2907
  %4050 = vmatprep.subr.bf16.mxu0 0
  %4051 = vmatpush1.bf16.msra.mxu0 %v2908
  %4052 = vmatprep.subr.bf16.mxu0 0
  %4053 = vmatpush1.bf16.msra.mxu0 %v2909
  %4054 = vmatprep.subr.bf16.mxu0 0
  %4055 = vmatpush1.bf16.msra.mxu0 %v2910
  %4056 = vmatprep.subr.bf16.mxu0 0
  %4057 = vmatpush1.bf16.msra.mxu0 %v2911
  %4058 = vmatprep.subr.bf16.mxu0 0
  %4059 = vmatpush1.bf16.msra.mxu0 %v2912
  %4060 = vmatprep.subr.bf16.mxu0 0
  %4061 = vmatpush1.bf16.msra.mxu0 %v2913
  %4062 = vmatprep.subr.bf16.mxu0 0
  %4063 = vmatpush1.bf16.msra.mxu0 %v2914
  %4064 = vmatprep.subr.bf16.mxu0 0
  %4065 = vmatpush1.bf16.msra.mxu0 %v2915
  %4066 = vmatprep.mubr.bf16.mxu0 %v1039
  %4067 = vmatmul.mubr.bf16.gmra.mrb[0].mxu0 %v1038
  %v4068 = vpop.f32.mrb[0].mxu0
  %v4069 = vadd.f32 %v4028, %v4068
  %v4070 = vpop.f32.mrb[0].mxu0
  %v4071 = vpop.f32.mrb[0].mxu0
  %v4072 = vadd.f32 %v4031, %v4071
  %v4073 = vpop.f32.mrb[0].mxu0
  %4074 = vdwg.mxu0
  %4075 = vmatprep.subr.bf16.mxu0 0
  %4076 = vmatpush1.bf16.msra.mxu0 %v2916
  %4077 = vmatprep.subr.bf16.mxu0 0
  %4078 = vmatpush1.bf16.msra.mxu0 %v2917
  %4079 = vmatprep.subr.bf16.mxu0 0
  %4080 = vmatpush1.bf16.msra.mxu0 %v2918
  %4081 = vmatprep.subr.bf16.mxu0 0
  %4082 = vmatpush1.bf16.msra.mxu0 %v2919
  %4083 = vmatprep.subr.bf16.mxu0 0
  %4084 = vmatpush1.bf16.msra.mxu0 %v2920
  %4085 = vmatprep.subr.bf16.mxu0 0
  %4086 = vmatpush1.bf16.msra.mxu0 %v2921
  %4087 = vmatprep.subr.bf16.mxu0 0
  %4088 = vmatpush1.bf16.msra.mxu0 %v2922
  %4089 = vmatprep.subr.bf16.mxu0 0
  %4090 = vmatpush1.bf16.msra.mxu0 %v2923
  %4091 = vmatprep.subr.bf16.mxu0 0
  %4092 = vmatpush1.bf16.msra.mxu0 %v2924
  %4093 = vmatprep.subr.bf16.mxu0 0
  %4094 = vmatpush1.bf16.msra.mxu0 %v2925
  %4095 = vmatprep.subr.bf16.mxu0 0
  %4096 = vmatpush1.bf16.msra.mxu0 %v2926
  %4097 = vmatprep.subr.bf16.mxu0 0
  %4098 = vmatpush1.bf16.msra.mxu0 %v2927
  %4099 = vmatprep.subr.bf16.mxu0 0
  %4100 = vmatpush1.bf16.msra.mxu0 %v2928
  %4101 = vmatprep.subr.bf16.mxu0 0
  %4102 = vmatpush1.bf16.msra.mxu0 %v2929
  %4103 = vmatprep.subr.bf16.mxu0 0
  %4104 = vmatpush1.bf16.msra.mxu0 %v2930
  %4105 = vmatprep.subr.bf16.mxu0 0
  %4106 = vmatpush1.bf16.msra.mxu0 %v2931
  %4107 = vmatprep.mubr.bf16.mxu0 %v1041
  %4108 = vmatmul.mubr.bf16.gmra.mrb[0].mxu0 %v1040
  %v4109 = vpop.f32.mrb[0].mxu0
  %v4110 = vadd.f32 %v4069, %v4109
  %v4111 = vpop.f32.mrb[0].mxu0
  %v4112 = vpop.f32.mrb[0].mxu0
  %v4113 = vadd.f32 %v4072, %v4112
  %v4114 = vpop.f32.mrb[0].mxu0
  %4115 = vdwg.mxu0
  %4116 = vmatprep.subr.bf16.mxu0 0
  %4117 = vmatpush1.bf16.msra.mxu0 %v2932
  %4118 = vmatprep.subr.bf16.mxu0 0
  %4119 = vmatpush1.bf16.msra.mxu0 %v2933
  %4120 = vmatprep.subr.bf16.mxu0 0
  %4121 = vmatpush1.bf16.msra.mxu0 %v2934
  %4122 = vmatprep.subr.bf16.mxu0 0
  %4123 = vmatpush1.bf16.msra.mxu0 %v2935
  %4124 = vmatprep.subr.bf16.mxu0 0
  %4125 = vmatpush1.bf16.msra.mxu0 %v2936
  %4126 = vmatprep.subr.bf16.mxu0 0
  %4127 = vmatpush1.bf16.msra.mxu0 %v2937
  %4128 = vmatprep.subr.bf16.mxu0 0
  %4129 = vmatpush1.bf16.msra.mxu0 %v2938
  %4130 = vmatprep.subr.bf16.mxu0 0
  %4131 = vmatpush1.bf16.msra.mxu0 %v2939
  %4132 = vmatprep.subr.bf16.mxu0 0
  %4133 = vmatpush1.bf16.msra.mxu0 %v2940
  %4134 = vmatprep.subr.bf16.mxu0 0
  %4135 = vmatpush1.bf16.msra.mxu0 %v2941
  %4136 = vmatprep.subr.bf16.mxu0 0
  %4137 = vmatpush1.bf16.msra.mxu0 %v2942
  %4138 = vmatprep.subr.bf16.mxu0 0
  %4139 = vmatpush1.bf16.msra.mxu0 %v2943
  %4140 = vmatprep.subr.bf16.mxu0 0
  %4141 = vmatpush1.bf16.msra.mxu0 %v2944
  %4142 = vmatprep.subr.bf16.mxu0 0
  %4143 = vmatpush1.bf16.msra.mxu0 %v2945
  %4144 = vmatprep.subr.bf16.mxu0 0
  %4145 = vmatpush1.bf16.msra.mxu0 %v2946
  %4146 = vmatprep.subr.bf16.mxu0 0
  %4147 = vmatpush1.bf16.msra.mxu0 %v2947
  %4148 = vmatprep.mubr.bf16.mxu0 %v1043
  %4149 = vmatmul.mubr.bf16.gmra.mrb[0].mxu0 %v1042
  %v4150 = vpop.f32.mrb[0].mxu0
  %v4151 = vadd.f32 %v4110, %v4150
  %v4152 = vpop.f32.mrb[0].mxu0
  %v4153 = vpop.f32.mrb[0].mxu0
  %v4154 = vadd.f32 %v4113, %v4153
  %v4155 = vpop.f32.mrb[0].mxu0
  %4156 = vdwg.mxu0
  %4157 = vmatprep.subr.bf16.mxu0 0
  %4158 = vmatpush1.bf16.msra.mxu0 %v2948
  %4159 = vmatprep.subr.bf16.mxu0 0
  %4160 = vmatpush1.bf16.msra.mxu0 %v2949
  %4161 = vmatprep.subr.bf16.mxu0 0
  %4162 = vmatpush1.bf16.msra.mxu0 %v2950
  %4163 = vmatprep.subr.bf16.mxu0 0
  %4164 = vmatpush1.bf16.msra.mxu0 %v2951
  %4165 = vmatprep.subr.bf16.mxu0 0
  %4166 = vmatpush1.bf16.msra.mxu0 %v2952
  %4167 = vmatprep.subr.bf16.mxu0 0
  %4168 = vmatpush1.bf16.msra.mxu0 %v2953
  %4169 = vmatprep.subr.bf16.mxu0 0
  %4170 = vmatpush1.bf16.msra.mxu0 %v2954
  %4171 = vmatprep.subr.bf16.mxu0 0
  %4172 = vmatpush1.bf16.msra.mxu0 %v2955
  %4173 = vmatprep.subr.bf16.mxu0 0
  %4174 = vmatpush1.bf16.msra.mxu0 %v2956
  %4175 = vmatprep.subr.bf16.mxu0 0
  %4176 = vmatpush1.bf16.msra.mxu0 %v2957
  %4177 = vmatprep.subr.bf16.mxu0 0
  %4178 = vmatpush1.bf16.msra.mxu0 %v2958
  %4179 = vmatprep.subr.bf16.mxu0 0
  %4180 = vmatpush1.bf16.msra.mxu0 %v2959
  %4181 = vmatprep.subr.bf16.mxu0 0
  %4182 = vmatpush1.bf16.msra.mxu0 %v2960
  %4183 = vmatprep.subr.bf16.mxu0 0
  %4184 = vmatpush1.bf16.msra.mxu0 %v2961
  %4185 = vmatprep.subr.bf16.mxu0 0
  %4186 = vmatpush1.bf16.msra.mxu0 %v2962
  %4187 = vmatprep.subr.bf16.mxu0 0
  %4188 = vmatpush1.bf16.msra.mxu0 %v2963
  %4189 = vmatprep.mubr.bf16.mxu0 %v1045
  %4190 = vmatmul.mubr.bf16.gmra.mrb[0].mxu0 %v1044
  %v4191 = vpop.f32.mrb[0].mxu0
  %v4192 = vadd.f32 %v4151, %v4191
  %v4193 = vpop.f32.mrb[0].mxu0
  %v4194 = vpop.f32.mrb[0].mxu0
  %v4195 = vadd.f32 %v4154, %v4194
  %v4196 = vpop.f32.mrb[0].mxu0
  %4197 = vdwg.mxu0
  %4198 = vmatprep.subr.bf16.mxu0 0
  %4199 = vmatpush1.bf16.msra.mxu0 %v2964
  %4200 = vmatprep.subr.bf16.mxu0 0
  %4201 = vmatpush1.bf16.msra.mxu0 %v2965
  %4202 = vmatprep.subr.bf16.mxu0 0
  %4203 = vmatpush1.bf16.msra.mxu0 %v2966
  %4204 = vmatprep.subr.bf16.mxu0 0
  %4205 = vmatpush1.bf16.msra.mxu0 %v2967
  %4206 = vmatprep.subr.bf16.mxu0 0
  %4207 = vmatpush1.bf16.msra.mxu0 %v2968
  %4208 = vmatprep.subr.bf16.mxu0 0
  %4209 = vmatpush1.bf16.msra.mxu0 %v2969
  %4210 = vmatprep.subr.bf16.mxu0 0
  %4211 = vmatpush1.bf16.msra.mxu0 %v2970
  %4212 = vmatprep.subr.bf16.mxu0 0
  %4213 = vmatpush1.bf16.msra.mxu0 %v2971
  %4214 = vmatprep.subr.bf16.mxu0 0
  %4215 = vmatpush1.bf16.msra.mxu0 %v2972
  %4216 = vmatprep.subr.bf16.mxu0 0
  %4217 = vmatpush1.bf16.msra.mxu0 %v2973
  %4218 = vmatprep.subr.bf16.mxu0 0
  %4219 = vmatpush1.bf16.msra.mxu0 %v2974
  %4220 = vmatprep.subr.bf16.mxu0 0
  %4221 = vmatpush1.bf16.msra.mxu0 %v2975
  %4222 = vmatprep.subr.bf16.mxu0 0
  %4223 = vmatpush1.bf16.msra.mxu0 %v2976
  %4224 = vmatprep.subr.bf16.mxu0 0
  %4225 = vmatpush1.bf16.msra.mxu0 %v2977
  %4226 = vmatprep.subr.bf16.mxu0 0
  %4227 = vmatpush1.bf16.msra.mxu0 %v2978
  %4228 = vmatprep.subr.bf16.mxu0 0
  %4229 = vmatpush1.bf16.msra.mxu0 %v2979
  %4230 = vmatprep.mubr.bf16.mxu0 %v1047
  %4231 = vmatmul.mubr.bf16.gmra.mrb[0].mxu0 %v1046
  %v4232 = vpop.f32.mrb[0].mxu0
  %v4233 = vadd.f32 %v4192, %v4232
  %v4234 = vpop.f32.mrb[0].mxu0
  %v4235 = vpop.f32.mrb[0].mxu0
  %v4236 = vadd.f32 %v4195, %v4235
  %v4237 = vpop.f32.mrb[0].mxu0
  %4238 = vdwg.mxu0
  %4239 = vmatprep.subr.bf16.mxu0 0
  %4240 = vmatpush1.bf16.msra.mxu0 %v2980
  %4241 = vmatprep.subr.bf16.mxu0 0
  %4242 = vmatpush1.bf16.msra.mxu0 %v2981
  %4243 = vmatprep.subr.bf16.mxu0 0
  %4244 = vmatpush1.bf16.msra.mxu0 %v2982
  %4245 = vmatprep.subr.bf16.mxu0 0
  %4246 = vmatpush1.bf16.msra.mxu0 %v2983
  %4247 = vmatprep.subr.bf16.mxu0 0
  %4248 = vmatpush1.bf16.msra.mxu0 %v2984
  %4249 = vmatprep.subr.bf16.mxu0 0
  %4250 = vmatpush1.bf16.msra.mxu0 %v2985
  %4251 = vmatprep.subr.bf16.mxu0 0
  %4252 = vmatpush1.bf16.msra.mxu0 %v2986
  %4253 = vmatprep.subr.bf16.mxu0 0
  %4254 = vmatpush1.bf16.msra.mxu0 %v2987
  %4255 = vmatprep.subr.bf16.mxu0 0
  %4256 = vmatpush1.bf16.msra.mxu0 %v2988
  %4257 = vmatprep.subr.bf16.mxu0 0
  %4258 = vmatpush1.bf16.msra.mxu0 %v2989
  %4259 = vmatprep.subr.bf16.mxu0 0
  %4260 = vmatpush1.bf16.msra.mxu0 %v2990
  %4261 = vmatprep.subr.bf16.mxu0 0
  %4262 = vmatpush1.bf16.msra.mxu0 %v2991
  %4263 = vmatprep.subr.bf16.mxu0 0
  %4264 = vmatpush1.bf16.msra.mxu0 %v2992
  %4265 = vmatprep.subr.bf16.mxu0 0
  %4266 = vmatpush1.bf16.msra.mxu0 %v2993
  %4267 = vmatprep.subr.bf16.mxu0 0
  %4268 = vmatpush1.bf16.msra.mxu0 %v2994
  %4269 = vmatprep.subr.bf16.mxu0 0
  %4270 = vmatpush1.bf16.msra.mxu0 %v2995
  %4271 = vmatprep.mubr.bf16.mxu0 %v1049
  %4272 = vmatmul.mubr.bf16.gmra.mrb[0].mxu0 %v1048
  %v4273 = vpop.f32.mrb[0].mxu0
  %v4274 = vadd.f32 %v4233, %v4273
  %v4275 = vpop.f32.mrb[0].mxu0
  %v4276 = vpop.f32.mrb[0].mxu0
  %v4277 = vadd.f32 %v4236, %v4276
  %v4278 = vpop.f32.mrb[0].mxu0
  %4279 = vdwg.mxu0
  %4280 = vmatprep.subr.bf16.mxu0 0
  %4281 = vmatpush1.bf16.msra.mxu0 %v2996
  %4282 = vmatprep.subr.bf16.mxu0 0
  %4283 = vmatpush1.bf16.msra.mxu0 %v2997
  %4284 = vmatprep.subr.bf16.mxu0 0
  %4285 = vmatpush1.bf16.msra.mxu0 %v2998
  %4286 = vmatprep.subr.bf16.mxu0 0
  %4287 = vmatpush1.bf16.msra.mxu0 %v2999
  %4288 = vmatprep.subr.bf16.mxu0 0
  %4289 = vmatpush1.bf16.msra.mxu0 %v3000
  %4290 = vmatprep.subr.bf16.mxu0 0
  %4291 = vmatpush1.bf16.msra.mxu0 %v3001
  %4292 = vmatprep.subr.bf16.mxu0 0
  %4293 = vmatpush1.bf16.msra.mxu0 %v3002
  %4294 = vmatprep.subr.bf16.mxu0 0
  %4295 = vmatpush1.bf16.msra.mxu0 %v3003
  %4296 = vmatprep.subr.bf16.mxu0 0
  %4297 = vmatpush1.bf16.msra.mxu0 %v3004
  %4298 = vmatprep.subr.bf16.mxu0 0
  %4299 = vmatpush1.bf16.msra.mxu0 %v3005
  %4300 = vmatprep.subr.bf16.mxu0 0
  %4301 = vmatpush1.bf16.msra.mxu0 %v3006
  %4302 = vmatprep.subr.bf16.mxu0 0
  %4303 = vmatpush1.bf16.msra.mxu0 %v3007
  %4304 = vmatprep.subr.bf16.mxu0 0
  %4305 = vmatpush1.bf16.msra.mxu0 %v3008
  %4306 = vmatprep.subr.bf16.mxu0 0
  %4307 = vmatpush1.bf16.msra.mxu0 %v3009
  %4308 = vmatprep.subr.bf16.mxu0 0
  %4309 = vmatpush1.bf16.msra.mxu0 %v3010
  %4310 = vmatprep.subr.bf16.mxu0 0
  %4311 = vmatpush1.bf16.msra.mxu0 %v3011
  %4312 = vmatprep.mubr.bf16.mxu0 %v1051
  %4313 = vmatmul.mubr.bf16.gmra.mrb[0].mxu0 %v1050
  %v4314 = vpop.f32.mrb[0].mxu0
  %v4315 = vadd.f32 %v4274, %v4314
  %v4316 = vpop.f32.mrb[0].mxu0
  %v4317 = vpop.f32.mrb[0].mxu0
  %v4318 = vadd.f32 %v4277, %v4317
  %v4319 = vpop.f32.mrb[0].mxu0
  %4320 = vdwg.mxu0
  %4321 = vmatprep.subr.bf16.mxu0 0
  %4322 = vmatpush1.bf16.msra.mxu0 %v3012
  %4323 = vmatprep.subr.bf16.mxu0 0
  %4324 = vmatpush1.bf16.msra.mxu0 %v3013
  %4325 = vmatprep.subr.bf16.mxu0 0
  %4326 = vmatpush1.bf16.msra.mxu0 %v3014
  %4327 = vmatprep.subr.bf16.mxu0 0
  %4328 = vmatpush1.bf16.msra.mxu0 %v3015
  %4329 = vmatprep.subr.bf16.mxu0 0
  %4330 = vmatpush1.bf16.msra.mxu0 %v3016
  %4331 = vmatprep.subr.bf16.mxu0 0
  %4332 = vmatpush1.bf16.msra.mxu0 %v3017
  %4333 = vmatprep.subr.bf16.mxu0 0
  %4334 = vmatpush1.bf16.msra.mxu0 %v3018
  %4335 = vmatprep.subr.bf16.mxu0 0
  %4336 = vmatpush1.bf16.msra.mxu0 %v3019
  %4337 = vmatprep.subr.bf16.mxu0 0
  %4338 = vmatpush1.bf16.msra.mxu0 %v3020
  %4339 = vmatprep.subr.bf16.mxu0 0
  %4340 = vmatpush1.bf16.msra.mxu0 %v3021
  %4341 = vmatprep.subr.bf16.mxu0 0
  %4342 = vmatpush1.bf16.msra.mxu0 %v3022
  %4343 = vmatprep.subr.bf16.mxu0 0
  %4344 = vmatpush1.bf16.msra.mxu0 %v3023
  %4345 = vmatprep.subr.bf16.mxu0 0
  %4346 = vmatpush1.bf16.msra.mxu0 %v3024
  %4347 = vmatprep.subr.bf16.mxu0 0
  %4348 = vmatpush1.bf16.msra.mxu0 %v3025
  %4349 = vmatprep.subr.bf16.mxu0 0
  %4350 = vmatpush1.bf16.msra.mxu0 %v3026
  %4351 = vmatprep.subr.bf16.mxu0 0
  %4352 = vmatpush1.bf16.msra.mxu0 %v3027
  %4353 = vmatprep.mubr.bf16.mxu0 %v1053
  %4354 = vmatmul.mubr.bf16.gmra.mrb[0].mxu0 %v1052
  %v4355 = vpop.f32.mrb[0].mxu0
  %v4356 = vadd.f32 %v4315, %v4355
  %v4357 = vpop.f32.mrb[0].mxu0
  %v4358 = vpop.f32.mrb[0].mxu0
  %v4359 = vadd.f32 %v4318, %v4358
  %v4360 = vpop.f32.mrb[0].mxu0
  %4361 = vdwg.mxu0
  %4362 = vmatprep.subr.bf16.mxu0 0
  %4363 = vmatpush1.bf16.msra.mxu0 %v3028
  %4364 = vmatprep.subr.bf16.mxu0 0
  %4365 = vmatpush1.bf16.msra.mxu0 %v3029
  %4366 = vmatprep.subr.bf16.mxu0 0
  %4367 = vmatpush1.bf16.msra.mxu0 %v3030
  %4368 = vmatprep.subr.bf16.mxu0 0
  %4369 = vmatpush1.bf16.msra.mxu0 %v3031
  %4370 = vmatprep.subr.bf16.mxu0 0
  %4371 = vmatpush1.bf16.msra.mxu0 %v3032
  %4372 = vmatprep.subr.bf16.mxu0 0
  %4373 = vmatpush1.bf16.msra.mxu0 %v3033
  %4374 = vmatprep.subr.bf16.mxu0 0
  %4375 = vmatpush1.bf16.msra.mxu0 %v3034
  %4376 = vmatprep.subr.bf16.mxu0 0
  %4377 = vmatpush1.bf16.msra.mxu0 %v3035
  %4378 = vmatprep.subr.bf16.mxu0 0
  %4379 = vmatpush1.bf16.msra.mxu0 %v3036
  %4380 = vmatprep.subr.bf16.mxu0 0
  %4381 = vmatpush1.bf16.msra.mxu0 %v3037
  %4382 = vmatprep.subr.bf16.mxu0 0
  %4383 = vmatpush1.bf16.msra.mxu0 %v3038
  %4384 = vmatprep.subr.bf16.mxu0 0
  %4385 = vmatpush1.bf16.msra.mxu0 %v3039
  %4386 = vmatprep.subr.bf16.mxu0 0
  %4387 = vmatpush1.bf16.msra.mxu0 %v3040
  %4388 = vmatprep.subr.bf16.mxu0 0
  %4389 = vmatpush1.bf16.msra.mxu0 %v3041
  %4390 = vmatprep.subr.bf16.mxu0 0
  %4391 = vmatpush1.bf16.msra.mxu0 %v3042
  %4392 = vmatprep.subr.bf16.mxu0 0
  %4393 = vmatpush1.bf16.msra.mxu0 %v3043
  %4394 = vmatprep.mubr.bf16.mxu0 %v1055
  %4395 = vmatmul.mubr.bf16.gmra.mrb[0].mxu0 %v1054
  %v4396 = vpop.f32.mrb[0].mxu0
  %v4397 = vadd.f32 %v4356, %v4396
  %v4398 = vpop.f32.mrb[0].mxu0
  %v4399 = vpop.f32.mrb[0].mxu0
  %v4400 = vadd.f32 %v4359, %v4399
  %v4401 = vpop.f32.mrb[0].mxu0
  %4402 = vdwg.mxu0
  %4403 = vmatprep.subr.bf16.mxu0 0
  %4404 = vmatpush1.bf16.msra.mxu0 %v3044
  %4405 = vmatprep.subr.bf16.mxu0 0
  %4406 = vmatpush1.bf16.msra.mxu0 %v3045
  %4407 = vmatprep.subr.bf16.mxu0 0
  %4408 = vmatpush1.bf16.msra.mxu0 %v3046
  %4409 = vmatprep.subr.bf16.mxu0 0
  %4410 = vmatpush1.bf16.msra.mxu0 %v3047
  %4411 = vmatprep.subr.bf16.mxu0 0
  %4412 = vmatpush1.bf16.msra.mxu0 %v3048
  %4413 = vmatprep.subr.bf16.mxu0 0
  %4414 = vmatpush1.bf16.msra.mxu0 %v3049
  %4415 = vmatprep.subr.bf16.mxu0 0
  %4416 = vmatpush1.bf16.msra.mxu0 %v3050
  %4417 = vmatprep.subr.bf16.mxu0 0
  %4418 = vmatpush1.bf16.msra.mxu0 %v3051
  %4419 = vmatprep.subr.bf16.mxu0 0
  %4420 = vmatpush1.bf16.msra.mxu0 %v3052
  %4421 = vmatprep.subr.bf16.mxu0 0
  %4422 = vmatpush1.bf16.msra.mxu0 %v3053
  %4423 = vmatprep.subr.bf16.mxu0 0
  %4424 = vmatpush1.bf16.msra.mxu0 %v3054
  %4425 = vmatprep.subr.bf16.mxu0 0
  %4426 = vmatpush1.bf16.msra.mxu0 %v3055
  %4427 = vmatprep.subr.bf16.mxu0 0
  %4428 = vmatpush1.bf16.msra.mxu0 %v3056
  %4429 = vmatprep.subr.bf16.mxu0 0
  %4430 = vmatpush1.bf16.msra.mxu0 %v3057
  %4431 = vmatprep.subr.bf16.mxu0 0
  %4432 = vmatpush1.bf16.msra.mxu0 %v3058
  %4433 = vmatprep.subr.bf16.mxu0 0
  %4434 = vmatpush1.bf16.msra.mxu0 %v3059
  %4435 = vmatprep.mubr.bf16.mxu0 %v1057
  %4436 = vmatmul.mubr.bf16.gmra.mrb[0].mxu0 %v1056
  %v4437 = vpop.f32.mrb[0].mxu0
  %v4438 = vadd.f32 %v4397, %v4437
  %v4439 = vpop.f32.mrb[0].mxu0
  %v4440 = vpop.f32.mrb[0].mxu0
  %v4441 = vadd.f32 %v4400, %v4440
  %v4442 = vpop.f32.mrb[0].mxu0
  %4443 = vdwg.mxu0
  %4444 = vmatprep.subr.bf16.mxu0 0
  %4445 = vmatpush1.bf16.msra.mxu0 %v3060
  %4446 = vmatprep.subr.bf16.mxu0 0
  %4447 = vmatpush1.bf16.msra.mxu0 %v3061
  %4448 = vmatprep.subr.bf16.mxu0 0
  %4449 = vmatpush1.bf16.msra.mxu0 %v3062
  %4450 = vmatprep.subr.bf16.mxu0 0
  %4451 = vmatpush1.bf16.msra.mxu0 %v3063
  %4452 = vmatprep.subr.bf16.mxu0 0
  %4453 = vmatpush1.bf16.msra.mxu0 %v3064
  %4454 = vmatprep.subr.bf16.mxu0 0
  %4455 = vmatpush1.bf16.msra.mxu0 %v3065
  %4456 = vmatprep.subr.bf16.mxu0 0
  %4457 = vmatpush1.bf16.msra.mxu0 %v3066
  %4458 = vmatprep.subr.bf16.mxu0 0
  %4459 = vmatpush1.bf16.msra.mxu0 %v3067
  %4460 = vmatprep.subr.bf16.mxu0 0
  %4461 = vmatpush1.bf16.msra.mxu0 0
  %4462 = vmatprep.subr.bf16.mxu0 0
  %4463 = vmatpush1.bf16.msra.mxu0 0
  %4464 = vmatprep.subr.bf16.mxu0 0
  %4465 = vmatpush1.bf16.msra.mxu0 0
  %4466 = vmatprep.subr.bf16.mxu0 0
  %4467 = vmatpush1.bf16.msra.mxu0 0
  %4468 = vmatprep.subr.bf16.mxu0 0
  %4469 = vmatpush1.bf16.msra.mxu0 0
  %4470 = vmatprep.subr.bf16.mxu0 0
  %4471 = vmatpush1.bf16.msra.mxu0 0
  %4472 = vmatprep.subr.bf16.mxu0 0
  %4473 = vmatpush1.bf16.msra.mxu0 0
  %4474 = vmatprep.subr.bf16.mxu0 0
  %4475 = vmatpush1.bf16.msra.mxu0 0
  %4476 = vmatprep.mubr.bf16.mxu0 0
  %4477 = vmatmul.mubr.bf16.gmra.mrb[0].mxu0 %v1058
  %v4478 = vpop.f32.mrb[0].mxu0
  %v4479 = vadd.f32 %v4438, %v4478
  %v4480 = vpop.f32.mrb[0].mxu0
  %v4481 = vpop.f32.mrb[0].mxu0
  %v4482 = vadd.f32 %v4441, %v4481
  %v4483 = vpop.f32.mrb[0].mxu0
  %4484 = vdwg.mxu0
  %v4485 = vmax.f32 %v4479, 0.0
  %v4486 = vmax.f32 %v4482, 0.0
  %v4487 = vpack.c.bf16 %v4486, %v4485
  %v4488 = vld [vmem:[%s3] sm:$0xf]
  %v4489 = vld [vmem:[%s3 + $0x4] sm:$0xf]
  %v4490 = vld [vmem:[%s3 + $0x8] sm:$0xf]
  %v4491 = vld [vmem:[%s3 + $0xc] sm:$0xf]
  %v4492 = vld [vmem:[%s3 + $0x10] sm:$0xf]
  %v4493 = vld [vmem:[%s3 + $0x14] sm:$0xf]
  %v4494 = vld [vmem:[%s3 + $0x18] sm:$0xf]
  %v4495 = vld [vmem:[%s3 + $0x1c] sm:$0xf]
  %v4496 = vld [vmem:[%s3 + $0x20] sm:$0xf]
  %v4497 = vld [vmem:[%s3 + $0x24] sm:$0xf]
  %v4498 = vld [vmem:[%s3 + $0x28] sm:$0xf]
  %v4499 = vld [vmem:[%s3 + $0x2c] sm:$0xf]
  %v4500 = vld [vmem:[%s3 + $0x30] sm:$0xf]
  %v4501 = vld [vmem:[%s3 + $0x34] sm:$0xf]
  %v4502 = vld [vmem:[%s3 + $0x38] sm:$0xf]
  %v4503 = vld [vmem:[%s3 + $0x3c] sm:$0xf]
  %v4504 = vld [vmem:[%s4] sm:$0x1]
  %v4506 = vlaneseq
  %v4507 = vshrl.u32 %v4506, 7
  %v4508 = vsub.s32 0, %v4507
  %v4509 = vrot.slane %v4504, %v4508
  %v4527 = vunpack.c.l.b16 %v4488
  %v4528 = vunpack.c.l.b16 %v4489
  %v4529 = vunpack.c.l.b16 %v4490
  %v4530 = vunpack.c.l.b16 %v4491
  %v4531 = vunpack.c.l.b16 %v4492
  %v4532 = vunpack.c.l.b16 %v4493
  %v4533 = vunpack.c.l.b16 %v4494
  %v4534 = vunpack.c.l.b16 %v4495
  %v4535 = vunpack.c.l.b16 %v4496
  %v4536 = vunpack.c.l.b16 %v4497
  %v4537 = vunpack.c.l.b16 %v4498
  %v4538 = vunpack.c.l.b16 %v4499
  %v4539 = vunpack.c.l.b16 %v4500
  %v4540 = vunpack.c.l.b16 %v4501
  %v4541 = vunpack.c.l.b16 %v4502
  %v4542 = vunpack.c.l.b16 %v4503
  %v4543 = vpack.c.b16 %v4528, %v4527
  %v4544 = vpack.c.b16 %v4530, %v4529
  %v4545 = vpack.c.b16 %v4532, %v4531
  %v4546 = vpack.c.b16 %v4534, %v4533
  %v4547 = vpack.c.b16 %v4536, %v4535
  %v4548 = vpack.c.b16 %v4538, %v4537
  %v4549 = vpack.c.b16 %v4540, %v4539
  %v4550 = vpack.c.b16 %v4542, %v4541
  %4559 = vmatprep.subr.bf16.mxu0 0
  %4560 = vmatpush1.bf16.msra.mxu0 %v4543
  %4561 = vmatprep.subr.bf16.mxu0 0
  %4562 = vmatpush1.bf16.msra.mxu0 %v4544
  %4563 = vmatprep.subr.bf16.mxu0 0
  %4564 = vmatpush1.bf16.msra.mxu0 %v4545
  %4565 = vmatprep.subr.bf16.mxu0 0
  %4566 = vmatpush1.bf16.msra.mxu0 %v4546
  %4567 = vmatprep.subr.bf16.mxu0 0
  %4568 = vmatpush1.bf16.msra.mxu0 %v4547
  %4569 = vmatprep.subr.bf16.mxu0 0
  %4570 = vmatpush1.bf16.msra.mxu0 %v4548
  %4571 = vmatprep.subr.bf16.mxu0 0
  %4572 = vmatpush1.bf16.msra.mxu0 %v4549
  %4573 = vmatprep.subr.bf16.mxu0 0
  %4574 = vmatpush1.bf16.msra.mxu0 %v4550
  %4575 = vmatprep.subr.bf16.mxu0 0
  %4576 = vmatpush1.bf16.msra.mxu0 0
  %4577 = vmatprep.subr.bf16.mxu0 0
  %4578 = vmatpush1.bf16.msra.mxu0 0
  %4579 = vmatprep.subr.bf16.mxu0 0
  %4580 = vmatpush1.bf16.msra.mxu0 0
  %4581 = vmatprep.subr.bf16.mxu0 0
  %4582 = vmatpush1.bf16.msra.mxu0 0
  %4583 = vmatprep.subr.bf16.mxu0 0
  %4584 = vmatpush1.bf16.msra.mxu0 0
  %4585 = vmatprep.subr.bf16.mxu0 0
  %4586 = vmatpush1.bf16.msra.mxu0 0
  %4587 = vmatprep.subr.bf16.mxu0 0
  %4588 = vmatpush1.bf16.msra.mxu0 0
  %4589 = vmatprep.subr.bf16.mxu0 0
  %4590 = vmatpush1.bf16.msra.mxu0 0
  %4591 = vmatprep.mubr.bf16.mxu0 0
  %4592 = vmatmul.mubr.bf16.gmra.mrb[0].mxu0 %v4487
  %v4593 = vpop.f32.mrb[0].mxu0
  %v4594 = vadd.f32 %v4509, %v4593
  %v4595 = vpop.f32.mrb[0].mxu0
  %v4596 = vpop.f32.mrb[0].mxu0
  %v4597 = vadd.f32 %v4509, %v4596
  %v4598 = vpop.f32.mrb[0].mxu0
  %4599 = vdwg.mxu0
  %4600 = vst [vmem:[%s5] sm:$0xff] %v4594
  %4601 = vst [vmem:[%s5 + $0x8] sm:$0xff] %v4597
  // Predicated region
  $region22: #{mnist_classifier_forward.5} parent=0 // pred_check
    _
  $region23: #{mnist_classifier_forward.5} parent=0 // pred_check_branch
    %4603 = sbr.rel (0) target = $region25
  $region24: #{mnist_classifier_forward.5} parent=0 // pred_region
    _
  $region25: #{mnist_classifier_forward.5} parent=0 // pred_fallthru
    _
  // Predicated region
  $region26: #{mnist_classifier_forward.5} parent=0 // pred_check
    _
  $region27: #{mnist_classifier_forward.5} parent=0 // pred_check_branch
    %4605 = sbr.rel (0) target = $region29
  $region28: #{mnist_classifier_forward.5} parent=0 // pred_region
    _
  $region29: #{mnist_classifier_forward.5} parent=0 // pred_fallthru
    _

</llo_original>
